<compile_context>
chip_gen: v6e
topology: v6e:2x2x1
jax: 0.10.0
libtpu: 0.0.40
codegen_flags: <defaults>
</compile_context>

<pallas_src>
import jax
import jax.numpy as jnp
from jax.experimental import pallas as pl
from jax.experimental.pallas import tpu as pltpu


def _round_up(x, m):
    return ((x + m - 1) // m) * m


def _make_kernel(n_per_step, H, W, eps):
    HW = H * W

    def conv_in_relu(x, w_flat, keep):
        """3x3 same-conv + InstanceNorm2d(affine=False) + ReLU for one sample.

        x:      (c, HW) f32 value (already in vregs), flat spatial on lanes
        w_flat: (co_p, 9*c) f32, tap-major columns
        keep:   dict (dy, dx) -> (1, HW) bool validity mask (None = all valid)
        """
        taps = []
        for dy in range(3):
            for dx in range(3):
                d = (dy - 1) * W + (dx - 1)          # flat-spatial tap offset
                # tap[:, p] = x[:, p + d]  (lane rotation; rides the XLU slot)
                t = x if d == 0 else pltpu.roll(x, shift=(-d) % HW, axis=1)
                m = keep[(dy, dx)]
                if m is not None:                    # kill wrap-around values
                    t = jnp.where(m, t, 0.0)
                taps.append(t)
        # im2col stack on sublanes: (9*c, HW).  Every piece has a multiple of
        # 8 rows (channels padded in the wrapper) -> aligned, no relayout.
        patches = jnp.concatenate(taps, axis=0)
        # Single MXU contraction per stage (replaces 9 tiny per-tap matmuls).
        acc = jax.lax.dot_general(
            w_flat, patches,
            dimension_numbers=(((1,), (0,)), ((), ())),
            preferred_element_type=jnp.float32,
            precision=jax.lax.Precision.HIGHEST)
        # NOTE: no bias add -- InstanceNorm's mean subtraction cancels it.
        # InstanceNorm2d(affine=False): per-channel stats over the spatial
        # (lane) axis, biased variance, then ReLU.
        mean = jnp.mean(acc, axis=1, keepdims=True)
        cent = acc - mean
        var = jnp.mean(cent * cent, axis=1, keepdims=True)
        return jnp.maximum(cent * jax.lax.rsqrt(var + eps), 0.0)

    def kernel(x_ref, w1_ref, w2_ref, o_ref):
        # x_ref : (n_per_step, ci_p, HW)   flat-spatial input, channels padded
        # w1_ref: (co_p, 9*ci_p)           tap-major im2col weights
        # w2_ref: (co_p, 9*co_p)
        # o_ref : (n_per_step, co_p, HW)
        pos = jax.lax.broadcasted_iota(jnp.int32, (1, HW), 1)
        col = pos % W
        # Combined (dy & dx) validity mask per tap; shared by both stages.
        keep = {}
        for dy in range(3):
            for dx in range(3):
                m = None
                if dy == 0:
                    m = pos >= W                     # reads row y-1
                elif dy == 2:
                    m = pos < (H - 1) * W            # reads row y+1
                if dx == 0:
                    mx = col >= 1                    # reads column x-1
                    m = mx if m is None else jnp.logical_and(m, mx)
                elif dx == 2:
                    mx = col <= W - 2                # reads column x+1
                    m = mx if m is None else jnp.logical_and(m, mx)
                keep[(dy, dx)] = m

        w1 = w1_ref[...]
        w2 = w2_ref[...]
        for n in range(n_per_step):      # static unroll over the tiny batch
            h1 = conv_in_relu(x_ref[n], w1, keep)    # conv1 + IN + ReLU
            h2 = conv_in_relu(h1, w2, keep)          # conv2 + IN + ReLU
            o_ref[n] = h2

    return kernel


def conv_block(x_nchw, w1, b1, w2, b2, eps=1e-5, samples_per_step=None):
    """Fused ConvBlock forward: (Conv3x3 -> InstanceNorm2d -> ReLU) x 2.

    x_nchw: (N, C_in, H, W) f32
    w1: (C_out, C_in, 3, 3)   b1: (C_out,)   (PyTorch Conv2d layouts)
    w2: (C_out, C_out, 3, 3)  b2: (C_out,)
    returns (N, C_out, H, W) f32
    """
    # Conv biases are mathematically cancelled by InstanceNorm2d(affine=False)
    # (per-channel spatial mean is subtracted right after each conv), so they
    # are not passed to the kernel.  Do not reuse this wrapper if an op is
    # inserted between conv and IN, or if IN becomes affine.
    del b1, b2

    N, C_in, H, W = x_nchw.shape
    C_out = w1.shape[0]
    HW = H * W
    ci_p = _round_up(C_in, 8)    # pad channels to sublane multiples so the
    co_p = _round_up(C_out, 8)   # in-kernel im2col concat stays aligned

    # Single grid step by default (best on single-TC v5e/v6e; per-sample work
    # is too small to amortize v7x's second core).  samples_per_step=1 gives
    # the grid=(N,) "parallel" megacore layout for v7x experiments.
    if samples_per_step is None:
        samples_per_step = N
    assert N % samples_per_step == 0
    steps = N // samples_per_step

    # Contiguous reshape + zero channel padding; no activation transposes.
    x_flat = x_nchw.reshape(N, C_in, HW)
    if ci_p != C_in:
        x_flat = jnp.pad(x_flat, ((0, 0), (0, ci_p - C_in), (0, 0)))

    # Tap-major im2col weights: w_flat[co, t*ci_pad + ci] = w[co, ci, dy, dx],
    # t = dy*3 + dx; zero-padded on both channel dims.
    def to_im2col(w, ci, ci_pad):
        co = w.shape[0]
        wt = jnp.transpose(w, (0, 2, 3, 1))                    # (co, 3, 3, ci)
        wt = jnp.pad(wt, ((0, co_p - co), (0, 0), (0, 0), (0, ci_pad - ci)))
        return wt.reshape(co_p, 9 * ci_pad)

    w1_flat = to_im2col(w1, C_in, ci_p)
    w2_flat = to_im2col(w2, C_out, co_p)

    kernel = _make_kernel(samples_per_step, H, W, eps)

    flops = 2 * N * HW * 9 * (ci_p + co_p) * co_p
    bytes_accessed = 4 * (x_flat.size + w1_flat.size + w2_flat.size
                          + N * co_p * HW)

    out_flat = pl.pallas_call(
        kernel,
        out_shape=jax.ShapeDtypeStruct((N, co_p, HW), jnp.float32),
        grid=(steps,),
        in_specs=[
            pl.BlockSpec((samples_per_step, ci_p, HW), lambda i: (i, 0, 0)),
            pl.BlockSpec((co_p, 9 * ci_p), lambda i: (0, 0)),
            pl.BlockSpec((co_p, 9 * co_p), lambda i: (0, 0)),
        ],
        out_specs=pl.BlockSpec((samples_per_step, co_p, HW),
                               lambda i: (i, 0, 0)),
        compiler_params=pltpu.CompilerParams(
            dimension_semantics=("parallel",)),
        cost_estimate=pl.CostEstimate(
            flops=flops, transcendentals=2 * N * co_p,
            bytes_accessed=bytes_accessed),
    )(x_flat, w1_flat, w2_flat)

    out = out_flat[:, :C_out, :] if co_p != C_out else out_flat
    return out.reshape(N, C_out, H, W)


def conv_block_reference(x, w1, b1, w2, b2, eps=1e-5):
    """Pure-JAX/XLA reference matching the PyTorch module (f32)."""
    def conv(h, w, b):
        y = jax.lax.conv_general_dilated(
            h, w, window_strides=(1, 1), padding=((1, 1), (1, 1)),
            dimension_numbers=("NCHW", "OIHW", "NCHW"),
            precision=jax.lax.Precision.HIGHEST)
        return y + b[None, :, None, None]

    def in_relu(y):
        mean = jnp.mean(y, axis=(2, 3), keepdims=True)
        var = jnp.mean((y - mean) ** 2, axis=(2, 3), keepdims=True)
        return jnp.maximum((y - mean) * jax.lax.rsqrt(var + eps), 0.0)

    return in_relu(conv(in_relu(conv(x, w1, b1)), w2, b2))


def init_params(key, ch_in, ch_out):
    """Deterministic Kaiming-uniform-style init matching Conv2d shapes."""
    k1, k2, k3, k4 = jax.random.split(key, 4)
    bound1 = 1.0 / (ch_in * 9) ** 0.5
    bound2 = 1.0 / (ch_out * 9) ** 0.5
    w1 = jax.random.uniform(k1, (ch_out, ch_in, 3, 3), jnp.float32,
                            -bound1, bound1)
    b1 = jax.random.uniform(k2, (ch_out,), jnp.float32, -bound1, bound1)
    w2 = jax.random.uniform(k3, (ch_out, ch_out, 3, 3), jnp.float32,
                            -bound2, bound2)
    b2 = jax.random.uniform(k4, (ch_out,), jnp.float32, -bound2, bound2)
    return w1, b1, w2, b2


if __name__ == "__main__":
    key = jax.random.PRNGKey(0)
    k_x, k_p = jax.random.split(key)

    N, ch_in, ch_out, H, W = 2, 4, 8, 16, 16
    x = jax.random.normal(k_x, (N, ch_in, H, W), jnp.float32)
    w1, b1, w2, b2 = init_params(k_p, ch_in, ch_out)

    out = conv_block(x, w1, b1, w2, b2)
    jax.block_until_ready(out)
    assert out.shape == (N, ch_out, H, W)

    # Correctness vs. a pure-JAX reference (observed ~1e-6 with HIGHEST
    # precision; loose bound tolerates any bf16-pass matmul fallback while
    # still catching structural bugs on these O(1) normalized outputs).
    ref = conv_block_reference(x, w1, b1, w2, b2)
    err = float(jnp.max(jnp.abs(out - ref)))
    assert err < 2e-2, f"max |pallas - reference| = {err}"
    print("KERNEL_OK")
</pallas_src>

<mosaic_0001>
module attributes {stable_mosaic.version = 11 : i64} {
  func.func @kernel(%arg0: i32, %arg1: memref<2x8x256xf32, #tpu.memory_space<vmem>>, %arg2: memref<8x72xf32, #tpu.memory_space<vmem>>, %arg3: memref<8x72xf32, #tpu.memory_space<vmem>>, %arg4: memref<2x8x256xf32, #tpu.memory_space<vmem>>) attributes {dimension_semantics = [#tpu.dimension_semantics<parallel>], iteration_bounds = array<i64: 1>, scalar_prefetch = 0 : i64, scratch_operands = 0 : i64, tpu.core_type = #tpu.core_type<tc>, window_params = [{transform_indices = @transform_0, window_bounds = array<i64: 2, 8, 256>}, {pipeline_mode = #tpu.pipeline_mode<synchronous>, transform_indices = @transform_1, window_bounds = array<i64: 8, 72>}, {pipeline_mode = #tpu.pipeline_mode<synchronous>, transform_indices = @transform_2, window_bounds = array<i64: 8, 72>}, {transform_indices = @transform_3, window_bounds = array<i64: 2, 8, 256>}]} {
    %0 = tpu.iota {dimensions = array<i32: 1>} : vector<1x256xi32>
    %c16_i32 = arith.constant 16 : i32
    %c0_i32 = arith.constant 0 : i32
    %1 = arith.cmpi eq, %c16_i32, %c0_i32 : i32
    %c1_i32 = arith.constant 1 : i32
    %2 = arith.select %1, %c1_i32, %c16_i32 : i32
    %3 = vector.broadcast %2 : i32 to vector<1x256xi32>
    %4 = arith.remsi %0, %3 : vector<1x256xi32>
    %c0_i32_0 = arith.constant 0 : i32
    %5 = vector.broadcast %c0_i32_0 : i32 to vector<1x256xi32>
    %6 = arith.cmpi ne, %4, %5 : vector<1x256xi32>
    %c0_i32_1 = arith.constant 0 : i32
    %7 = vector.broadcast %c0_i32_1 : i32 to vector<1x256xi32>
    %8 = arith.cmpi slt, %4, %7 : vector<1x256xi32>
    %c0_i32_2 = arith.constant 0 : i32
    %9 = arith.cmpi slt, %2, %c0_i32_2 : i32
    %10 = vector.broadcast %9 : i1 to vector<1x256xi1>
    %11 = vector.broadcast %10 : vector<1x256xi1> to vector<1x256xi1>
    %12 = arith.xori %8, %11 : vector<1x256xi1>
    %13 = arith.andi %12, %6 : vector<1x256xi1>
    %14 = vector.broadcast %2 : i32 to vector<1x256xi32>
    %15 = arith.addi %4, %14 : vector<1x256xi32>
    %16 = arith.select %13, %15, %4 : vector<1x256xi1>, vector<1x256xi32>
    %c16_i32_3 = arith.constant 16 : i32
    %17 = vector.broadcast %c16_i32_3 : i32 to vector<1x256xi32>
    %18 = arith.cmpi sge, %0, %17 : vector<1x256xi32>
    %c1_i32_4 = arith.constant 1 : i32
    %19 = vector.broadcast %c1_i32_4 : i32 to vector<1x256xi32>
    %20 = arith.cmpi sge, %16, %19 : vector<1x256xi32>
    %21 = arith.andi %18, %20 : vector<1x256xi1>
    %c16_i32_5 = arith.constant 16 : i32
    %22 = vector.broadcast %c16_i32_5 : i32 to vector<1x256xi32>
    %23 = arith.cmpi sge, %0, %22 : vector<1x256xi32>
    %c16_i32_6 = arith.constant 16 : i32
    %24 = vector.broadcast %c16_i32_6 : i32 to vector<1x256xi32>
    %25 = arith.cmpi sge, %0, %24 : vector<1x256xi32>
    %c14_i32 = arith.constant 14 : i32
    %26 = vector.broadcast %c14_i32 : i32 to vector<1x256xi32>
    %27 = arith.cmpi sle, %16, %26 : vector<1x256xi32>
    %28 = arith.andi %25, %27 : vector<1x256xi1>
    %c1_i32_7 = arith.constant 1 : i32
    %29 = vector.broadcast %c1_i32_7 : i32 to vector<1x256xi32>
    %30 = arith.cmpi sge, %16, %29 : vector<1x256xi32>
    %c14_i32_8 = arith.constant 14 : i32
    %31 = vector.broadcast %c14_i32_8 : i32 to vector<1x256xi32>
    %32 = arith.cmpi sle, %16, %31 : vector<1x256xi32>
    %c240_i32 = arith.constant 240 : i32
    %33 = vector.broadcast %c240_i32 : i32 to vector<1x256xi32>
    %34 = arith.cmpi slt, %0, %33 : vector<1x256xi32>
    %c1_i32_9 = arith.constant 1 : i32
    %35 = vector.broadcast %c1_i32_9 : i32 to vector<1x256xi32>
    %36 = arith.cmpi sge, %16, %35 : vector<1x256xi32>
    %37 = arith.andi %34, %36 : vector<1x256xi1>
    %c240_i32_10 = arith.constant 240 : i32
    %38 = vector.broadcast %c240_i32_10 : i32 to vector<1x256xi32>
    %39 = arith.cmpi slt, %0, %38 : vector<1x256xi32>
    %c240_i32_11 = arith.constant 240 : i32
    %40 = vector.broadcast %c240_i32_11 : i32 to vector<1x256xi32>
    %41 = arith.cmpi slt, %0, %40 : vector<1x256xi32>
    %c14_i32_12 = arith.constant 14 : i32
    %42 = vector.broadcast %c14_i32_12 : i32 to vector<1x256xi32>
    %43 = arith.cmpi sle, %16, %42 : vector<1x256xi32>
    %44 = arith.andi %41, %43 : vector<1x256xi1>
    %c0 = arith.constant 0 : index
    %c0_13 = arith.constant 0 : index
    %45 = vector.load %arg2[%c0, %c0_13] : memref<8x72xf32, #tpu.memory_space<vmem>>, vector<8x72xf32>
    %c0_14 = arith.constant 0 : index
    %c0_15 = arith.constant 0 : index
    %46 = vector.load %arg3[%c0_14, %c0_15] : memref<8x72xf32, #tpu.memory_space<vmem>>, vector<8x72xf32>
    %c0_16 = arith.constant 0 : index
    %c0_17 = arith.constant 0 : index
    %c0_18 = arith.constant 0 : index
    %47 = vector.load %arg1[%c0_16, %c0_17, %c0_18] : memref<2x8x256xf32, #tpu.memory_space<vmem>>, vector<1x8x256xf32>
    %48 = vector.shape_cast %47 : vector<1x8x256xf32> to vector<8x256xf32>
    %c17_i32 = arith.constant 17 : i32
    %49 = tpu.dynamic_rotate %48 by %c17_i32 dim 1 : vector<8x256xf32>, i32 -> vector<8x256xf32>
    %cst = arith.constant 0.000000e+00 : f32
    %50 = vector.shape_cast %21 : vector<1x256xi1> to vector<1x256xi1>
    %51 = vector.broadcast %50 : vector<1x256xi1> to vector<8x256xi1>
    %52 = vector.broadcast %cst : f32 to vector<8x256xf32>
    %53 = arith.select %51, %49, %52 : vector<8x256xi1>, vector<8x256xf32>
    %c16_i32_19 = arith.constant 16 : i32
    %54 = tpu.dynamic_rotate %48 by %c16_i32_19 dim 1 : vector<8x256xf32>, i32 -> vector<8x256xf32>
    %cst_20 = arith.constant 0.000000e+00 : f32
    %55 = vector.shape_cast %23 : vector<1x256xi1> to vector<1x256xi1>
    %56 = vector.broadcast %55 : vector<1x256xi1> to vector<8x256xi1>
    %57 = vector.broadcast %cst_20 : f32 to vector<8x256xf32>
    %58 = arith.select %56, %54, %57 : vector<8x256xi1>, vector<8x256xf32>
    %c15_i32 = arith.constant 15 : i32
    %59 = tpu.dynamic_rotate %48 by %c15_i32 dim 1 : vector<8x256xf32>, i32 -> vector<8x256xf32>
    %cst_21 = arith.constant 0.000000e+00 : f32
    %60 = vector.shape_cast %28 : vector<1x256xi1> to vector<1x256xi1>
    %61 = vector.broadcast %60 : vector<1x256xi1> to vector<8x256xi1>
    %62 = vector.broadcast %cst_21 : f32 to vector<8x256xf32>
    %63 = arith.select %61, %59, %62 : vector<8x256xi1>, vector<8x256xf32>
    %c1_i32_22 = arith.constant 1 : i32
    %64 = tpu.dynamic_rotate %48 by %c1_i32_22 dim 1 : vector<8x256xf32>, i32 -> vector<8x256xf32>
    %cst_23 = arith.constant 0.000000e+00 : f32
    %65 = vector.shape_cast %30 : vector<1x256xi1> to vector<1x256xi1>
    %66 = vector.broadcast %65 : vector<1x256xi1> to vector<8x256xi1>
    %67 = vector.broadcast %cst_23 : f32 to vector<8x256xf32>
    %68 = arith.select %66, %64, %67 : vector<8x256xi1>, vector<8x256xf32>
    %c255_i32 = arith.constant 255 : i32
    %69 = tpu.dynamic_rotate %48 by %c255_i32 dim 1 : vector<8x256xf32>, i32 -> vector<8x256xf32>
    %cst_24 = arith.constant 0.000000e+00 : f32
    %70 = vector.shape_cast %32 : vector<1x256xi1> to vector<1x256xi1>
    %71 = vector.broadcast %70 : vector<1x256xi1> to vector<8x256xi1>
    %72 = vector.broadcast %cst_24 : f32 to vector<8x256xf32>
    %73 = arith.select %71, %69, %72 : vector<8x256xi1>, vector<8x256xf32>
    %c241_i32 = arith.constant 241 : i32
    %74 = tpu.dynamic_rotate %48 by %c241_i32 dim 1 : vector<8x256xf32>, i32 -> vector<8x256xf32>
    %cst_25 = arith.constant 0.000000e+00 : f32
    %75 = vector.shape_cast %37 : vector<1x256xi1> to vector<1x256xi1>
    %76 = vector.broadcast %75 : vector<1x256xi1> to vector<8x256xi1>
    %77 = vector.broadcast %cst_25 : f32 to vector<8x256xf32>
    %78 = arith.select %76, %74, %77 : vector<8x256xi1>, vector<8x256xf32>
    %c240_i32_26 = arith.constant 240 : i32
    %79 = tpu.dynamic_rotate %48 by %c240_i32_26 dim 1 : vector<8x256xf32>, i32 -> vector<8x256xf32>
    %cst_27 = arith.constant 0.000000e+00 : f32
    %80 = vector.shape_cast %39 : vector<1x256xi1> to vector<1x256xi1>
    %81 = vector.broadcast %80 : vector<1x256xi1> to vector<8x256xi1>
    %82 = vector.broadcast %cst_27 : f32 to vector<8x256xf32>
    %83 = arith.select %81, %79, %82 : vector<8x256xi1>, vector<8x256xf32>
    %c239_i32 = arith.constant 239 : i32
    %84 = tpu.dynamic_rotate %48 by %c239_i32 dim 1 : vector<8x256xf32>, i32 -> vector<8x256xf32>
    %cst_28 = arith.constant 0.000000e+00 : f32
    %85 = vector.shape_cast %44 : vector<1x256xi1> to vector<1x256xi1>
    %86 = vector.broadcast %85 : vector<1x256xi1> to vector<8x256xi1>
    %87 = vector.broadcast %cst_28 : f32 to vector<8x256xf32>
    %88 = arith.select %86, %84, %87 : vector<8x256xi1>, vector<8x256xf32>
    %89 = tpu.concatenate %53, %58, %63, %68, %48, %73, %78, %83, %88 in 0 : vector<8x256xf32>, vector<8x256xf32>, vector<8x256xf32>, vector<8x256xf32>, vector<8x256xf32>, vector<8x256xf32>, vector<8x256xf32>, vector<8x256xf32>, vector<8x256xf32> -> vector<72x256xf32>
    %cst_29 = arith.constant dense<0.000000e+00> : vector<8x256xf32>
    %90 = tpu.matmul %45, %89, %cst_29 {dimension_numbers = #tpu.dot_dimension_numbers<[1], [0], [0], [1], [0, 0, 1, 1], [], []>, precision = #tpu.contract_precision<fp32>} : vector<8x72xf32>, vector<72x256xf32>, vector<8x256xf32> -> vector<8x256xf32>
    %cst_30 = arith.constant dense<0.000000e+00> : vector<8xf32>
    %91 = vector.multi_reduction <add>, %90, %cst_30 [1] : vector<8x256xf32> to vector<8xf32>
    %92 = vector.shape_cast %91 : vector<8xf32> to vector<8x1xf32>
    %cst_31 = arith.constant 2.560000e+02 : f32
    %93 = vector.broadcast %cst_31 : f32 to vector<8x1xf32>
    %94 = arith.divf %92, %93 : vector<8x1xf32>
    %95 = vector.broadcast %94 : vector<8x1xf32> to vector<8x256xf32>
    %96 = arith.subf %90, %95 : vector<8x256xf32>
    %97 = arith.mulf %96, %96 : vector<8x256xf32>
    %cst_32 = arith.constant dense<0.000000e+00> : vector<8xf32>
    %98 = vector.multi_reduction <add>, %97, %cst_32 [1] : vector<8x256xf32> to vector<8xf32>
    %99 = vector.shape_cast %98 : vector<8xf32> to vector<8x1xf32>
    %cst_33 = arith.constant 2.560000e+02 : f32
    %100 = vector.broadcast %cst_33 : f32 to vector<8x1xf32>
    %101 = arith.divf %99, %100 : vector<8x1xf32>
    %cst_34 = arith.constant 9.99999974E-6 : f32
    %102 = vector.broadcast %cst_34 : f32 to vector<8x1xf32>
    %103 = arith.addf %101, %102 : vector<8x1xf32>
    %104 = math.rsqrt %103 : vector<8x1xf32>
    %105 = vector.broadcast %104 : vector<8x1xf32> to vector<8x256xf32>
    %106 = arith.mulf %96, %105 : vector<8x256xf32>
    %cst_35 = arith.constant 0.000000e+00 : f32
    %107 = vector.broadcast %cst_35 : f32 to vector<8x256xf32>
    %108 = arith.maximumf %106, %107 : vector<8x256xf32>
    %c17_i32_36 = arith.constant 17 : i32
    %109 = tpu.dynamic_rotate %108 by %c17_i32_36 dim 1 : vector<8x256xf32>, i32 -> vector<8x256xf32>
    %cst_37 = arith.constant 0.000000e+00 : f32
    %110 = vector.shape_cast %21 : vector<1x256xi1> to vector<1x256xi1>
    %111 = vector.broadcast %110 : vector<1x256xi1> to vector<8x256xi1>
    %112 = vector.broadcast %cst_37 : f32 to vector<8x256xf32>
    %113 = arith.select %111, %109, %112 : vector<8x256xi1>, vector<8x256xf32>
    %c16_i32_38 = arith.constant 16 : i32
    %114 = tpu.dynamic_rotate %108 by %c16_i32_38 dim 1 : vector<8x256xf32>, i32 -> vector<8x256xf32>
    %cst_39 = arith.constant 0.000000e+00 : f32
    %115 = vector.shape_cast %23 : vector<1x256xi1> to vector<1x256xi1>
    %116 = vector.broadcast %115 : vector<1x256xi1> to vector<8x256xi1>
    %117 = vector.broadcast %cst_39 : f32 to vector<8x256xf32>
    %118 = arith.select %116, %114, %117 : vector<8x256xi1>, vector<8x256xf32>
    %c15_i32_40 = arith.constant 15 : i32
    %119 = tpu.dynamic_rotate %108 by %c15_i32_40 dim 1 : vector<8x256xf32>, i32 -> vector<8x256xf32>
    %cst_41 = arith.constant 0.000000e+00 : f32
    %120 = vector.shape_cast %28 : vector<1x256xi1> to vector<1x256xi1>
    %121 = vector.broadcast %120 : vector<1x256xi1> to vector<8x256xi1>
    %122 = vector.broadcast %cst_41 : f32 to vector<8x256xf32>
    %123 = arith.select %121, %119, %122 : vector<8x256xi1>, vector<8x256xf32>
    %c1_i32_42 = arith.constant 1 : i32
    %124 = tpu.dynamic_rotate %108 by %c1_i32_42 dim 1 : vector<8x256xf32>, i32 -> vector<8x256xf32>
    %cst_43 = arith.constant 0.000000e+00 : f32
    %125 = vector.shape_cast %30 : vector<1x256xi1> to vector<1x256xi1>
    %126 = vector.broadcast %125 : vector<1x256xi1> to vector<8x256xi1>
    %127 = vector.broadcast %cst_43 : f32 to vector<8x256xf32>
    %128 = arith.select %126, %124, %127 : vector<8x256xi1>, vector<8x256xf32>
    %c255_i32_44 = arith.constant 255 : i32
    %129 = tpu.dynamic_rotate %108 by %c255_i32_44 dim 1 : vector<8x256xf32>, i32 -> vector<8x256xf32>
    %cst_45 = arith.constant 0.000000e+00 : f32
    %130 = vector.shape_cast %32 : vector<1x256xi1> to vector<1x256xi1>
    %131 = vector.broadcast %130 : vector<1x256xi1> to vector<8x256xi1>
    %132 = vector.broadcast %cst_45 : f32 to vector<8x256xf32>
    %133 = arith.select %131, %129, %132 : vector<8x256xi1>, vector<8x256xf32>
    %c241_i32_46 = arith.constant 241 : i32
    %134 = tpu.dynamic_rotate %108 by %c241_i32_46 dim 1 : vector<8x256xf32>, i32 -> vector<8x256xf32>
    %cst_47 = arith.constant 0.000000e+00 : f32
    %135 = vector.shape_cast %37 : vector<1x256xi1> to vector<1x256xi1>
    %136 = vector.broadcast %135 : vector<1x256xi1> to vector<8x256xi1>
    %137 = vector.broadcast %cst_47 : f32 to vector<8x256xf32>
    %138 = arith.select %136, %134, %137 : vector<8x256xi1>, vector<8x256xf32>
    %c240_i32_48 = arith.constant 240 : i32
    %139 = tpu.dynamic_rotate %108 by %c240_i32_48 dim 1 : vector<8x256xf32>, i32 -> vector<8x256xf32>
    %cst_49 = arith.constant 0.000000e+00 : f32
    %140 = vector.shape_cast %39 : vector<1x256xi1> to vector<1x256xi1>
    %141 = vector.broadcast %140 : vector<1x256xi1> to vector<8x256xi1>
    %142 = vector.broadcast %cst_49 : f32 to vector<8x256xf32>
    %143 = arith.select %141, %139, %142 : vector<8x256xi1>, vector<8x256xf32>
    %c239_i32_50 = arith.constant 239 : i32
    %144 = tpu.dynamic_rotate %108 by %c239_i32_50 dim 1 : vector<8x256xf32>, i32 -> vector<8x256xf32>
    %cst_51 = arith.constant 0.000000e+00 : f32
    %145 = vector.shape_cast %44 : vector<1x256xi1> to vector<1x256xi1>
    %146 = vector.broadcast %145 : vector<1x256xi1> to vector<8x256xi1>
    %147 = vector.broadcast %cst_51 : f32 to vector<8x256xf32>
    %148 = arith.select %146, %144, %147 : vector<8x256xi1>, vector<8x256xf32>
    %149 = tpu.concatenate %113, %118, %123, %128, %108, %133, %138, %143, %148 in 0 : vector<8x256xf32>, vector<8x256xf32>, vector<8x256xf32>, vector<8x256xf32>, vector<8x256xf32>, vector<8x256xf32>, vector<8x256xf32>, vector<8x256xf32>, vector<8x256xf32> -> vector<72x256xf32>
    %cst_52 = arith.constant dense<0.000000e+00> : vector<8x256xf32>
    %150 = tpu.matmul %46, %149, %cst_52 {dimension_numbers = #tpu.dot_dimension_numbers<[1], [0], [0], [1], [0, 0, 1, 1], [], []>, precision = #tpu.contract_precision<fp32>} : vector<8x72xf32>, vector<72x256xf32>, vector<8x256xf32> -> vector<8x256xf32>
    %cst_53 = arith.constant dense<0.000000e+00> : vector<8xf32>
    %151 = vector.multi_reduction <add>, %150, %cst_53 [1] : vector<8x256xf32> to vector<8xf32>
    %152 = vector.shape_cast %151 : vector<8xf32> to vector<8x1xf32>
    %cst_54 = arith.constant 2.560000e+02 : f32
    %153 = vector.broadcast %cst_54 : f32 to vector<8x1xf32>
    %154 = arith.divf %152, %153 : vector<8x1xf32>
    %155 = vector.broadcast %154 : vector<8x1xf32> to vector<8x256xf32>
    %156 = arith.subf %150, %155 : vector<8x256xf32>
    %157 = arith.mulf %156, %156 : vector<8x256xf32>
    %cst_55 = arith.constant dense<0.000000e+00> : vector<8xf32>
    %158 = vector.multi_reduction <add>, %157, %cst_55 [1] : vector<8x256xf32> to vector<8xf32>
    %159 = vector.shape_cast %158 : vector<8xf32> to vector<8x1xf32>
    %cst_56 = arith.constant 2.560000e+02 : f32
    %160 = vector.broadcast %cst_56 : f32 to vector<8x1xf32>
    %161 = arith.divf %159, %160 : vector<8x1xf32>
    %cst_57 = arith.constant 9.99999974E-6 : f32
    %162 = vector.broadcast %cst_57 : f32 to vector<8x1xf32>
    %163 = arith.addf %161, %162 : vector<8x1xf32>
    %164 = math.rsqrt %163 : vector<8x1xf32>
    %165 = vector.broadcast %164 : vector<8x1xf32> to vector<8x256xf32>
    %166 = arith.mulf %156, %165 : vector<8x256xf32>
    %cst_58 = arith.constant 0.000000e+00 : f32
    %167 = vector.broadcast %cst_58 : f32 to vector<8x256xf32>
    %168 = arith.maximumf %166, %167 : vector<8x256xf32>
    %c0_59 = arith.constant 0 : index
    %c0_60 = arith.constant 0 : index
    %c0_61 = arith.constant 0 : index
    %169 = vector.load %arg4[%c0_59, %c0_60, %c0_61] : memref<2x8x256xf32, #tpu.memory_space<vmem>>, vector<1x8x256xf32>
    %170 = vector.shape_cast %169 : vector<1x8x256xf32> to vector<8x256xf32>
    %171 = vector.shape_cast %168 : vector<8x256xf32> to vector<1x8x256xf32>
    tpu.vector_store %arg4[%c0_59, %c0_60, %c0_61], %171 {strides = array<i32>} : memref<2x8x256xf32, #tpu.memory_space<vmem>>, vector<1x8x256xf32>,
    %c1 = arith.constant 1 : index
    %c0_62 = arith.constant 0 : index
    %c0_63 = arith.constant 0 : index
    %172 = vector.load %arg1[%c1, %c0_62, %c0_63] : memref<2x8x256xf32, #tpu.memory_space<vmem>>, vector<1x8x256xf32>
    %173 = vector.shape_cast %172 : vector<1x8x256xf32> to vector<8x256xf32>
    %c17_i32_64 = arith.constant 17 : i32
    %174 = tpu.dynamic_rotate %173 by %c17_i32_64 dim 1 : vector<8x256xf32>, i32 -> vector<8x256xf32>
    %cst_65 = arith.constant 0.000000e+00 : f32
    %175 = vector.shape_cast %21 : vector<1x256xi1> to vector<1x256xi1>
    %176 = vector.broadcast %175 : vector<1x256xi1> to vector<8x256xi1>
    %177 = vector.broadcast %cst_65 : f32 to vector<8x256xf32>
    %178 = arith.select %176, %174, %177 : vector<8x256xi1>, vector<8x256xf32>
    %c16_i32_66 = arith.constant 16 : i32
    %179 = tpu.dynamic_rotate %173 by %c16_i32_66 dim 1 : vector<8x256xf32>, i32 -> vector<8x256xf32>
    %cst_67 = arith.constant 0.000000e+00 : f32
    %180 = vector.shape_cast %23 : vector<1x256xi1> to vector<1x256xi1>
    %181 = vector.broadcast %180 : vector<1x256xi1> to vector<8x256xi1>
    %182 = vector.broadcast %cst_67 : f32 to vector<8x256xf32>
    %183 = arith.select %181, %179, %182 : vector<8x256xi1>, vector<8x256xf32>
    %c15_i32_68 = arith.constant 15 : i32
    %184 = tpu.dynamic_rotate %173 by %c15_i32_68 dim 1 : vector<8x256xf32>, i32 -> vector<8x256xf32>
    %cst_69 = arith.constant 0.000000e+00 : f32
    %185 = vector.shape_cast %28 : vector<1x256xi1> to vector<1x256xi1>
    %186 = vector.broadcast %185 : vector<1x256xi1> to vector<8x256xi1>
    %187 = vector.broadcast %cst_69 : f32 to vector<8x256xf32>
    %188 = arith.select %186, %184, %187 : vector<8x256xi1>, vector<8x256xf32>
    %c1_i32_70 = arith.constant 1 : i32
    %189 = tpu.dynamic_rotate %173 by %c1_i32_70 dim 1 : vector<8x256xf32>, i32 -> vector<8x256xf32>
    %cst_71 = arith.constant 0.000000e+00 : f32
    %190 = vector.shape_cast %30 : vector<1x256xi1> to vector<1x256xi1>
    %191 = vector.broadcast %190 : vector<1x256xi1> to vector<8x256xi1>
    %192 = vector.broadcast %cst_71 : f32 to vector<8x256xf32>
    %193 = arith.select %191, %189, %192 : vector<8x256xi1>, vector<8x256xf32>
    %c255_i32_72 = arith.constant 255 : i32
    %194 = tpu.dynamic_rotate %173 by %c255_i32_72 dim 1 : vector<8x256xf32>, i32 -> vector<8x256xf32>
    %cst_73 = arith.constant 0.000000e+00 : f32
    %195 = vector.shape_cast %32 : vector<1x256xi1> to vector<1x256xi1>
    %196 = vector.broadcast %195 : vector<1x256xi1> to vector<8x256xi1>
    %197 = vector.broadcast %cst_73 : f32 to vector<8x256xf32>
    %198 = arith.select %196, %194, %197 : vector<8x256xi1>, vector<8x256xf32>
    %c241_i32_74 = arith.constant 241 : i32
    %199 = tpu.dynamic_rotate %173 by %c241_i32_74 dim 1 : vector<8x256xf32>, i32 -> vector<8x256xf32>
    %cst_75 = arith.constant 0.000000e+00 : f32
    %200 = vector.shape_cast %37 : vector<1x256xi1> to vector<1x256xi1>
    %201 = vector.broadcast %200 : vector<1x256xi1> to vector<8x256xi1>
    %202 = vector.broadcast %cst_75 : f32 to vector<8x256xf32>
    %203 = arith.select %201, %199, %202 : vector<8x256xi1>, vector<8x256xf32>
    %c240_i32_76 = arith.constant 240 : i32
    %204 = tpu.dynamic_rotate %173 by %c240_i32_76 dim 1 : vector<8x256xf32>, i32 -> vector<8x256xf32>
    %cst_77 = arith.constant 0.000000e+00 : f32
    %205 = vector.shape_cast %39 : vector<1x256xi1> to vector<1x256xi1>
    %206 = vector.broadcast %205 : vector<1x256xi1> to vector<8x256xi1>
    %207 = vector.broadcast %cst_77 : f32 to vector<8x256xf32>
    %208 = arith.select %206, %204, %207 : vector<8x256xi1>, vector<8x256xf32>
    %c239_i32_78 = arith.constant 239 : i32
    %209 = tpu.dynamic_rotate %173 by %c239_i32_78 dim 1 : vector<8x256xf32>, i32 -> vector<8x256xf32>
    %cst_79 = arith.constant 0.000000e+00 : f32
    %210 = vector.shape_cast %44 : vector<1x256xi1> to vector<1x256xi1>
    %211 = vector.broadcast %210 : vector<1x256xi1> to vector<8x256xi1>
    %212 = vector.broadcast %cst_79 : f32 to vector<8x256xf32>
    %213 = arith.select %211, %209, %212 : vector<8x256xi1>, vector<8x256xf32>
    %214 = tpu.concatenate %178, %183, %188, %193, %173, %198, %203, %208, %213 in 0 : vector<8x256xf32>, vector<8x256xf32>, vector<8x256xf32>, vector<8x256xf32>, vector<8x256xf32>, vector<8x256xf32>, vector<8x256xf32>, vector<8x256xf32>, vector<8x256xf32> -> vector<72x256xf32>
    %cst_80 = arith.constant dense<0.000000e+00> : vector<8x256xf32>
    %215 = tpu.matmul %45, %214, %cst_80 {dimension_numbers = #tpu.dot_dimension_numbers<[1], [0], [0], [1], [0, 0, 1, 1], [], []>, precision = #tpu.contract_precision<fp32>} : vector<8x72xf32>, vector<72x256xf32>, vector<8x256xf32> -> vector<8x256xf32>
    %cst_81 = arith.constant dense<0.000000e+00> : vector<8xf32>
    %216 = vector.multi_reduction <add>, %215, %cst_81 [1] : vector<8x256xf32> to vector<8xf32>
    %217 = vector.shape_cast %216 : vector<8xf32> to vector<8x1xf32>
    %cst_82 = arith.constant 2.560000e+02 : f32
    %218 = vector.broadcast %cst_82 : f32 to vector<8x1xf32>
    %219 = arith.divf %217, %218 : vector<8x1xf32>
    %220 = vector.broadcast %219 : vector<8x1xf32> to vector<8x256xf32>
    %221 = arith.subf %215, %220 : vector<8x256xf32>
    %222 = arith.mulf %221, %221 : vector<8x256xf32>
    %cst_83 = arith.constant dense<0.000000e+00> : vector<8xf32>
    %223 = vector.multi_reduction <add>, %222, %cst_83 [1] : vector<8x256xf32> to vector<8xf32>
    %224 = vector.shape_cast %223 : vector<8xf32> to vector<8x1xf32>
    %cst_84 = arith.constant 2.560000e+02 : f32
    %225 = vector.broadcast %cst_84 : f32 to vector<8x1xf32>
    %226 = arith.divf %224, %225 : vector<8x1xf32>
    %cst_85 = arith.constant 9.99999974E-6 : f32
    %227 = vector.broadcast %cst_85 : f32 to vector<8x1xf32>
    %228 = arith.addf %226, %227 : vector<8x1xf32>
    %229 = math.rsqrt %228 : vector<8x1xf32>
    %230 = vector.broadcast %229 : vector<8x1xf32> to vector<8x256xf32>
    %231 = arith.mulf %221, %230 : vector<8x256xf32>
    %cst_86 = arith.constant 0.000000e+00 : f32
    %232 = vector.broadcast %cst_86 : f32 to vector<8x256xf32>
    %233 = arith.maximumf %231, %232 : vector<8x256xf32>
    %c17_i32_87 = arith.constant 17 : i32
    %234 = tpu.dynamic_rotate %233 by %c17_i32_87 dim 1 : vector<8x256xf32>, i32 -> vector<8x256xf32>
    %cst_88 = arith.constant 0.000000e+00 : f32
    %235 = vector.shape_cast %21 : vector<1x256xi1> to vector<1x256xi1>
    %236 = vector.broadcast %235 : vector<1x256xi1> to vector<8x256xi1>
    %237 = vector.broadcast %cst_88 : f32 to vector<8x256xf32>
    %238 = arith.select %236, %234, %237 : vector<8x256xi1>, vector<8x256xf32>
    %c16_i32_89 = arith.constant 16 : i32
    %239 = tpu.dynamic_rotate %233 by %c16_i32_89 dim 1 : vector<8x256xf32>, i32 -> vector<8x256xf32>
    %cst_90 = arith.constant 0.000000e+00 : f32
    %240 = vector.shape_cast %23 : vector<1x256xi1> to vector<1x256xi1>
    %241 = vector.broadcast %240 : vector<1x256xi1> to vector<8x256xi1>
    %242 = vector.broadcast %cst_90 : f32 to vector<8x256xf32>
    %243 = arith.select %241, %239, %242 : vector<8x256xi1>, vector<8x256xf32>
    %c15_i32_91 = arith.constant 15 : i32
    %244 = tpu.dynamic_rotate %233 by %c15_i32_91 dim 1 : vector<8x256xf32>, i32 -> vector<8x256xf32>
    %cst_92 = arith.constant 0.000000e+00 : f32
    %245 = vector.shape_cast %28 : vector<1x256xi1> to vector<1x256xi1>
    %246 = vector.broadcast %245 : vector<1x256xi1> to vector<8x256xi1>
    %247 = vector.broadcast %cst_92 : f32 to vector<8x256xf32>
    %248 = arith.select %246, %244, %247 : vector<8x256xi1>, vector<8x256xf32>
    %c1_i32_93 = arith.constant 1 : i32
    %249 = tpu.dynamic_rotate %233 by %c1_i32_93 dim 1 : vector<8x256xf32>, i32 -> vector<8x256xf32>
    %cst_94 = arith.constant 0.000000e+00 : f32
    %250 = vector.shape_cast %30 : vector<1x256xi1> to vector<1x256xi1>
    %251 = vector.broadcast %250 : vector<1x256xi1> to vector<8x256xi1>
    %252 = vector.broadcast %cst_94 : f32 to vector<8x256xf32>
    %253 = arith.select %251, %249, %252 : vector<8x256xi1>, vector<8x256xf32>
    %c255_i32_95 = arith.constant 255 : i32
    %254 = tpu.dynamic_rotate %233 by %c255_i32_95 dim 1 : vector<8x256xf32>, i32 -> vector<8x256xf32>
    %cst_96 = arith.constant 0.000000e+00 : f32
    %255 = vector.shape_cast %32 : vector<1x256xi1> to vector<1x256xi1>
    %256 = vector.broadcast %255 : vector<1x256xi1> to vector<8x256xi1>
    %257 = vector.broadcast %cst_96 : f32 to vector<8x256xf32>
    %258 = arith.select %256, %254, %257 : vector<8x256xi1>, vector<8x256xf32>
    %c241_i32_97 = arith.constant 241 : i32
    %259 = tpu.dynamic_rotate %233 by %c241_i32_97 dim 1 : vector<8x256xf32>, i32 -> vector<8x256xf32>
    %cst_98 = arith.constant 0.000000e+00 : f32
    %260 = vector.shape_cast %37 : vector<1x256xi1> to vector<1x256xi1>
    %261 = vector.broadcast %260 : vector<1x256xi1> to vector<8x256xi1>
    %262 = vector.broadcast %cst_98 : f32 to vector<8x256xf32>
    %263 = arith.select %261, %259, %262 : vector<8x256xi1>, vector<8x256xf32>
    %c240_i32_99 = arith.constant 240 : i32
    %264 = tpu.dynamic_rotate %233 by %c240_i32_99 dim 1 : vector<8x256xf32>, i32 -> vector<8x256xf32>
    %cst_100 = arith.constant 0.000000e+00 : f32
    %265 = vector.shape_cast %39 : vector<1x256xi1> to vector<1x256xi1>
    %266 = vector.broadcast %265 : vector<1x256xi1> to vector<8x256xi1>
    %267 = vector.broadcast %cst_100 : f32 to vector<8x256xf32>
    %268 = arith.select %266, %264, %267 : vector<8x256xi1>, vector<8x256xf32>
    %c239_i32_101 = arith.constant 239 : i32
    %269 = tpu.dynamic_rotate %233 by %c239_i32_101 dim 1 : vector<8x256xf32>, i32 -> vector<8x256xf32>
    %cst_102 = arith.constant 0.000000e+00 : f32
    %270 = vector.shape_cast %44 : vector<1x256xi1> to vector<1x256xi1>
    %271 = vector.broadcast %270 : vector<1x256xi1> to vector<8x256xi1>
    %272 = vector.broadcast %cst_102 : f32 to vector<8x256xf32>
    %273 = arith.select %271, %269, %272 : vector<8x256xi1>, vector<8x256xf32>
    %274 = tpu.concatenate %238, %243, %248, %253, %233, %258, %263, %268, %273 in 0 : vector<8x256xf32>, vector<8x256xf32>, vector<8x256xf32>, vector<8x256xf32>, vector<8x256xf32>, vector<8x256xf32>, vector<8x256xf32>, vector<8x256xf32>, vector<8x256xf32> -> vector<72x256xf32>
    %cst_103 = arith.constant dense<0.000000e+00> : vector<8x256xf32>
    %275 = tpu.matmul %46, %274, %cst_103 {dimension_numbers = #tpu.dot_dimension_numbers<[1], [0], [0], [1], [0, 0, 1, 1], [], []>, precision = #tpu.contract_precision<fp32>} : vector<8x72xf32>, vector<72x256xf32>, vector<8x256xf32> -> vector<8x256xf32>
    %cst_104 = arith.constant dense<0.000000e+00> : vector<8xf32>
    %276 = vector.multi_reduction <add>, %275, %cst_104 [1] : vector<8x256xf32> to vector<8xf32>
    %277 = vector.shape_cast %276 : vector<8xf32> to vector<8x1xf32>
    %cst_105 = arith.constant 2.560000e+02 : f32
    %278 = vector.broadcast %cst_105 : f32 to vector<8x1xf32>
    %279 = arith.divf %277, %278 : vector<8x1xf32>
    %280 = vector.broadcast %279 : vector<8x1xf32> to vector<8x256xf32>
    %281 = arith.subf %275, %280 : vector<8x256xf32>
    %282 = arith.mulf %281, %281 : vector<8x256xf32>
    %cst_106 = arith.constant dense<0.000000e+00> : vector<8xf32>
    %283 = vector.multi_reduction <add>, %282, %cst_106 [1] : vector<8x256xf32> to vector<8xf32>
    %284 = vector.shape_cast %283 : vector<8xf32> to vector<8x1xf32>
    %cst_107 = arith.constant 2.560000e+02 : f32
    %285 = vector.broadcast %cst_107 : f32 to vector<8x1xf32>
    %286 = arith.divf %284, %285 : vector<8x1xf32>
    %cst_108 = arith.constant 9.99999974E-6 : f32
    %287 = vector.broadcast %cst_108 : f32 to vector<8x1xf32>
    %288 = arith.addf %286, %287 : vector<8x1xf32>
    %289 = math.rsqrt %288 : vector<8x1xf32>
    %290 = vector.broadcast %289 : vector<8x1xf32> to vector<8x256xf32>
    %291 = arith.mulf %281, %290 : vector<8x256xf32>
    %cst_109 = arith.constant 0.000000e+00 : f32
    %292 = vector.broadcast %cst_109 : f32 to vector<8x256xf32>
    %293 = arith.maximumf %291, %292 : vector<8x256xf32>
    %c1_110 = arith.constant 1 : index
    %c0_111 = arith.constant 0 : index
    %c0_112 = arith.constant 0 : index
    %294 = vector.load %arg4[%c1_110, %c0_111, %c0_112] : memref<2x8x256xf32, #tpu.memory_space<vmem>>, vector<1x8x256xf32>
    %295 = vector.shape_cast %294 : vector<1x8x256xf32> to vector<8x256xf32>
    %296 = vector.shape_cast %293 : vector<8x256xf32> to vector<1x8x256xf32>
    tpu.vector_store %arg4[%c1_110, %c0_111, %c0_112], %296 {strides = array<i32>} : memref<2x8x256xf32, #tpu.memory_space<vmem>>, vector<1x8x256xf32>,
    return
  }
  func.func @transform_0(%arg0: i32) -> (i32, i32, i32) {
    %c0_i32 = arith.constant 0 : i32
    %c0_i32_0 = arith.constant 0 : i32
    %c0_i32_1 = arith.constant 0 : i32
    return %arg0, %c0_i32, %c0_i32_0 : i32, i32, i32
  }
  func.func @transform_1(%arg0: i32) -> (i32, i32) {
    %c0_i32 = arith.constant 0 : i32
    %c0_i32_0 = arith.constant 0 : i32
    %c0_i32_1 = arith.constant 0 : i32
    return %c0_i32, %c0_i32_0 : i32, i32
  }
  func.func @transform_2(%arg0: i32) -> (i32, i32) {
    %c0_i32 = arith.constant 0 : i32
    %c0_i32_0 = arith.constant 0 : i32
    %c0_i32_1 = arith.constant 0 : i32
    return %c0_i32, %c0_i32_0 : i32, i32
  }
  func.func @transform_3(%arg0: i32) -> (i32, i32, i32) {
    %c0_i32 = arith.constant 0 : i32
    %c0_i32_0 = arith.constant 0 : i32
    %c0_i32_1 = arith.constant 0 : i32
    return %arg0, %c0_i32, %c0_i32_0 : i32, i32, i32
  }
}

</mosaic_0001>

<llo_original>
// kernel: tpu_custom_call.1
$region0: #{tpu_custom_call.1}
  #allocation0 [shape = 'u32[]', space=smem, size = 0x4, offset = 0x4, fixed_abs, tag = 'smem constant byte address 0x4 - core index']
  #allocation1 [shape = 'u32[144,128]{1,0:T(1,128)}', space=vmem, size = 0x12000, scoped, tag = 'internal scratch']
  %s0 = inlined_call_operand.hbm [shape: f32[2,8,256], index: 0, kind: input, shape index: {}]
  %s1 = inlined_call_operand.hbm [shape: f32[8,72], index: 1, kind: input, shape index: {}]
  %s2 = inlined_call_operand.hbm [shape: f32[8,72], index: 2, kind: input, shape index: {}]
  %s3 = inlined_call_operand.hbm [shape: f32[2,8,256], index: 3, kind: output, shape index: {}]
  %s4 = sld [smem:[#allocation0]]
  $region34: #{tpu_custom_call.1} parent=0
    _
  %s6 = ssub.s32 1, %s4
  %s7 = scalar_select 0, %s6, %s4
  $region1: #{tpu_custom_call.1} parent=0
    #allocation2 [shape = 'u8[16384]{0}', space=vmem, size = 0x4000, scoped, tag = 'input window, operand 0, single buffered']
    #allocation3 [shape = 's32[1]{0}', space=sflag, size = 0x4, scoped, tag = 'scoped memory for tpu_custom_call.1']
    #allocation4 [shape = 's32[1]{0}', space=sflag, size = 0x4, scoped, tag = 'scoped memory for tpu_custom_call.1']
    #allocation5 [shape = 'u8[4096]{0}', space=vmem, size = 0x1000, scoped, tag = 'input window, operand 1, single buffered']
    #allocation6 [shape = 's32[1]{0}', space=sflag, size = 0x4, scoped, tag = 'scoped memory for tpu_custom_call.1']
    #allocation7 [shape = 'u8[4096]{0}', space=vmem, size = 0x1000, scoped, tag = 'input window, operand 2, single buffered']
    #allocation8 [shape = 'u8[16384]{0}', space=vmem, size = 0x4000, scoped, tag = 'output window, operand 0, single buffered']
    %8 = vsyncpa [#allocation3], 0
    %9 = vsyncpa [#allocation6], 0
    %10 = vsyncpa [#allocation4], 0
    // Predicated region
    $region2: #{tpu_custom_call.1} parent=1 // pred_check
      _
    $region3: #{tpu_custom_call.1} parent=1 // pred_check_branch
      %12 = sbr.rel (0) target = $region5
    $region4: #{tpu_custom_call.1} parent=1 // pred_region
      %s14 = ssub.s32 512, 512
      %15 = vsyncadd [#allocation3], %s14
      %s16 = sshll.u32 [#allocation2], 4
      %s17 = int_to_ptr.vmem [resolvable:$true] %s16
      %22 = dma.hbm_to_vmem [thread:$0]  %s0, 512, %s17, [#allocation3], 256, 256, 16
    $region5: #{tpu_custom_call.1} parent=1 // pred_fallthru
      _
    // Predicated region
    $region6: #{tpu_custom_call.1} parent=1 // pred_check
      _
    $region7: #{tpu_custom_call.1} parent=1 // pred_check_branch
      %24 = sbr.rel (0) target = $region9
    $region8: #{tpu_custom_call.1} parent=1 // pred_region
      %s26 = ssub.s32 128, 128
      %27 = vsyncadd [#allocation6], %s26
      %s29 = sshll.u32 [#allocation5], 4
      %s30 = int_to_ptr.vmem [resolvable:$true] %s29
      %32 = dma.hbm_to_vmem [thread:$0]  %s1, 128, %s30, [#allocation6]
    $region9: #{tpu_custom_call.1} parent=1 // pred_fallthru
      _
    // Predicated region
    $region10: #{tpu_custom_call.1} parent=1 // pred_check
      _
    $region11: #{tpu_custom_call.1} parent=1 // pred_check_branch
      %34 = sbr.rel (0) target = $region13
    $region12: #{tpu_custom_call.1} parent=1 // pred_region
      %s36 = ssub.s32 128, 128
      %37 = vsyncadd [#allocation6], %s36
      %s39 = sshll.u32 [#allocation7], 4
      %s40 = int_to_ptr.vmem [resolvable:$true] %s39
      %42 = dma.hbm_to_vmem [thread:$0]  %s2, 128, %s40, [#allocation6]
    $region13: #{tpu_custom_call.1} parent=1 // pred_fallthru
      _
    // Predicated region
    $region14: #{tpu_custom_call.1} parent=1 // pred_check
      _
    $region15: #{tpu_custom_call.1} parent=1 // pred_check_branch
      %44 = sbr.rel (0) target = $region17
    $region16: #{tpu_custom_call.1} parent=1 // pred_region
      %45 = dma.done [#allocation3], 512
    $region17: #{tpu_custom_call.1} parent=1 // pred_fallthru
      _
    // Predicated region
    $region18: #{tpu_custom_call.1} parent=1 // pred_check
      _
    $region19: #{tpu_custom_call.1} parent=1 // pred_check_branch
      %47 = sbr.rel (0) target = $region21
    $region20: #{tpu_custom_call.1} parent=1 // pred_region
      %48 = dma.done [#allocation6], 128
    $region21: #{tpu_custom_call.1} parent=1 // pred_fallthru
      _
    // Predicated region
    $region22: #{tpu_custom_call.1} parent=1 // pred_check
      _
    $region23: #{tpu_custom_call.1} parent=1 // pred_check_branch
      %50 = sbr.rel (0) target = $region25
    $region24: #{tpu_custom_call.1} parent=1 // pred_region
      %51 = dma.done [#allocation6], 128
    $region25: #{tpu_custom_call.1} parent=1 // pred_fallthru
      _
    %v52 = vlaneseq
    %v53 = vand.u32 %v52, 127
    %v54 = vadd.s32 %v53, 128
    %vm55 = vcmp.lt.s32.totalorder %v53, 0
    %v56 = vsub.s32 0, %v53
    %v57 = vsel %vm55, %v56, %v53
    %v58 = vshrl.u32 %v57, 4
    %v59 = vand.u32 %v57, 15
    %v60 = vsub.s32 0, %v59
    %v61 = vsel %vm55, %v60, %v59
    %vm62 = vcmp.lt.s32.totalorder %v54, 0
    %v63 = vsub.s32 0, %v54
    %v64 = vsel %vm62, %v63, %v54
    %v65 = vshrl.u32 %v64, 4
    %v66 = vand.u32 %v64, 15
    %v67 = vsub.s32 0, %v66
    %v68 = vsel %vm62, %v67, %v66
    %vm69 = vcmp.ne.s32.totalorder %v61, 0
    %vm70 = vcmp.ne.s32.totalorder %v68, 0
    %vm71 = vcmp.lt.s32.totalorder %v61, 0
    %vm72 = vcmp.lt.s32.totalorder %v68, 0
    %vm73 = vmand %vm71, %vm69
    %vm74 = vmand %vm72, %vm70
    %v75 = vadd.s32 %v61, 16
    %v76 = vadd.s32 %v68, 16
    %v77 = vsel %vm73, %v75, %v61
    %v78 = vsel %vm74, %v76, %v68
    %vm79 = vcmp.ge.s32.totalorder %v53, 16
    %vm80 = vcmp.ge.s32.totalorder %v54, 16
    %vm81 = vcmp.ge.s32.totalorder %v77, 1
    %vm82 = vcmp.ge.s32.totalorder %v78, 1
    %vm83 = vmand %vm79, %vm81
    %vm84 = vmand %vm80, %vm82
    %vm85 = vcmp.le.s32.totalorder %v77, 14
    %vm86 = vcmp.le.s32.totalorder %v78, 14
    %vm87 = vmand %vm79, %vm85
    %vm88 = vmand %vm80, %vm86
    %vm89 = vcmp.lt.s32.totalorder %v53, 240
    %vm90 = vcmp.lt.s32.totalorder %v54, 240
    %vm91 = vmand %vm89, %vm81
    %vm92 = vmand %vm90, %vm82
    %vm93 = vmand %vm89, %vm85
    %vm94 = vmand %vm90, %vm86
    %v95 = vld [vmem:[#allocation5] sm:$0xff]
    %v96 = vld [vmem:[#allocation7] sm:$0xff]
    %v97 = vld [vmem:[#allocation2] sm:$0xff]
    %v98 = vld [vmem:[#allocation2 + $0x8] sm:$0xff]
    %99 = vrot.lane.b32.xlu0 %v97, 17
    %v100 = vpop.permute.xlu0 %99
    %101 = vrot.lane.b32.xlu0 %v98, 17
    %v102 = vpop.permute.xlu0 %101
    %vm103 = vcmp.lt.s32.totalorder %v53, 17
    %v104 = vsel %vm103, %v100, %v102
    %v105 = vsel %vm103, %v102, %v100
    %v106 = vsel %vm83, 1, 0
    %v107 = vsel %vm84, 1, 0
    %vm108 = vcmp.eq.s32.totalorder %v106, 1
    %vm109 = vcmp.eq.s32.totalorder %v107, 1
    %v110 = vsel %vm108, %v105, 0.0
    %v111 = vsel %vm109, %v104, 0.0
    %112 = vrot.lane.b32.xlu0 %v97, 16
    %v113 = vpop.permute.xlu0 %112
    %114 = vrot.lane.b32.xlu0 %v98, 16
    %v115 = vpop.permute.xlu0 %114
    %vm116 = vcmp.lt.s32.totalorder %v53, 16
    %v117 = vsel %vm116, %v113, %v115
    %v118 = vsel %vm116, %v115, %v113
    %v119 = vsel %vm79, 1, 0
    %v120 = vsel %vm80, 1, 0
    %vm121 = vcmp.eq.s32.totalorder %v119, 1
    %vm122 = vcmp.eq.s32.totalorder %v120, 1
    %v123 = vsel %vm121, %v118, 0.0
    %v124 = vsel %vm122, %v117, 0.0
    %125 = vrot.lane.b32.xlu0 %v97, 15
    %v126 = vpop.permute.xlu0 %125
    %127 = vrot.lane.b32.xlu0 %v98, 15
    %v128 = vpop.permute.xlu0 %127
    %vm129 = vcmp.lt.s32.totalorder %v53, 15
    %v130 = vsel %vm129, %v126, %v128
    %v131 = vsel %vm129, %v128, %v126
    %v132 = vsel %vm87, 1, 0
    %v133 = vsel %vm88, 1, 0
    %vm134 = vcmp.eq.s32.totalorder %v132, 1
    %vm135 = vcmp.eq.s32.totalorder %v133, 1
    %v136 = vsel %vm134, %v131, 0.0
    %v137 = vsel %vm135, %v130, 0.0
    %138 = vrot.lane.b32.xlu0 %v97, 1
    %v139 = vpop.permute.xlu0 %138
    %140 = vrot.lane.b32.xlu0 %v98, 1
    %v141 = vpop.permute.xlu0 %140
    %vm142 = vcmp.lt.s32.totalorder %v53, 1
    %v143 = vsel %vm142, %v139, %v141
    %v144 = vsel %vm142, %v141, %v139
    %v145 = vsel %vm81, 1, 0
    %v146 = vsel %vm82, 1, 0
    %vm147 = vcmp.eq.s32.totalorder %v145, 1
    %vm148 = vcmp.eq.s32.totalorder %v146, 1
    %v149 = vsel %vm147, %v144, 0.0
    %v150 = vsel %vm148, %v143, 0.0
    %151 = vrot.lane.b32.xlu0 %v97, 127
    %v152 = vpop.permute.xlu0 %151
    %153 = vrot.lane.b32.xlu0 %v98, 127
    %v154 = vpop.permute.xlu0 %153
    %vm155 = vcmp.lt.s32.totalorder %v53, 127
    %v156 = vsel %vm155, %v152, %v154
    %v157 = vsel %vm155, %v154, %v152
    %v158 = vsel %vm85, 1, 0
    %v159 = vsel %vm86, 1, 0
    %vm160 = vcmp.eq.s32.totalorder %v158, 1
    %vm161 = vcmp.eq.s32.totalorder %v159, 1
    %v162 = vsel %vm160, %v156, 0.0
    %v163 = vsel %vm161, %v157, 0.0
    %164 = vrot.lane.b32.xlu0 %v97, 113
    %v165 = vpop.permute.xlu0 %164
    %166 = vrot.lane.b32.xlu0 %v98, 113
    %v167 = vpop.permute.xlu0 %166
    %vm168 = vcmp.lt.s32.totalorder %v53, 113
    %v169 = vsel %vm168, %v165, %v167
    %v170 = vsel %vm168, %v167, %v165
    %v171 = vsel %vm91, 1, 0
    %v172 = vsel %vm92, 1, 0
    %vm173 = vcmp.eq.s32.totalorder %v171, 1
    %vm174 = vcmp.eq.s32.totalorder %v172, 1
    %v175 = vsel %vm173, %v169, 0.0
    %v176 = vsel %vm174, %v170, 0.0
    %177 = vrot.lane.b32.xlu0 %v97, 112
    %v178 = vpop.permute.xlu0 %177
    %179 = vrot.lane.b32.xlu0 %v98, 112
    %v180 = vpop.permute.xlu0 %179
    %vm181 = vcmp.lt.s32.totalorder %v53, 112
    %v182 = vsel %vm181, %v178, %v180
    %v183 = vsel %vm181, %v180, %v178
    %v184 = vsel %vm89, 1, 0
    %v185 = vsel %vm90, 1, 0
    %vm186 = vcmp.eq.s32.totalorder %v184, 1
    %vm187 = vcmp.eq.s32.totalorder %v185, 1
    %v188 = vsel %vm186, %v182, 0.0
    %v189 = vsel %vm187, %v183, 0.0
    %190 = vrot.lane.b32.xlu0 %v97, 111
    %v191 = vpop.permute.xlu0 %190
    %192 = vrot.lane.b32.xlu0 %v98, 111
    %v193 = vpop.permute.xlu0 %192
    %vm194 = vcmp.lt.s32.totalorder %v53, 111
    %v195 = vsel %vm194, %v191, %v193
    %v196 = vsel %vm194, %v193, %v191
    %v197 = vsel %vm93, 1, 0
    %v198 = vsel %vm94, 1, 0
    %vm199 = vcmp.eq.s32.totalorder %v197, 1
    %vm200 = vcmp.eq.s32.totalorder %v198, 1
    %v201 = vsel %vm199, %v195, 0.0
    %v202 = vsel %vm200, %v196, 0.0
    %vm203 = vcmask 588800
    %v205 = vsel %vm203, %v95, 0
    %207 = vmatprep.subr.mxu0 0.0
    %208 = vmatpush1.msra.mxu0 0.0
    %209 = vmatprep.subr.mxu0 0.0
    %210 = vmatpush1.msra.mxu0 0.0
    %211 = vmatprep.subr.mxu0 0.0
    %212 = vmatpush1.msra.mxu0 0.0
    %213 = vmatprep.subr.mxu0 0.0
    %214 = vmatpush1.msra.mxu0 0.0
    %215 = vmatprep.subr.mxu0 0.0
    %216 = vmatpush1.msra.mxu0 0.0
    %217 = vmatprep.subr.mxu0 0.0
    %218 = vmatpush1.msra.mxu0 0.0
    %219 = vmatprep.subr.mxu0 0.0
    %220 = vmatpush1.msra.mxu0 0.0
    %v221 = vand.u32 %v202, 4294901760
    %222 = vmatprep.subr.mxu0 %v221
    %v223 = vand.u32 %v201, 4294901760
    %224 = vmatpush1.msra.mxu0 %v223
    %v225 = vand.u32 %v189, 4294901760
    %226 = vmatprep.subr.mxu0 %v225
    %v227 = vand.u32 %v188, 4294901760
    %228 = vmatpush1.msra.mxu0 %v227
    %v229 = vand.u32 %v176, 4294901760
    %230 = vmatprep.subr.mxu0 %v229
    %v231 = vand.u32 %v175, 4294901760
    %232 = vmatpush1.msra.mxu0 %v231
    %v233 = vand.u32 %v163, 4294901760
    %234 = vmatprep.subr.mxu0 %v233
    %v235 = vand.u32 %v162, 4294901760
    %236 = vmatpush1.msra.mxu0 %v235
    %v237 = vand.u32 %v98, 4294901760
    %238 = vmatprep.subr.mxu0 %v237
    %v239 = vand.u32 %v97, 4294901760
    %240 = vmatpush1.msra.mxu0 %v239
    %v241 = vand.u32 %v150, 4294901760
    %242 = vmatprep.subr.mxu0 %v241
    %v243 = vand.u32 %v149, 4294901760
    %244 = vmatpush1.msra.mxu0 %v243
    %v245 = vand.u32 %v137, 4294901760
    %246 = vmatprep.subr.mxu0 %v245
    %v247 = vand.u32 %v136, 4294901760
    %248 = vmatpush1.msra.mxu0 %v247
    %v249 = vand.u32 %v124, 4294901760
    %250 = vmatprep.subr.mxu0 %v249
    %v251 = vand.u32 %v123, 4294901760
    %252 = vmatpush1.msra.mxu0 %v251
    %v253 = vand.u32 %v111, 4294901760
    %254 = vmatprep.subr.mxu0 %v253
    %v255 = vand.u32 %v110, 4294901760
    %256 = vmatpush1.msra.mxu0 %v255
    %257 = vmatprep.subr.mxu0 0.0
    %258 = vmatpush2.msra.mxu0 0.0
    %259 = vmatprep.subr.mxu0 0.0
    %260 = vmatpush2.msra.mxu0 0.0
    %261 = vmatprep.subr.mxu0 0.0
    %262 = vmatpush2.msra.mxu0 0.0
    %263 = vmatprep.subr.mxu0 0.0
    %264 = vmatpush2.msra.mxu0 0.0
    %265 = vmatprep.subr.mxu0 0.0
    %266 = vmatpush2.msra.mxu0 0.0
    %267 = vmatprep.subr.mxu0 0.0
    %268 = vmatpush2.msra.mxu0 0.0
    %269 = vmatprep.subr.mxu0 0.0
    %270 = vmatpush2.msra.mxu0 0.0
    %271 = vmatprep.subr.mxu0 0.0
    %272 = vmatpush2.msra.mxu0 0.0
    %273 = vmatprep.subr.mxu0 0.0
    %274 = vmatpush2.msra.mxu0 0.0
    %275 = vmatprep.subr.mxu0 0.0
    %276 = vmatpush2.msra.mxu0 0.0
    %277 = vmatprep.subr.mxu0 0.0
    %278 = vmatpush2.msra.mxu0 0.0
    %279 = vmatprep.subr.mxu0 0.0
    %280 = vmatpush2.msra.mxu0 0.0
    %281 = vmatprep.subr.mxu0 0.0
    %282 = vmatpush2.msra.mxu0 0.0
    %283 = vmatprep.subr.mxu0 0.0
    %284 = vmatpush2.msra.mxu0 0.0
    %285 = vmatprep.subr.mxu0 0.0
    %286 = vmatpush2.msra.mxu0 0.0
    %287 = vmatprep.subr.mxu0 0.0
    %288 = vmatpush2.msra.mxu0 0.0
    %289 = vmatprep.mubr.f32.mxu0 0.0
    %v290 = vand.u32 %v205, 4294901760
    %v291 = vsub.f32 %v205, %v290
    %v292 = vand.u32 %v291, 4294901760
    %v293 = vsub.f32 %v291, %v292
    %v294 = vand.u32 %v293, 4294901760
    %295 = vmatmul.mubr.f32.gmra.mxu0 %v294
    %v296 = vpop.f32.mrf.mxu0
    %v297 = vadd.f32 0.0, %v296
    %v298 = vpop.f32.mrf.mxu0
    %v299 = vadd.f32 0.0, %v298
    %300 = vdwg.mxu0
    %301 = vmatprep.subr.mxu0 0.0
    %302 = vmatpush1.msra.mxu0 0.0
    %303 = vmatprep.subr.mxu0 0.0
    %304 = vmatpush1.msra.mxu0 0.0
    %305 = vmatprep.subr.mxu0 0.0
    %306 = vmatpush1.msra.mxu0 0.0
    %307 = vmatprep.subr.mxu0 0.0
    %308 = vmatpush1.msra.mxu0 0.0
    %309 = vmatprep.subr.mxu0 0.0
    %310 = vmatpush1.msra.mxu0 0.0
    %311 = vmatprep.subr.mxu0 0.0
    %312 = vmatpush1.msra.mxu0 0.0
    %313 = vmatprep.subr.mxu0 0.0
    %314 = vmatpush1.msra.mxu0 0.0
    %v315 = vand.u32 %v202, 4294901760
    %v316 = vsub.f32 %v202, %v315
    %v317 = vand.u32 %v316, 4294901760
    %v318 = vsub.f32 %v316, %v317
    %v319 = vand.u32 %v318, 4294901760
    %320 = vmatprep.subr.mxu0 %v319
    %v321 = vand.u32 %v201, 4294901760
    %v322 = vsub.f32 %v201, %v321
    %v323 = vand.u32 %v322, 4294901760
    %v324 = vsub.f32 %v322, %v323
    %v325 = vand.u32 %v324, 4294901760
    %326 = vmatpush1.msra.mxu0 %v325
    %v327 = vand.u32 %v189, 4294901760
    %v328 = vsub.f32 %v189, %v327
    %v329 = vand.u32 %v328, 4294901760
    %v330 = vsub.f32 %v328, %v329
    %v331 = vand.u32 %v330, 4294901760
    %332 = vmatprep.subr.mxu0 %v331
    %v333 = vand.u32 %v188, 4294901760
    %v334 = vsub.f32 %v188, %v333
    %v335 = vand.u32 %v334, 4294901760
    %v336 = vsub.f32 %v334, %v335
    %v337 = vand.u32 %v336, 4294901760
    %338 = vmatpush1.msra.mxu0 %v337
    %v339 = vand.u32 %v176, 4294901760
    %v340 = vsub.f32 %v176, %v339
    %v341 = vand.u32 %v340, 4294901760
    %v342 = vsub.f32 %v340, %v341
    %v343 = vand.u32 %v342, 4294901760
    %344 = vmatprep.subr.mxu0 %v343
    %v345 = vand.u32 %v175, 4294901760
    %v346 = vsub.f32 %v175, %v345
    %v347 = vand.u32 %v346, 4294901760
    %v348 = vsub.f32 %v346, %v347
    %v349 = vand.u32 %v348, 4294901760
    %350 = vmatpush1.msra.mxu0 %v349
    %v351 = vand.u32 %v163, 4294901760
    %v352 = vsub.f32 %v163, %v351
    %v353 = vand.u32 %v352, 4294901760
    %v354 = vsub.f32 %v352, %v353
    %v355 = vand.u32 %v354, 4294901760
    %356 = vmatprep.subr.mxu0 %v355
    %v357 = vand.u32 %v162, 4294901760
    %v358 = vsub.f32 %v162, %v357
    %v359 = vand.u32 %v358, 4294901760
    %v360 = vsub.f32 %v358, %v359
    %v361 = vand.u32 %v360, 4294901760
    %362 = vmatpush1.msra.mxu0 %v361
    %v363 = vand.u32 %v98, 4294901760
    %v364 = vsub.f32 %v98, %v363
    %v365 = vand.u32 %v364, 4294901760
    %v366 = vsub.f32 %v364, %v365
    %v367 = vand.u32 %v366, 4294901760
    %368 = vmatprep.subr.mxu0 %v367
    %v369 = vand.u32 %v97, 4294901760
    %v370 = vsub.f32 %v97, %v369
    %v371 = vand.u32 %v370, 4294901760
    %v372 = vsub.f32 %v370, %v371
    %v373 = vand.u32 %v372, 4294901760
    %374 = vmatpush1.msra.mxu0 %v373
    %v375 = vand.u32 %v150, 4294901760
    %v376 = vsub.f32 %v150, %v375
    %v377 = vand.u32 %v376, 4294901760
    %v378 = vsub.f32 %v376, %v377
    %v379 = vand.u32 %v378, 4294901760
    %380 = vmatprep.subr.mxu0 %v379
    %v381 = vand.u32 %v149, 4294901760
    %v382 = vsub.f32 %v149, %v381
    %v383 = vand.u32 %v382, 4294901760
    %v384 = vsub.f32 %v382, %v383
    %v385 = vand.u32 %v384, 4294901760
    %386 = vmatpush1.msra.mxu0 %v385
    %v387 = vand.u32 %v137, 4294901760
    %v388 = vsub.f32 %v137, %v387
    %v389 = vand.u32 %v388, 4294901760
    %v390 = vsub.f32 %v388, %v389
    %v391 = vand.u32 %v390, 4294901760
    %392 = vmatprep.subr.mxu0 %v391
    %v393 = vand.u32 %v136, 4294901760
    %v394 = vsub.f32 %v136, %v393
    %v395 = vand.u32 %v394, 4294901760
    %v396 = vsub.f32 %v394, %v395
    %v397 = vand.u32 %v396, 4294901760
    %398 = vmatpush1.msra.mxu0 %v397
    %v399 = vand.u32 %v124, 4294901760
    %v400 = vsub.f32 %v124, %v399
    %v401 = vand.u32 %v400, 4294901760
    %v402 = vsub.f32 %v400, %v401
    %v403 = vand.u32 %v402, 4294901760
    %404 = vmatprep.subr.mxu0 %v403
    %v405 = vand.u32 %v123, 4294901760
    %v406 = vsub.f32 %v123, %v405
    %v407 = vand.u32 %v406, 4294901760
    %v408 = vsub.f32 %v406, %v407
    %v409 = vand.u32 %v408, 4294901760
    %410 = vmatpush1.msra.mxu0 %v409
    %v411 = vand.u32 %v111, 4294901760
    %v412 = vsub.f32 %v111, %v411
    %v413 = vand.u32 %v412, 4294901760
    %v414 = vsub.f32 %v412, %v413
    %v415 = vand.u32 %v414, 4294901760
    %416 = vmatprep.subr.mxu0 %v415
    %v417 = vand.u32 %v110, 4294901760
    %v418 = vsub.f32 %v110, %v417
    %v419 = vand.u32 %v418, 4294901760
    %v420 = vsub.f32 %v418, %v419
    %v421 = vand.u32 %v420, 4294901760
    %422 = vmatpush1.msra.mxu0 %v421
    %423 = vmatprep.subr.mxu0 0.0
    %424 = vmatpush2.msra.mxu0 0.0
    %425 = vmatprep.subr.mxu0 0.0
    %426 = vmatpush2.msra.mxu0 0.0
    %427 = vmatprep.subr.mxu0 0.0
    %428 = vmatpush2.msra.mxu0 0.0
    %429 = vmatprep.subr.mxu0 0.0
    %430 = vmatpush2.msra.mxu0 0.0
    %431 = vmatprep.subr.mxu0 0.0
    %432 = vmatpush2.msra.mxu0 0.0
    %433 = vmatprep.subr.mxu0 0.0
    %434 = vmatpush2.msra.mxu0 0.0
    %435 = vmatprep.subr.mxu0 0.0
    %436 = vmatpush2.msra.mxu0 0.0
    %437 = vmatprep.subr.mxu0 0.0
    %438 = vmatpush2.msra.mxu0 0.0
    %439 = vmatprep.subr.mxu0 0.0
    %440 = vmatpush2.msra.mxu0 0.0
    %441 = vmatprep.subr.mxu0 0.0
    %442 = vmatpush2.msra.mxu0 0.0
    %443 = vmatprep.subr.mxu0 0.0
    %444 = vmatpush2.msra.mxu0 0.0
    %445 = vmatprep.subr.mxu0 0.0
    %446 = vmatpush2.msra.mxu0 0.0
    %447 = vmatprep.subr.mxu0 0.0
    %448 = vmatpush2.msra.mxu0 0.0
    %449 = vmatprep.subr.mxu0 0.0
    %450 = vmatpush2.msra.mxu0 0.0
    %451 = vmatprep.subr.mxu0 0.0
    %452 = vmatpush2.msra.mxu0 0.0
    %453 = vmatprep.subr.mxu0 0.0
    %454 = vmatpush2.msra.mxu0 0.0
    %455 = vmatprep.mubr.f32.mxu0 0.0
    %v456 = vand.u32 %v205, 4294901760
    %457 = vmatmul.mubr.f32.gmra.mxu0 %v456
    %v458 = vpop.f32.mrf.mxu0
    %v459 = vadd.f32 %v297, %v458
    %v460 = vpop.f32.mrf.mxu0
    %v461 = vadd.f32 %v299, %v460
    %462 = vdwg.mxu0
    %463 = vmatprep.subr.mxu0 0.0
    %464 = vmatpush1.msra.mxu0 0.0
    %465 = vmatprep.subr.mxu0 0.0
    %466 = vmatpush1.msra.mxu0 0.0
    %467 = vmatprep.subr.mxu0 0.0
    %468 = vmatpush1.msra.mxu0 0.0
    %469 = vmatprep.subr.mxu0 0.0
    %470 = vmatpush1.msra.mxu0 0.0
    %471 = vmatprep.subr.mxu0 0.0
    %472 = vmatpush1.msra.mxu0 0.0
    %473 = vmatprep.subr.mxu0 0.0
    %474 = vmatpush1.msra.mxu0 0.0
    %475 = vmatprep.subr.mxu0 0.0
    %476 = vmatpush1.msra.mxu0 0.0
    %v477 = vand.u32 %v202, 4294901760
    %v478 = vsub.f32 %v202, %v477
    %479 = vmatprep.subr.mxu0 %v478
    %v480 = vand.u32 %v201, 4294901760
    %v481 = vsub.f32 %v201, %v480
    %482 = vmatpush1.msra.mxu0 %v481
    %v483 = vand.u32 %v189, 4294901760
    %v484 = vsub.f32 %v189, %v483
    %485 = vmatprep.subr.mxu0 %v484
    %v486 = vand.u32 %v188, 4294901760
    %v487 = vsub.f32 %v188, %v486
    %488 = vmatpush1.msra.mxu0 %v487
    %v489 = vand.u32 %v176, 4294901760
    %v490 = vsub.f32 %v176, %v489
    %491 = vmatprep.subr.mxu0 %v490
    %v492 = vand.u32 %v175, 4294901760
    %v493 = vsub.f32 %v175, %v492
    %494 = vmatpush1.msra.mxu0 %v493
    %v495 = vand.u32 %v163, 4294901760
    %v496 = vsub.f32 %v163, %v495
    %497 = vmatprep.subr.mxu0 %v496
    %v498 = vand.u32 %v162, 4294901760
    %v499 = vsub.f32 %v162, %v498
    %500 = vmatpush1.msra.mxu0 %v499
    %v501 = vand.u32 %v98, 4294901760
    %v502 = vsub.f32 %v98, %v501
    %503 = vmatprep.subr.mxu0 %v502
    %v504 = vand.u32 %v97, 4294901760
    %v505 = vsub.f32 %v97, %v504
    %506 = vmatpush1.msra.mxu0 %v505
    %v507 = vand.u32 %v150, 4294901760
    %v508 = vsub.f32 %v150, %v507
    %509 = vmatprep.subr.mxu0 %v508
    %v510 = vand.u32 %v149, 4294901760
    %v511 = vsub.f32 %v149, %v510
    %512 = vmatpush1.msra.mxu0 %v511
    %v513 = vand.u32 %v137, 4294901760
    %v514 = vsub.f32 %v137, %v513
    %515 = vmatprep.subr.mxu0 %v514
    %v516 = vand.u32 %v136, 4294901760
    %v517 = vsub.f32 %v136, %v516
    %518 = vmatpush1.msra.mxu0 %v517
    %v519 = vand.u32 %v124, 4294901760
    %v520 = vsub.f32 %v124, %v519
    %521 = vmatprep.subr.mxu0 %v520
    %v522 = vand.u32 %v123, 4294901760
    %v523 = vsub.f32 %v123, %v522
    %524 = vmatpush1.msra.mxu0 %v523
    %v525 = vand.u32 %v111, 4294901760
    %v526 = vsub.f32 %v111, %v525
    %527 = vmatprep.subr.mxu0 %v526
    %v528 = vand.u32 %v110, 4294901760
    %v529 = vsub.f32 %v110, %v528
    %530 = vmatpush1.msra.mxu0 %v529
    %531 = vmatprep.subr.mxu0 0.0
    %532 = vmatpush2.msra.mxu0 0.0
    %533 = vmatprep.subr.mxu0 0.0
    %534 = vmatpush2.msra.mxu0 0.0
    %535 = vmatprep.subr.mxu0 0.0
    %536 = vmatpush2.msra.mxu0 0.0
    %537 = vmatprep.subr.mxu0 0.0
    %538 = vmatpush2.msra.mxu0 0.0
    %539 = vmatprep.subr.mxu0 0.0
    %540 = vmatpush2.msra.mxu0 0.0
    %541 = vmatprep.subr.mxu0 0.0
    %542 = vmatpush2.msra.mxu0 0.0
    %543 = vmatprep.subr.mxu0 0.0
    %544 = vmatpush2.msra.mxu0 0.0
    %545 = vmatprep.subr.mxu0 0.0
    %546 = vmatpush2.msra.mxu0 0.0
    %547 = vmatprep.subr.mxu0 0.0
    %548 = vmatpush2.msra.mxu0 0.0
    %549 = vmatprep.subr.mxu0 0.0
    %550 = vmatpush2.msra.mxu0 0.0
    %551 = vmatprep.subr.mxu0 0.0
    %552 = vmatpush2.msra.mxu0 0.0
    %553 = vmatprep.subr.mxu0 0.0
    %554 = vmatpush2.msra.mxu0 0.0
    %555 = vmatprep.subr.mxu0 0.0
    %556 = vmatpush2.msra.mxu0 0.0
    %557 = vmatprep.subr.mxu0 0.0
    %558 = vmatpush2.msra.mxu0 0.0
    %559 = vmatprep.subr.mxu0 0.0
    %560 = vmatpush2.msra.mxu0 0.0
    %561 = vmatprep.subr.mxu0 0.0
    %562 = vmatpush2.msra.mxu0 0.0
    %563 = vmatprep.mubr.f32.mxu0 0.0
    %v564 = vand.u32 %v205, 4294901760
    %v565 = vsub.f32 %v205, %v564
    %566 = vmatmul.mubr.f32.gmra.mxu0 %v565
    %v567 = vpop.f32.mrf.mxu0
    %v568 = vadd.f32 %v459, %v567
    %v569 = vpop.f32.mrf.mxu0
    %v570 = vadd.f32 %v461, %v569
    %571 = vdwg.mxu0
    %572 = vmatprep.subr.mxu0 0.0
    %573 = vmatpush1.msra.mxu0 0.0
    %574 = vmatprep.subr.mxu0 0.0
    %575 = vmatpush1.msra.mxu0 0.0
    %576 = vmatprep.subr.mxu0 0.0
    %577 = vmatpush1.msra.mxu0 0.0
    %578 = vmatprep.subr.mxu0 0.0
    %579 = vmatpush1.msra.mxu0 0.0
    %580 = vmatprep.subr.mxu0 0.0
    %581 = vmatpush1.msra.mxu0 0.0
    %582 = vmatprep.subr.mxu0 0.0
    %583 = vmatpush1.msra.mxu0 0.0
    %584 = vmatprep.subr.mxu0 0.0
    %585 = vmatpush1.msra.mxu0 0.0
    %v586 = vand.u32 %v202, 4294901760
    %587 = vmatprep.subr.mxu0 %v586
    %v588 = vand.u32 %v201, 4294901760
    %589 = vmatpush1.msra.mxu0 %v588
    %v590 = vand.u32 %v189, 4294901760
    %591 = vmatprep.subr.mxu0 %v590
    %v592 = vand.u32 %v188, 4294901760
    %593 = vmatpush1.msra.mxu0 %v592
    %v594 = vand.u32 %v176, 4294901760
    %595 = vmatprep.subr.mxu0 %v594
    %v596 = vand.u32 %v175, 4294901760
    %597 = vmatpush1.msra.mxu0 %v596
    %v598 = vand.u32 %v163, 4294901760
    %599 = vmatprep.subr.mxu0 %v598
    %v600 = vand.u32 %v162, 4294901760
    %601 = vmatpush1.msra.mxu0 %v600
    %v602 = vand.u32 %v98, 4294901760
    %603 = vmatprep.subr.mxu0 %v602
    %v604 = vand.u32 %v97, 4294901760
    %605 = vmatpush1.msra.mxu0 %v604
    %v606 = vand.u32 %v150, 4294901760
    %607 = vmatprep.subr.mxu0 %v606
    %v608 = vand.u32 %v149, 4294901760
    %609 = vmatpush1.msra.mxu0 %v608
    %v610 = vand.u32 %v137, 4294901760
    %611 = vmatprep.subr.mxu0 %v610
    %v612 = vand.u32 %v136, 4294901760
    %613 = vmatpush1.msra.mxu0 %v612
    %v614 = vand.u32 %v124, 4294901760
    %615 = vmatprep.subr.mxu0 %v614
    %v616 = vand.u32 %v123, 4294901760
    %617 = vmatpush1.msra.mxu0 %v616
    %v618 = vand.u32 %v111, 4294901760
    %619 = vmatprep.subr.mxu0 %v618
    %v620 = vand.u32 %v110, 4294901760
    %621 = vmatpush1.msra.mxu0 %v620
    %622 = vmatprep.subr.mxu0 0.0
    %623 = vmatpush2.msra.mxu0 0.0
    %624 = vmatprep.subr.mxu0 0.0
    %625 = vmatpush2.msra.mxu0 0.0
    %626 = vmatprep.subr.mxu0 0.0
    %627 = vmatpush2.msra.mxu0 0.0
    %628 = vmatprep.subr.mxu0 0.0
    %629 = vmatpush2.msra.mxu0 0.0
    %630 = vmatprep.subr.mxu0 0.0
    %631 = vmatpush2.msra.mxu0 0.0
    %632 = vmatprep.subr.mxu0 0.0
    %633 = vmatpush2.msra.mxu0 0.0
    %634 = vmatprep.subr.mxu0 0.0
    %635 = vmatpush2.msra.mxu0 0.0
    %636 = vmatprep.subr.mxu0 0.0
    %637 = vmatpush2.msra.mxu0 0.0
    %638 = vmatprep.subr.mxu0 0.0
    %639 = vmatpush2.msra.mxu0 0.0
    %640 = vmatprep.subr.mxu0 0.0
    %641 = vmatpush2.msra.mxu0 0.0
    %642 = vmatprep.subr.mxu0 0.0
    %643 = vmatpush2.msra.mxu0 0.0
    %644 = vmatprep.subr.mxu0 0.0
    %645 = vmatpush2.msra.mxu0 0.0
    %646 = vmatprep.subr.mxu0 0.0
    %647 = vmatpush2.msra.mxu0 0.0
    %648 = vmatprep.subr.mxu0 0.0
    %649 = vmatpush2.msra.mxu0 0.0
    %650 = vmatprep.subr.mxu0 0.0
    %651 = vmatpush2.msra.mxu0 0.0
    %652 = vmatprep.subr.mxu0 0.0
    %653 = vmatpush2.msra.mxu0 0.0
    %654 = vmatprep.mubr.f32.mxu0 0.0
    %v655 = vand.u32 %v205, 4294901760
    %v656 = vsub.f32 %v205, %v655
    %v657 = vand.u32 %v656, 4294901760
    %658 = vmatmul.mubr.f32.gmra.mxu0 %v657
    %v659 = vpop.f32.mrf.mxu0
    %v660 = vadd.f32 %v568, %v659
    %v661 = vpop.f32.mrf.mxu0
    %v662 = vadd.f32 %v570, %v661
    %663 = vdwg.mxu0
    %664 = vmatprep.subr.mxu0 0.0
    %665 = vmatpush1.msra.mxu0 0.0
    %666 = vmatprep.subr.mxu0 0.0
    %667 = vmatpush1.msra.mxu0 0.0
    %668 = vmatprep.subr.mxu0 0.0
    %669 = vmatpush1.msra.mxu0 0.0
    %670 = vmatprep.subr.mxu0 0.0
    %671 = vmatpush1.msra.mxu0 0.0
    %672 = vmatprep.subr.mxu0 0.0
    %673 = vmatpush1.msra.mxu0 0.0
    %674 = vmatprep.subr.mxu0 0.0
    %675 = vmatpush1.msra.mxu0 0.0
    %676 = vmatprep.subr.mxu0 0.0
    %677 = vmatpush1.msra.mxu0 0.0
    %v678 = vand.u32 %v202, 4294901760
    %v679 = vsub.f32 %v202, %v678
    %v680 = vand.u32 %v679, 4294901760
    %681 = vmatprep.subr.mxu0 %v680
    %v682 = vand.u32 %v201, 4294901760
    %v683 = vsub.f32 %v201, %v682
    %v684 = vand.u32 %v683, 4294901760
    %685 = vmatpush1.msra.mxu0 %v684
    %v686 = vand.u32 %v189, 4294901760
    %v687 = vsub.f32 %v189, %v686
    %v688 = vand.u32 %v687, 4294901760
    %689 = vmatprep.subr.mxu0 %v688
    %v690 = vand.u32 %v188, 4294901760
    %v691 = vsub.f32 %v188, %v690
    %v692 = vand.u32 %v691, 4294901760
    %693 = vmatpush1.msra.mxu0 %v692
    %v694 = vand.u32 %v176, 4294901760
    %v695 = vsub.f32 %v176, %v694
    %v696 = vand.u32 %v695, 4294901760
    %697 = vmatprep.subr.mxu0 %v696
    %v698 = vand.u32 %v175, 4294901760
    %v699 = vsub.f32 %v175, %v698
    %v700 = vand.u32 %v699, 4294901760
    %701 = vmatpush1.msra.mxu0 %v700
    %v702 = vand.u32 %v163, 4294901760
    %v703 = vsub.f32 %v163, %v702
    %v704 = vand.u32 %v703, 4294901760
    %705 = vmatprep.subr.mxu0 %v704
    %v706 = vand.u32 %v162, 4294901760
    %v707 = vsub.f32 %v162, %v706
    %v708 = vand.u32 %v707, 4294901760
    %709 = vmatpush1.msra.mxu0 %v708
    %v710 = vand.u32 %v98, 4294901760
    %v711 = vsub.f32 %v98, %v710
    %v712 = vand.u32 %v711, 4294901760
    %713 = vmatprep.subr.mxu0 %v712
    %v714 = vand.u32 %v97, 4294901760
    %v715 = vsub.f32 %v97, %v714
    %v716 = vand.u32 %v715, 4294901760
    %717 = vmatpush1.msra.mxu0 %v716
    %v718 = vand.u32 %v150, 4294901760
    %v719 = vsub.f32 %v150, %v718
    %v720 = vand.u32 %v719, 4294901760
    %721 = vmatprep.subr.mxu0 %v720
    %v722 = vand.u32 %v149, 4294901760
    %v723 = vsub.f32 %v149, %v722
    %v724 = vand.u32 %v723, 4294901760
    %725 = vmatpush1.msra.mxu0 %v724
    %v726 = vand.u32 %v137, 4294901760
    %v727 = vsub.f32 %v137, %v726
    %v728 = vand.u32 %v727, 4294901760
    %729 = vmatprep.subr.mxu0 %v728
    %v730 = vand.u32 %v136, 4294901760
    %v731 = vsub.f32 %v136, %v730
    %v732 = vand.u32 %v731, 4294901760
    %733 = vmatpush1.msra.mxu0 %v732
    %v734 = vand.u32 %v124, 4294901760
    %v735 = vsub.f32 %v124, %v734
    %v736 = vand.u32 %v735, 4294901760
    %737 = vmatprep.subr.mxu0 %v736
    %v738 = vand.u32 %v123, 4294901760
    %v739 = vsub.f32 %v123, %v738
    %v740 = vand.u32 %v739, 4294901760
    %741 = vmatpush1.msra.mxu0 %v740
    %v742 = vand.u32 %v111, 4294901760
    %v743 = vsub.f32 %v111, %v742
    %v744 = vand.u32 %v743, 4294901760
    %745 = vmatprep.subr.mxu0 %v744
    %v746 = vand.u32 %v110, 4294901760
    %v747 = vsub.f32 %v110, %v746
    %v748 = vand.u32 %v747, 4294901760
    %749 = vmatpush1.msra.mxu0 %v748
    %750 = vmatprep.subr.mxu0 0.0
    %751 = vmatpush2.msra.mxu0 0.0
    %752 = vmatprep.subr.mxu0 0.0
    %753 = vmatpush2.msra.mxu0 0.0
    %754 = vmatprep.subr.mxu0 0.0
    %755 = vmatpush2.msra.mxu0 0.0
    %756 = vmatprep.subr.mxu0 0.0
    %757 = vmatpush2.msra.mxu0 0.0
    %758 = vmatprep.subr.mxu0 0.0
    %759 = vmatpush2.msra.mxu0 0.0
    %760 = vmatprep.subr.mxu0 0.0
    %761 = vmatpush2.msra.mxu0 0.0
    %762 = vmatprep.subr.mxu0 0.0
    %763 = vmatpush2.msra.mxu0 0.0
    %764 = vmatprep.subr.mxu0 0.0
    %765 = vmatpush2.msra.mxu0 0.0
    %766 = vmatprep.subr.mxu0 0.0
    %767 = vmatpush2.msra.mxu0 0.0
    %768 = vmatprep.subr.mxu0 0.0
    %769 = vmatpush2.msra.mxu0 0.0
    %770 = vmatprep.subr.mxu0 0.0
    %771 = vmatpush2.msra.mxu0 0.0
    %772 = vmatprep.subr.mxu0 0.0
    %773 = vmatpush2.msra.mxu0 0.0
    %774 = vmatprep.subr.mxu0 0.0
    %775 = vmatpush2.msra.mxu0 0.0
    %776 = vmatprep.subr.mxu0 0.0
    %777 = vmatpush2.msra.mxu0 0.0
    %778 = vmatprep.subr.mxu0 0.0
    %779 = vmatpush2.msra.mxu0 0.0
    %780 = vmatprep.subr.mxu0 0.0
    %781 = vmatpush2.msra.mxu0 0.0
    %782 = vmatprep.mubr.f32.mxu0 0.0
    %v783 = vand.u32 %v205, 4294901760
    %784 = vmatmul.mubr.f32.gmra.mxu0 %v783
    %v785 = vpop.f32.mrf.mxu0
    %v786 = vadd.f32 %v660, %v785
    %v787 = vpop.f32.mrf.mxu0
    %v788 = vadd.f32 %v662, %v787
    %789 = vdwg.mxu0
    %790 = vmatprep.subr.mxu0 0.0
    %791 = vmatpush1.msra.mxu0 0.0
    %792 = vmatprep.subr.mxu0 0.0
    %793 = vmatpush1.msra.mxu0 0.0
    %794 = vmatprep.subr.mxu0 0.0
    %795 = vmatpush1.msra.mxu0 0.0
    %796 = vmatprep.subr.mxu0 0.0
    %797 = vmatpush1.msra.mxu0 0.0
    %798 = vmatprep.subr.mxu0 0.0
    %799 = vmatpush1.msra.mxu0 0.0
    %800 = vmatprep.subr.mxu0 0.0
    %801 = vmatpush1.msra.mxu0 0.0
    %802 = vmatprep.subr.mxu0 0.0
    %803 = vmatpush1.msra.mxu0 0.0
    %v804 = vand.u32 %v202, 4294901760
    %805 = vmatprep.subr.mxu0 %v804
    %v806 = vand.u32 %v201, 4294901760
    %807 = vmatpush1.msra.mxu0 %v806
    %v808 = vand.u32 %v189, 4294901760
    %809 = vmatprep.subr.mxu0 %v808
    %v810 = vand.u32 %v188, 4294901760
    %811 = vmatpush1.msra.mxu0 %v810
    %v812 = vand.u32 %v176, 4294901760
    %813 = vmatprep.subr.mxu0 %v812
    %v814 = vand.u32 %v175, 4294901760
    %815 = vmatpush1.msra.mxu0 %v814
    %v816 = vand.u32 %v163, 4294901760
    %817 = vmatprep.subr.mxu0 %v816
    %v818 = vand.u32 %v162, 4294901760
    %819 = vmatpush1.msra.mxu0 %v818
    %v820 = vand.u32 %v98, 4294901760
    %821 = vmatprep.subr.mxu0 %v820
    %v822 = vand.u32 %v97, 4294901760
    %823 = vmatpush1.msra.mxu0 %v822
    %v824 = vand.u32 %v150, 4294901760
    %825 = vmatprep.subr.mxu0 %v824
    %v826 = vand.u32 %v149, 4294901760
    %827 = vmatpush1.msra.mxu0 %v826
    %v828 = vand.u32 %v137, 4294901760
    %829 = vmatprep.subr.mxu0 %v828
    %v830 = vand.u32 %v136, 4294901760
    %831 = vmatpush1.msra.mxu0 %v830
    %v832 = vand.u32 %v124, 4294901760
    %833 = vmatprep.subr.mxu0 %v832
    %v834 = vand.u32 %v123, 4294901760
    %835 = vmatpush1.msra.mxu0 %v834
    %v836 = vand.u32 %v111, 4294901760
    %837 = vmatprep.subr.mxu0 %v836
    %v838 = vand.u32 %v110, 4294901760
    %839 = vmatpush1.msra.mxu0 %v838
    %840 = vmatprep.subr.mxu0 0.0
    %841 = vmatpush2.msra.mxu0 0.0
    %842 = vmatprep.subr.mxu0 0.0
    %843 = vmatpush2.msra.mxu0 0.0
    %844 = vmatprep.subr.mxu0 0.0
    %845 = vmatpush2.msra.mxu0 0.0
    %846 = vmatprep.subr.mxu0 0.0
    %847 = vmatpush2.msra.mxu0 0.0
    %848 = vmatprep.subr.mxu0 0.0
    %849 = vmatpush2.msra.mxu0 0.0
    %850 = vmatprep.subr.mxu0 0.0
    %851 = vmatpush2.msra.mxu0 0.0
    %852 = vmatprep.subr.mxu0 0.0
    %853 = vmatpush2.msra.mxu0 0.0
    %854 = vmatprep.subr.mxu0 0.0
    %855 = vmatpush2.msra.mxu0 0.0
    %856 = vmatprep.subr.mxu0 0.0
    %857 = vmatpush2.msra.mxu0 0.0
    %858 = vmatprep.subr.mxu0 0.0
    %859 = vmatpush2.msra.mxu0 0.0
    %860 = vmatprep.subr.mxu0 0.0
    %861 = vmatpush2.msra.mxu0 0.0
    %862 = vmatprep.subr.mxu0 0.0
    %863 = vmatpush2.msra.mxu0 0.0
    %864 = vmatprep.subr.mxu0 0.0
    %865 = vmatpush2.msra.mxu0 0.0
    %866 = vmatprep.subr.mxu0 0.0
    %867 = vmatpush2.msra.mxu0 0.0
    %868 = vmatprep.subr.mxu0 0.0
    %869 = vmatpush2.msra.mxu0 0.0
    %870 = vmatprep.subr.mxu0 0.0
    %871 = vmatpush2.msra.mxu0 0.0
    %872 = vmatprep.mubr.f32.mxu0 0.0
    %v873 = vand.u32 %v205, 4294901760
    %874 = vmatmul.mubr.f32.gmra.mxu0 %v873
    %v875 = vpop.f32.mrf.mxu0
    %v876 = vadd.f32 %v786, %v875
    %v877 = vpop.f32.mrf.mxu0
    %v878 = vadd.f32 %v788, %v877
    %879 = vdwg.mxu0
    %v880 = vadd.f32 %v876, %v878
    %881 = vadd.xlane.f32.xlu0 %v880
    %v882 = vpop.xlane.xlu0 %881
    %v883 = vrcp.pop 256.0
    %v884 = vmul.f32 %v882, %v883
    %v885 = vsub.f32 %v876, %v884
    %v886 = vsub.f32 %v878, %v884
    %v887 = vmul.f32 %v885, %v885
    %v888 = vmul.f32 %v886, %v886
    %v889 = vadd.f32 %v887, %v888
    %890 = vadd.xlane.f32.xlu0 %v889
    %v891 = vpop.xlane.xlu0 %890
    %v892 = vmul.f32 %v891, %v883
    %v893 = vadd.f32 %v892, 1e-05
    %v894 = vrsqrt.pop %v893
    %v895 = vmul.f32 %v885, %v894
    %v896 = vmul.f32 %v886, %v894
    %v897 = vmax.f32 %v895, 0.0
    %v898 = vmax.f32 %v896, 0.0
    %899 = vrot.lane.b32.xlu0 %v897, 17
    %v900 = vpop.permute.xlu0 %899
    %901 = vrot.lane.b32.xlu0 %v898, 17
    %v902 = vpop.permute.xlu0 %901
    %v903 = vsel %vm103, %v900, %v902
    %v904 = vsel %vm103, %v902, %v900
    %v905 = vsel %vm108, %v904, 0.0
    %v906 = vsel %vm109, %v903, 0.0
    %907 = vrot.lane.b32.xlu0 %v897, 16
    %v908 = vpop.permute.xlu0 %907
    %909 = vrot.lane.b32.xlu0 %v898, 16
    %v910 = vpop.permute.xlu0 %909
    %v911 = vsel %vm116, %v908, %v910
    %v912 = vsel %vm116, %v910, %v908
    %v913 = vsel %vm121, %v912, 0.0
    %v914 = vsel %vm122, %v911, 0.0
    %915 = vrot.lane.b32.xlu0 %v897, 15
    %v916 = vpop.permute.xlu0 %915
    %917 = vrot.lane.b32.xlu0 %v898, 15
    %v918 = vpop.permute.xlu0 %917
    %v919 = vsel %vm129, %v916, %v918
    %v920 = vsel %vm129, %v918, %v916
    %v921 = vsel %vm134, %v920, 0.0
    %v922 = vsel %vm135, %v919, 0.0
    %923 = vrot.lane.b32.xlu0 %v897, 1
    %v924 = vpop.permute.xlu0 %923
    %925 = vrot.lane.b32.xlu0 %v898, 1
    %v926 = vpop.permute.xlu0 %925
    %v927 = vsel %vm142, %v924, %v926
    %v928 = vsel %vm142, %v926, %v924
    %v929 = vsel %vm147, %v928, 0.0
    %v930 = vsel %vm148, %v927, 0.0
    %931 = vrot.lane.b32.xlu0 %v897, 127
    %v932 = vpop.permute.xlu0 %931
    %933 = vrot.lane.b32.xlu0 %v898, 127
    %v934 = vpop.permute.xlu0 %933
    %v935 = vsel %vm155, %v932, %v934
    %v936 = vsel %vm155, %v934, %v932
    %v937 = vsel %vm160, %v935, 0.0
    %v938 = vsel %vm161, %v936, 0.0
    %939 = vrot.lane.b32.xlu0 %v897, 113
    %v940 = vpop.permute.xlu0 %939
    %941 = vrot.lane.b32.xlu0 %v898, 113
    %v942 = vpop.permute.xlu0 %941
    %v943 = vsel %vm168, %v940, %v942
    %v944 = vsel %vm168, %v942, %v940
    %v945 = vsel %vm173, %v943, 0.0
    %v946 = vsel %vm174, %v944, 0.0
    %947 = vrot.lane.b32.xlu0 %v897, 112
    %v948 = vpop.permute.xlu0 %947
    %949 = vrot.lane.b32.xlu0 %v898, 112
    %v950 = vpop.permute.xlu0 %949
    %v951 = vsel %vm181, %v948, %v950
    %v952 = vsel %vm181, %v950, %v948
    %v953 = vsel %vm186, %v951, 0.0
    %v954 = vsel %vm187, %v952, 0.0
    %955 = vrot.lane.b32.xlu0 %v897, 111
    %v956 = vpop.permute.xlu0 %955
    %957 = vrot.lane.b32.xlu0 %v898, 111
    %v958 = vpop.permute.xlu0 %957
    %v959 = vsel %vm194, %v956, %v958
    %v960 = vsel %vm194, %v958, %v956
    %v961 = vsel %vm199, %v959, 0.0
    %v962 = vsel %vm200, %v960, 0.0
    %v964 = vsel %vm203, %v96, 0
    %966 = vmatprep.subr.mxu0 0.0
    %967 = vmatpush1.msra.mxu0 0.0
    %968 = vmatprep.subr.mxu0 0.0
    %969 = vmatpush1.msra.mxu0 0.0
    %970 = vmatprep.subr.mxu0 0.0
    %971 = vmatpush1.msra.mxu0 0.0
    %972 = vmatprep.subr.mxu0 0.0
    %973 = vmatpush1.msra.mxu0 0.0
    %974 = vmatprep.subr.mxu0 0.0
    %975 = vmatpush1.msra.mxu0 0.0
    %976 = vmatprep.subr.mxu0 0.0
    %977 = vmatpush1.msra.mxu0 0.0
    %978 = vmatprep.subr.mxu0 0.0
    %979 = vmatpush1.msra.mxu0 0.0
    %v980 = vand.u32 %v962, 4294901760
    %981 = vmatprep.subr.mxu0 %v980
    %v982 = vand.u32 %v961, 4294901760
    %983 = vmatpush1.msra.mxu0 %v982
    %v984 = vand.u32 %v954, 4294901760
    %985 = vmatprep.subr.mxu0 %v984
    %v986 = vand.u32 %v953, 4294901760
    %987 = vmatpush1.msra.mxu0 %v986
    %v988 = vand.u32 %v946, 4294901760
    %989 = vmatprep.subr.mxu0 %v988
    %v990 = vand.u32 %v945, 4294901760
    %991 = vmatpush1.msra.mxu0 %v990
    %v992 = vand.u32 %v938, 4294901760
    %993 = vmatprep.subr.mxu0 %v992
    %v994 = vand.u32 %v937, 4294901760
    %995 = vmatpush1.msra.mxu0 %v994
    %v996 = vand.u32 %v898, 4294901760
    %997 = vmatprep.subr.mxu0 %v996
    %v998 = vand.u32 %v897, 4294901760
    %999 = vmatpush1.msra.mxu0 %v998
    %v1000 = vand.u32 %v930, 4294901760
    %1001 = vmatprep.subr.mxu0 %v1000
    %v1002 = vand.u32 %v929, 4294901760
    %1003 = vmatpush1.msra.mxu0 %v1002
    %v1004 = vand.u32 %v922, 4294901760
    %1005 = vmatprep.subr.mxu0 %v1004
    %v1006 = vand.u32 %v921, 4294901760
    %1007 = vmatpush1.msra.mxu0 %v1006
    %v1008 = vand.u32 %v914, 4294901760
    %1009 = vmatprep.subr.mxu0 %v1008
    %v1010 = vand.u32 %v913, 4294901760
    %1011 = vmatpush1.msra.mxu0 %v1010
    %v1012 = vand.u32 %v906, 4294901760
    %1013 = vmatprep.subr.mxu0 %v1012
    %v1014 = vand.u32 %v905, 4294901760
    %1015 = vmatpush1.msra.mxu0 %v1014
    %1016 = vmatprep.subr.mxu0 0.0
    %1017 = vmatpush2.msra.mxu0 0.0
    %1018 = vmatprep.subr.mxu0 0.0
    %1019 = vmatpush2.msra.mxu0 0.0
    %1020 = vmatprep.subr.mxu0 0.0
    %1021 = vmatpush2.msra.mxu0 0.0
    %1022 = vmatprep.subr.mxu0 0.0
    %1023 = vmatpush2.msra.mxu0 0.0
    %1024 = vmatprep.subr.mxu0 0.0
    %1025 = vmatpush2.msra.mxu0 0.0
    %1026 = vmatprep.subr.mxu0 0.0
    %1027 = vmatpush2.msra.mxu0 0.0
    %1028 = vmatprep.subr.mxu0 0.0
    %1029 = vmatpush2.msra.mxu0 0.0
    %1030 = vmatprep.subr.mxu0 0.0
    %1031 = vmatpush2.msra.mxu0 0.0
    %1032 = vmatprep.subr.mxu0 0.0
    %1033 = vmatpush2.msra.mxu0 0.0
    %1034 = vmatprep.subr.mxu0 0.0
    %1035 = vmatpush2.msra.mxu0 0.0
    %1036 = vmatprep.subr.mxu0 0.0
    %1037 = vmatpush2.msra.mxu0 0.0
    %1038 = vmatprep.subr.mxu0 0.0
    %1039 = vmatpush2.msra.mxu0 0.0
    %1040 = vmatprep.subr.mxu0 0.0
    %1041 = vmatpush2.msra.mxu0 0.0
    %1042 = vmatprep.subr.mxu0 0.0
    %1043 = vmatpush2.msra.mxu0 0.0
    %1044 = vmatprep.subr.mxu0 0.0
    %1045 = vmatpush2.msra.mxu0 0.0
    %1046 = vmatprep.subr.mxu0 0.0
    %1047 = vmatpush2.msra.mxu0 0.0
    %1048 = vmatprep.mubr.f32.mxu0 0.0
    %v1049 = vand.u32 %v964, 4294901760
    %v1050 = vsub.f32 %v964, %v1049
    %v1051 = vand.u32 %v1050, 4294901760
    %v1052 = vsub.f32 %v1050, %v1051
    %v1053 = vand.u32 %v1052, 4294901760
    %1054 = vmatmul.mubr.f32.gmra.mxu0 %v1053
    %v1055 = vpop.f32.mrf.mxu0
    %v1056 = vadd.f32 0.0, %v1055
    %v1057 = vpop.f32.mrf.mxu0
    %v1058 = vadd.f32 0.0, %v1057
    %1059 = vdwg.mxu0
    %1060 = vmatprep.subr.mxu0 0.0
    %1061 = vmatpush1.msra.mxu0 0.0
    %1062 = vmatprep.subr.mxu0 0.0
    %1063 = vmatpush1.msra.mxu0 0.0
    %1064 = vmatprep.subr.mxu0 0.0
    %1065 = vmatpush1.msra.mxu0 0.0
    %1066 = vmatprep.subr.mxu0 0.0
    %1067 = vmatpush1.msra.mxu0 0.0
    %1068 = vmatprep.subr.mxu0 0.0
    %1069 = vmatpush1.msra.mxu0 0.0
    %1070 = vmatprep.subr.mxu0 0.0
    %1071 = vmatpush1.msra.mxu0 0.0
    %1072 = vmatprep.subr.mxu0 0.0
    %1073 = vmatpush1.msra.mxu0 0.0
    %v1074 = vand.u32 %v962, 4294901760
    %v1075 = vsub.f32 %v962, %v1074
    %v1076 = vand.u32 %v1075, 4294901760
    %v1077 = vsub.f32 %v1075, %v1076
    %v1078 = vand.u32 %v1077, 4294901760
    %1079 = vmatprep.subr.mxu0 %v1078
    %v1080 = vand.u32 %v961, 4294901760
    %v1081 = vsub.f32 %v961, %v1080
    %v1082 = vand.u32 %v1081, 4294901760
    %v1083 = vsub.f32 %v1081, %v1082
    %v1084 = vand.u32 %v1083, 4294901760
    %1085 = vmatpush1.msra.mxu0 %v1084
    %v1086 = vand.u32 %v954, 4294901760
    %v1087 = vsub.f32 %v954, %v1086
    %v1088 = vand.u32 %v1087, 4294901760
    %v1089 = vsub.f32 %v1087, %v1088
    %v1090 = vand.u32 %v1089, 4294901760
    %1091 = vmatprep.subr.mxu0 %v1090
    %v1092 = vand.u32 %v953, 4294901760
    %v1093 = vsub.f32 %v953, %v1092
    %v1094 = vand.u32 %v1093, 4294901760
    %v1095 = vsub.f32 %v1093, %v1094
    %v1096 = vand.u32 %v1095, 4294901760
    %1097 = vmatpush1.msra.mxu0 %v1096
    %v1098 = vand.u32 %v946, 4294901760
    %v1099 = vsub.f32 %v946, %v1098
    %v1100 = vand.u32 %v1099, 4294901760
    %v1101 = vsub.f32 %v1099, %v1100
    %v1102 = vand.u32 %v1101, 4294901760
    %1103 = vmatprep.subr.mxu0 %v1102
    %v1104 = vand.u32 %v945, 4294901760
    %v1105 = vsub.f32 %v945, %v1104
    %v1106 = vand.u32 %v1105, 4294901760
    %v1107 = vsub.f32 %v1105, %v1106
    %v1108 = vand.u32 %v1107, 4294901760
    %1109 = vmatpush1.msra.mxu0 %v1108
    %v1110 = vand.u32 %v938, 4294901760
    %v1111 = vsub.f32 %v938, %v1110
    %v1112 = vand.u32 %v1111, 4294901760
    %v1113 = vsub.f32 %v1111, %v1112
    %v1114 = vand.u32 %v1113, 4294901760
    %1115 = vmatprep.subr.mxu0 %v1114
    %v1116 = vand.u32 %v937, 4294901760
    %v1117 = vsub.f32 %v937, %v1116
    %v1118 = vand.u32 %v1117, 4294901760
    %v1119 = vsub.f32 %v1117, %v1118
    %v1120 = vand.u32 %v1119, 4294901760
    %1121 = vmatpush1.msra.mxu0 %v1120
    %v1122 = vand.u32 %v898, 4294901760
    %v1123 = vsub.f32 %v898, %v1122
    %v1124 = vand.u32 %v1123, 4294901760
    %v1125 = vsub.f32 %v1123, %v1124
    %v1126 = vand.u32 %v1125, 4294901760
    %1127 = vmatprep.subr.mxu0 %v1126
    %v1128 = vand.u32 %v897, 4294901760
    %v1129 = vsub.f32 %v897, %v1128
    %v1130 = vand.u32 %v1129, 4294901760
    %v1131 = vsub.f32 %v1129, %v1130
    %v1132 = vand.u32 %v1131, 4294901760
    %1133 = vmatpush1.msra.mxu0 %v1132
    %v1134 = vand.u32 %v930, 4294901760
    %v1135 = vsub.f32 %v930, %v1134
    %v1136 = vand.u32 %v1135, 4294901760
    %v1137 = vsub.f32 %v1135, %v1136
    %v1138 = vand.u32 %v1137, 4294901760
    %1139 = vmatprep.subr.mxu0 %v1138
    %v1140 = vand.u32 %v929, 4294901760
    %v1141 = vsub.f32 %v929, %v1140
    %v1142 = vand.u32 %v1141, 4294901760
    %v1143 = vsub.f32 %v1141, %v1142
    %v1144 = vand.u32 %v1143, 4294901760
    %1145 = vmatpush1.msra.mxu0 %v1144
    %v1146 = vand.u32 %v922, 4294901760
    %v1147 = vsub.f32 %v922, %v1146
    %v1148 = vand.u32 %v1147, 4294901760
    %v1149 = vsub.f32 %v1147, %v1148
    %v1150 = vand.u32 %v1149, 4294901760
    %1151 = vmatprep.subr.mxu0 %v1150
    %v1152 = vand.u32 %v921, 4294901760
    %v1153 = vsub.f32 %v921, %v1152
    %v1154 = vand.u32 %v1153, 4294901760
    %v1155 = vsub.f32 %v1153, %v1154
    %v1156 = vand.u32 %v1155, 4294901760
    %1157 = vmatpush1.msra.mxu0 %v1156
    %v1158 = vand.u32 %v914, 4294901760
    %v1159 = vsub.f32 %v914, %v1158
    %v1160 = vand.u32 %v1159, 4294901760
    %v1161 = vsub.f32 %v1159, %v1160
    %v1162 = vand.u32 %v1161, 4294901760
    %1163 = vmatprep.subr.mxu0 %v1162
    %v1164 = vand.u32 %v913, 4294901760
    %v1165 = vsub.f32 %v913, %v1164
    %v1166 = vand.u32 %v1165, 4294901760
    %v1167 = vsub.f32 %v1165, %v1166
    %v1168 = vand.u32 %v1167, 4294901760
    %1169 = vmatpush1.msra.mxu0 %v1168
    %v1170 = vand.u32 %v906, 4294901760
    %v1171 = vsub.f32 %v906, %v1170
    %v1172 = vand.u32 %v1171, 4294901760
    %v1173 = vsub.f32 %v1171, %v1172
    %v1174 = vand.u32 %v1173, 4294901760
    %1175 = vmatprep.subr.mxu0 %v1174
    %v1176 = vand.u32 %v905, 4294901760
    %v1177 = vsub.f32 %v905, %v1176
    %v1178 = vand.u32 %v1177, 4294901760
    %v1179 = vsub.f32 %v1177, %v1178
    %v1180 = vand.u32 %v1179, 4294901760
    %1181 = vmatpush1.msra.mxu0 %v1180
    %1182 = vmatprep.subr.mxu0 0.0
    %1183 = vmatpush2.msra.mxu0 0.0
    %1184 = vmatprep.subr.mxu0 0.0
    %1185 = vmatpush2.msra.mxu0 0.0
    %1186 = vmatprep.subr.mxu0 0.0
    %1187 = vmatpush2.msra.mxu0 0.0
    %1188 = vmatprep.subr.mxu0 0.0
    %1189 = vmatpush2.msra.mxu0 0.0
    %1190 = vmatprep.subr.mxu0 0.0
    %1191 = vmatpush2.msra.mxu0 0.0
    %1192 = vmatprep.subr.mxu0 0.0
    %1193 = vmatpush2.msra.mxu0 0.0
    %1194 = vmatprep.subr.mxu0 0.0
    %1195 = vmatpush2.msra.mxu0 0.0
    %1196 = vmatprep.subr.mxu0 0.0
    %1197 = vmatpush2.msra.mxu0 0.0
    %1198 = vmatprep.subr.mxu0 0.0
    %1199 = vmatpush2.msra.mxu0 0.0
    %1200 = vmatprep.subr.mxu0 0.0
    %1201 = vmatpush2.msra.mxu0 0.0
    %1202 = vmatprep.subr.mxu0 0.0
    %1203 = vmatpush2.msra.mxu0 0.0
    %1204 = vmatprep.subr.mxu0 0.0
    %1205 = vmatpush2.msra.mxu0 0.0
    %1206 = vmatprep.subr.mxu0 0.0
    %1207 = vmatpush2.msra.mxu0 0.0
    %1208 = vmatprep.subr.mxu0 0.0
    %1209 = vmatpush2.msra.mxu0 0.0
    %1210 = vmatprep.subr.mxu0 0.0
    %1211 = vmatpush2.msra.mxu0 0.0
    %1212 = vmatprep.subr.mxu0 0.0
    %1213 = vmatpush2.msra.mxu0 0.0
    %1214 = vmatprep.mubr.f32.mxu0 0.0
    %v1215 = vand.u32 %v964, 4294901760
    %1216 = vmatmul.mubr.f32.gmra.mxu0 %v1215
    %v1217 = vpop.f32.mrf.mxu0
    %v1218 = vadd.f32 %v1056, %v1217
    %v1219 = vpop.f32.mrf.mxu0
    %v1220 = vadd.f32 %v1058, %v1219
    %1221 = vdwg.mxu0
    %1222 = vmatprep.subr.mxu0 0.0
    %1223 = vmatpush1.msra.mxu0 0.0
    %1224 = vmatprep.subr.mxu0 0.0
    %1225 = vmatpush1.msra.mxu0 0.0
    %1226 = vmatprep.subr.mxu0 0.0
    %1227 = vmatpush1.msra.mxu0 0.0
    %1228 = vmatprep.subr.mxu0 0.0
    %1229 = vmatpush1.msra.mxu0 0.0
    %1230 = vmatprep.subr.mxu0 0.0
    %1231 = vmatpush1.msra.mxu0 0.0
    %1232 = vmatprep.subr.mxu0 0.0
    %1233 = vmatpush1.msra.mxu0 0.0
    %1234 = vmatprep.subr.mxu0 0.0
    %1235 = vmatpush1.msra.mxu0 0.0
    %v1236 = vand.u32 %v962, 4294901760
    %v1237 = vsub.f32 %v962, %v1236
    %1238 = vmatprep.subr.mxu0 %v1237
    %v1239 = vand.u32 %v961, 4294901760
    %v1240 = vsub.f32 %v961, %v1239
    %1241 = vmatpush1.msra.mxu0 %v1240
    %v1242 = vand.u32 %v954, 4294901760
    %v1243 = vsub.f32 %v954, %v1242
    %1244 = vmatprep.subr.mxu0 %v1243
    %v1245 = vand.u32 %v953, 4294901760
    %v1246 = vsub.f32 %v953, %v1245
    %1247 = vmatpush1.msra.mxu0 %v1246
    %v1248 = vand.u32 %v946, 4294901760
    %v1249 = vsub.f32 %v946, %v1248
    %1250 = vmatprep.subr.mxu0 %v1249
    %v1251 = vand.u32 %v945, 4294901760
    %v1252 = vsub.f32 %v945, %v1251
    %1253 = vmatpush1.msra.mxu0 %v1252
    %v1254 = vand.u32 %v938, 4294901760
    %v1255 = vsub.f32 %v938, %v1254
    %1256 = vmatprep.subr.mxu0 %v1255
    %v1257 = vand.u32 %v937, 4294901760
    %v1258 = vsub.f32 %v937, %v1257
    %1259 = vmatpush1.msra.mxu0 %v1258
    %v1260 = vand.u32 %v898, 4294901760
    %v1261 = vsub.f32 %v898, %v1260
    %1262 = vmatprep.subr.mxu0 %v1261
    %v1263 = vand.u32 %v897, 4294901760
    %v1264 = vsub.f32 %v897, %v1263
    %1265 = vmatpush1.msra.mxu0 %v1264
    %v1266 = vand.u32 %v930, 4294901760
    %v1267 = vsub.f32 %v930, %v1266
    %1268 = vmatprep.subr.mxu0 %v1267
    %v1269 = vand.u32 %v929, 4294901760
    %v1270 = vsub.f32 %v929, %v1269
    %1271 = vmatpush1.msra.mxu0 %v1270
    %v1272 = vand.u32 %v922, 4294901760
    %v1273 = vsub.f32 %v922, %v1272
    %1274 = vmatprep.subr.mxu0 %v1273
    %v1275 = vand.u32 %v921, 4294901760
    %v1276 = vsub.f32 %v921, %v1275
    %1277 = vmatpush1.msra.mxu0 %v1276
    %v1278 = vand.u32 %v914, 4294901760
    %v1279 = vsub.f32 %v914, %v1278
    %1280 = vmatprep.subr.mxu0 %v1279
    %v1281 = vand.u32 %v913, 4294901760
    %v1282 = vsub.f32 %v913, %v1281
    %1283 = vmatpush1.msra.mxu0 %v1282
    %v1284 = vand.u32 %v906, 4294901760
    %v1285 = vsub.f32 %v906, %v1284
    %1286 = vmatprep.subr.mxu0 %v1285
    %v1287 = vand.u32 %v905, 4294901760
    %v1288 = vsub.f32 %v905, %v1287
    %1289 = vmatpush1.msra.mxu0 %v1288
    %1290 = vmatprep.subr.mxu0 0.0
    %1291 = vmatpush2.msra.mxu0 0.0
    %1292 = vmatprep.subr.mxu0 0.0
    %1293 = vmatpush2.msra.mxu0 0.0
    %1294 = vmatprep.subr.mxu0 0.0
    %1295 = vmatpush2.msra.mxu0 0.0
    %1296 = vmatprep.subr.mxu0 0.0
    %1297 = vmatpush2.msra.mxu0 0.0
    %1298 = vmatprep.subr.mxu0 0.0
    %1299 = vmatpush2.msra.mxu0 0.0
    %1300 = vmatprep.subr.mxu0 0.0
    %1301 = vmatpush2.msra.mxu0 0.0
    %1302 = vmatprep.subr.mxu0 0.0
    %1303 = vmatpush2.msra.mxu0 0.0
    %1304 = vmatprep.subr.mxu0 0.0
    %1305 = vmatpush2.msra.mxu0 0.0
    %1306 = vmatprep.subr.mxu0 0.0
    %1307 = vmatpush2.msra.mxu0 0.0
    %1308 = vmatprep.subr.mxu0 0.0
    %1309 = vmatpush2.msra.mxu0 0.0
    %1310 = vmatprep.subr.mxu0 0.0
    %1311 = vmatpush2.msra.mxu0 0.0
    %1312 = vmatprep.subr.mxu0 0.0
    %1313 = vmatpush2.msra.mxu0 0.0
    %1314 = vmatprep.subr.mxu0 0.0
    %1315 = vmatpush2.msra.mxu0 0.0
    %1316 = vmatprep.subr.mxu0 0.0
    %1317 = vmatpush2.msra.mxu0 0.0
    %1318 = vmatprep.subr.mxu0 0.0
    %1319 = vmatpush2.msra.mxu0 0.0
    %1320 = vmatprep.subr.mxu0 0.0
    %1321 = vmatpush2.msra.mxu0 0.0
    %1322 = vmatprep.mubr.f32.mxu0 0.0
    %v1323 = vand.u32 %v964, 4294901760
    %v1324 = vsub.f32 %v964, %v1323
    %1325 = vmatmul.mubr.f32.gmra.mxu0 %v1324
    %v1326 = vpop.f32.mrf.mxu0
    %v1327 = vadd.f32 %v1218, %v1326
    %v1328 = vpop.f32.mrf.mxu0
    %v1329 = vadd.f32 %v1220, %v1328
    %1330 = vdwg.mxu0
    %1331 = vmatprep.subr.mxu0 0.0
    %1332 = vmatpush1.msra.mxu0 0.0
    %1333 = vmatprep.subr.mxu0 0.0
    %1334 = vmatpush1.msra.mxu0 0.0
    %1335 = vmatprep.subr.mxu0 0.0
    %1336 = vmatpush1.msra.mxu0 0.0
    %1337 = vmatprep.subr.mxu0 0.0
    %1338 = vmatpush1.msra.mxu0 0.0
    %1339 = vmatprep.subr.mxu0 0.0
    %1340 = vmatpush1.msra.mxu0 0.0
    %1341 = vmatprep.subr.mxu0 0.0
    %1342 = vmatpush1.msra.mxu0 0.0
    %1343 = vmatprep.subr.mxu0 0.0
    %1344 = vmatpush1.msra.mxu0 0.0
    %v1345 = vand.u32 %v962, 4294901760
    %1346 = vmatprep.subr.mxu0 %v1345
    %v1347 = vand.u32 %v961, 4294901760
    %1348 = vmatpush1.msra.mxu0 %v1347
    %v1349 = vand.u32 %v954, 4294901760
    %1350 = vmatprep.subr.mxu0 %v1349
    %v1351 = vand.u32 %v953, 4294901760
    %1352 = vmatpush1.msra.mxu0 %v1351
    %v1353 = vand.u32 %v946, 4294901760
    %1354 = vmatprep.subr.mxu0 %v1353
    %v1355 = vand.u32 %v945, 4294901760
    %1356 = vmatpush1.msra.mxu0 %v1355
    %v1357 = vand.u32 %v938, 4294901760
    %1358 = vmatprep.subr.mxu0 %v1357
    %v1359 = vand.u32 %v937, 4294901760
    %1360 = vmatpush1.msra.mxu0 %v1359
    %v1361 = vand.u32 %v898, 4294901760
    %1362 = vmatprep.subr.mxu0 %v1361
    %v1363 = vand.u32 %v897, 4294901760
    %1364 = vmatpush1.msra.mxu0 %v1363
    %v1365 = vand.u32 %v930, 4294901760
    %1366 = vmatprep.subr.mxu0 %v1365
    %v1367 = vand.u32 %v929, 4294901760
    %1368 = vmatpush1.msra.mxu0 %v1367
    %v1369 = vand.u32 %v922, 4294901760
    %1370 = vmatprep.subr.mxu0 %v1369
    %v1371 = vand.u32 %v921, 4294901760
    %1372 = vmatpush1.msra.mxu0 %v1371
    %v1373 = vand.u32 %v914, 4294901760
    %1374 = vmatprep.subr.mxu0 %v1373
    %v1375 = vand.u32 %v913, 4294901760
    %1376 = vmatpush1.msra.mxu0 %v1375
    %v1377 = vand.u32 %v906, 4294901760
    %1378 = vmatprep.subr.mxu0 %v1377
    %v1379 = vand.u32 %v905, 4294901760
    %1380 = vmatpush1.msra.mxu0 %v1379
    %1381 = vmatprep.subr.mxu0 0.0
    %1382 = vmatpush2.msra.mxu0 0.0
    %1383 = vmatprep.subr.mxu0 0.0
    %1384 = vmatpush2.msra.mxu0 0.0
    %1385 = vmatprep.subr.mxu0 0.0
    %1386 = vmatpush2.msra.mxu0 0.0
    %1387 = vmatprep.subr.mxu0 0.0
    %1388 = vmatpush2.msra.mxu0 0.0
    %1389 = vmatprep.subr.mxu0 0.0
    %1390 = vmatpush2.msra.mxu0 0.0
    %1391 = vmatprep.subr.mxu0 0.0
    %1392 = vmatpush2.msra.mxu0 0.0
    %1393 = vmatprep.subr.mxu0 0.0
    %1394 = vmatpush2.msra.mxu0 0.0
    %1395 = vmatprep.subr.mxu0 0.0
    %1396 = vmatpush2.msra.mxu0 0.0
    %1397 = vmatprep.subr.mxu0 0.0
    %1398 = vmatpush2.msra.mxu0 0.0
    %1399 = vmatprep.subr.mxu0 0.0
    %1400 = vmatpush2.msra.mxu0 0.0
    %1401 = vmatprep.subr.mxu0 0.0
    %1402 = vmatpush2.msra.mxu0 0.0
    %1403 = vmatprep.subr.mxu0 0.0
    %1404 = vmatpush2.msra.mxu0 0.0
    %1405 = vmatprep.subr.mxu0 0.0
    %1406 = vmatpush2.msra.mxu0 0.0
    %1407 = vmatprep.subr.mxu0 0.0
    %1408 = vmatpush2.msra.mxu0 0.0
    %1409 = vmatprep.subr.mxu0 0.0
    %1410 = vmatpush2.msra.mxu0 0.0
    %1411 = vmatprep.subr.mxu0 0.0
    %1412 = vmatpush2.msra.mxu0 0.0
    %1413 = vmatprep.mubr.f32.mxu0 0.0
    %v1414 = vand.u32 %v964, 4294901760
    %v1415 = vsub.f32 %v964, %v1414
    %v1416 = vand.u32 %v1415, 4294901760
    %1417 = vmatmul.mubr.f32.gmra.mxu0 %v1416
    %v1418 = vpop.f32.mrf.mxu0
    %v1419 = vadd.f32 %v1327, %v1418
    %v1420 = vpop.f32.mrf.mxu0
    %v1421 = vadd.f32 %v1329, %v1420
    %1422 = vdwg.mxu0
    %1423 = vmatprep.subr.mxu0 0.0
    %1424 = vmatpush1.msra.mxu0 0.0
    %1425 = vmatprep.subr.mxu0 0.0
    %1426 = vmatpush1.msra.mxu0 0.0
    %1427 = vmatprep.subr.mxu0 0.0
    %1428 = vmatpush1.msra.mxu0 0.0
    %1429 = vmatprep.subr.mxu0 0.0
    %1430 = vmatpush1.msra.mxu0 0.0
    %1431 = vmatprep.subr.mxu0 0.0
    %1432 = vmatpush1.msra.mxu0 0.0
    %1433 = vmatprep.subr.mxu0 0.0
    %1434 = vmatpush1.msra.mxu0 0.0
    %1435 = vmatprep.subr.mxu0 0.0
    %1436 = vmatpush1.msra.mxu0 0.0
    %v1437 = vand.u32 %v962, 4294901760
    %v1438 = vsub.f32 %v962, %v1437
    %v1439 = vand.u32 %v1438, 4294901760
    %1440 = vmatprep.subr.mxu0 %v1439
    %v1441 = vand.u32 %v961, 4294901760
    %v1442 = vsub.f32 %v961, %v1441
    %v1443 = vand.u32 %v1442, 4294901760
    %1444 = vmatpush1.msra.mxu0 %v1443
    %v1445 = vand.u32 %v954, 4294901760
    %v1446 = vsub.f32 %v954, %v1445
    %v1447 = vand.u32 %v1446, 4294901760
    %1448 = vmatprep.subr.mxu0 %v1447
    %v1449 = vand.u32 %v953, 4294901760
    %v1450 = vsub.f32 %v953, %v1449
    %v1451 = vand.u32 %v1450, 4294901760
    %1452 = vmatpush1.msra.mxu0 %v1451
    %v1453 = vand.u32 %v946, 4294901760
    %v1454 = vsub.f32 %v946, %v1453
    %v1455 = vand.u32 %v1454, 4294901760
    %1456 = vmatprep.subr.mxu0 %v1455
    %v1457 = vand.u32 %v945, 4294901760
    %v1458 = vsub.f32 %v945, %v1457
    %v1459 = vand.u32 %v1458, 4294901760
    %1460 = vmatpush1.msra.mxu0 %v1459
    %v1461 = vand.u32 %v938, 4294901760
    %v1462 = vsub.f32 %v938, %v1461
    %v1463 = vand.u32 %v1462, 4294901760
    %1464 = vmatprep.subr.mxu0 %v1463
    %v1465 = vand.u32 %v937, 4294901760
    %v1466 = vsub.f32 %v937, %v1465
    %v1467 = vand.u32 %v1466, 4294901760
    %1468 = vmatpush1.msra.mxu0 %v1467
    %v1469 = vand.u32 %v898, 4294901760
    %v1470 = vsub.f32 %v898, %v1469
    %v1471 = vand.u32 %v1470, 4294901760
    %1472 = vmatprep.subr.mxu0 %v1471
    %v1473 = vand.u32 %v897, 4294901760
    %v1474 = vsub.f32 %v897, %v1473
    %v1475 = vand.u32 %v1474, 4294901760
    %1476 = vmatpush1.msra.mxu0 %v1475
    %v1477 = vand.u32 %v930, 4294901760
    %v1478 = vsub.f32 %v930, %v1477
    %v1479 = vand.u32 %v1478, 4294901760
    %1480 = vmatprep.subr.mxu0 %v1479
    %v1481 = vand.u32 %v929, 4294901760
    %v1482 = vsub.f32 %v929, %v1481
    %v1483 = vand.u32 %v1482, 4294901760
    %1484 = vmatpush1.msra.mxu0 %v1483
    %v1485 = vand.u32 %v922, 4294901760
    %v1486 = vsub.f32 %v922, %v1485
    %v1487 = vand.u32 %v1486, 4294901760
    %1488 = vmatprep.subr.mxu0 %v1487
    %v1489 = vand.u32 %v921, 4294901760
    %v1490 = vsub.f32 %v921, %v1489
    %v1491 = vand.u32 %v1490, 4294901760
    %1492 = vmatpush1.msra.mxu0 %v1491
    %v1493 = vand.u32 %v914, 4294901760
    %v1494 = vsub.f32 %v914, %v1493
    %v1495 = vand.u32 %v1494, 4294901760
    %1496 = vmatprep.subr.mxu0 %v1495
    %v1497 = vand.u32 %v913, 4294901760
    %v1498 = vsub.f32 %v913, %v1497
    %v1499 = vand.u32 %v1498, 4294901760
    %1500 = vmatpush1.msra.mxu0 %v1499
    %v1501 = vand.u32 %v906, 4294901760
    %v1502 = vsub.f32 %v906, %v1501
    %v1503 = vand.u32 %v1502, 4294901760
    %1504 = vmatprep.subr.mxu0 %v1503
    %v1505 = vand.u32 %v905, 4294901760
    %v1506 = vsub.f32 %v905, %v1505
    %v1507 = vand.u32 %v1506, 4294901760
    %1508 = vmatpush1.msra.mxu0 %v1507
    %1509 = vmatprep.subr.mxu0 0.0
    %1510 = vmatpush2.msra.mxu0 0.0
    %1511 = vmatprep.subr.mxu0 0.0
    %1512 = vmatpush2.msra.mxu0 0.0
    %1513 = vmatprep.subr.mxu0 0.0
    %1514 = vmatpush2.msra.mxu0 0.0
    %1515 = vmatprep.subr.mxu0 0.0
    %1516 = vmatpush2.msra.mxu0 0.0
    %1517 = vmatprep.subr.mxu0 0.0
    %1518 = vmatpush2.msra.mxu0 0.0
    %1519 = vmatprep.subr.mxu0 0.0
    %1520 = vmatpush2.msra.mxu0 0.0
    %1521 = vmatprep.subr.mxu0 0.0
    %1522 = vmatpush2.msra.mxu0 0.0
    %1523 = vmatprep.subr.mxu0 0.0
    %1524 = vmatpush2.msra.mxu0 0.0
    %1525 = vmatprep.subr.mxu0 0.0
    %1526 = vmatpush2.msra.mxu0 0.0
    %1527 = vmatprep.subr.mxu0 0.0
    %1528 = vmatpush2.msra.mxu0 0.0
    %1529 = vmatprep.subr.mxu0 0.0
    %1530 = vmatpush2.msra.mxu0 0.0
    %1531 = vmatprep.subr.mxu0 0.0
    %1532 = vmatpush2.msra.mxu0 0.0
    %1533 = vmatprep.subr.mxu0 0.0
    %1534 = vmatpush2.msra.mxu0 0.0
    %1535 = vmatprep.subr.mxu0 0.0
    %1536 = vmatpush2.msra.mxu0 0.0
    %1537 = vmatprep.subr.mxu0 0.0
    %1538 = vmatpush2.msra.mxu0 0.0
    %1539 = vmatprep.subr.mxu0 0.0
    %1540 = vmatpush2.msra.mxu0 0.0
    %1541 = vmatprep.mubr.f32.mxu0 0.0
    %v1542 = vand.u32 %v964, 4294901760
    %1543 = vmatmul.mubr.f32.gmra.mxu0 %v1542
    %v1544 = vpop.f32.mrf.mxu0
    %v1545 = vadd.f32 %v1419, %v1544
    %v1546 = vpop.f32.mrf.mxu0
    %v1547 = vadd.f32 %v1421, %v1546
    %1548 = vdwg.mxu0
    %1549 = vmatprep.subr.mxu0 0.0
    %1550 = vmatpush1.msra.mxu0 0.0
    %1551 = vmatprep.subr.mxu0 0.0
    %1552 = vmatpush1.msra.mxu0 0.0
    %1553 = vmatprep.subr.mxu0 0.0
    %1554 = vmatpush1.msra.mxu0 0.0
    %1555 = vmatprep.subr.mxu0 0.0
    %1556 = vmatpush1.msra.mxu0 0.0
    %1557 = vmatprep.subr.mxu0 0.0
    %1558 = vmatpush1.msra.mxu0 0.0
    %1559 = vmatprep.subr.mxu0 0.0
    %1560 = vmatpush1.msra.mxu0 0.0
    %1561 = vmatprep.subr.mxu0 0.0
    %1562 = vmatpush1.msra.mxu0 0.0
    %v1563 = vand.u32 %v962, 4294901760
    %1564 = vmatprep.subr.mxu0 %v1563
    %v1565 = vand.u32 %v961, 4294901760
    %1566 = vmatpush1.msra.mxu0 %v1565
    %v1567 = vand.u32 %v954, 4294901760
    %1568 = vmatprep.subr.mxu0 %v1567
    %v1569 = vand.u32 %v953, 4294901760
    %1570 = vmatpush1.msra.mxu0 %v1569
    %v1571 = vand.u32 %v946, 4294901760
    %1572 = vmatprep.subr.mxu0 %v1571
    %v1573 = vand.u32 %v945, 4294901760
    %1574 = vmatpush1.msra.mxu0 %v1573
    %v1575 = vand.u32 %v938, 4294901760
    %1576 = vmatprep.subr.mxu0 %v1575
    %v1577 = vand.u32 %v937, 4294901760
    %1578 = vmatpush1.msra.mxu0 %v1577
    %v1579 = vand.u32 %v898, 4294901760
    %1580 = vmatprep.subr.mxu0 %v1579
    %v1581 = vand.u32 %v897, 4294901760
    %1582 = vmatpush1.msra.mxu0 %v1581
    %v1583 = vand.u32 %v930, 4294901760
    %1584 = vmatprep.subr.mxu0 %v1583
    %v1585 = vand.u32 %v929, 4294901760
    %1586 = vmatpush1.msra.mxu0 %v1585
    %v1587 = vand.u32 %v922, 4294901760
    %1588 = vmatprep.subr.mxu0 %v1587
    %v1589 = vand.u32 %v921, 4294901760
    %1590 = vmatpush1.msra.mxu0 %v1589
    %v1591 = vand.u32 %v914, 4294901760
    %1592 = vmatprep.subr.mxu0 %v1591
    %v1593 = vand.u32 %v913, 4294901760
    %1594 = vmatpush1.msra.mxu0 %v1593
    %v1595 = vand.u32 %v906, 4294901760
    %1596 = vmatprep.subr.mxu0 %v1595
    %v1597 = vand.u32 %v905, 4294901760
    %1598 = vmatpush1.msra.mxu0 %v1597
    %1599 = vmatprep.subr.mxu0 0.0
    %1600 = vmatpush2.msra.mxu0 0.0
    %1601 = vmatprep.subr.mxu0 0.0
    %1602 = vmatpush2.msra.mxu0 0.0
    %1603 = vmatprep.subr.mxu0 0.0
    %1604 = vmatpush2.msra.mxu0 0.0
    %1605 = vmatprep.subr.mxu0 0.0
    %1606 = vmatpush2.msra.mxu0 0.0
    %1607 = vmatprep.subr.mxu0 0.0
    %1608 = vmatpush2.msra.mxu0 0.0
    %1609 = vmatprep.subr.mxu0 0.0
    %1610 = vmatpush2.msra.mxu0 0.0
    %1611 = vmatprep.subr.mxu0 0.0
    %1612 = vmatpush2.msra.mxu0 0.0
    %1613 = vmatprep.subr.mxu0 0.0
    %1614 = vmatpush2.msra.mxu0 0.0
    %1615 = vmatprep.subr.mxu0 0.0
    %1616 = vmatpush2.msra.mxu0 0.0
    %1617 = vmatprep.subr.mxu0 0.0
    %1618 = vmatpush2.msra.mxu0 0.0
    %1619 = vmatprep.subr.mxu0 0.0
    %1620 = vmatpush2.msra.mxu0 0.0
    %1621 = vmatprep.subr.mxu0 0.0
    %1622 = vmatpush2.msra.mxu0 0.0
    %1623 = vmatprep.subr.mxu0 0.0
    %1624 = vmatpush2.msra.mxu0 0.0
    %1625 = vmatprep.subr.mxu0 0.0
    %1626 = vmatpush2.msra.mxu0 0.0
    %1627 = vmatprep.subr.mxu0 0.0
    %1628 = vmatpush2.msra.mxu0 0.0
    %1629 = vmatprep.subr.mxu0 0.0
    %1630 = vmatpush2.msra.mxu0 0.0
    %1631 = vmatprep.mubr.f32.mxu0 0.0
    %v1632 = vand.u32 %v964, 4294901760
    %1633 = vmatmul.mubr.f32.gmra.mxu0 %v1632
    %v1634 = vpop.f32.mrf.mxu0
    %v1635 = vadd.f32 %v1545, %v1634
    %v1636 = vpop.f32.mrf.mxu0
    %v1637 = vadd.f32 %v1547, %v1636
    %1638 = vdwg.mxu0
    %v1639 = vadd.f32 %v1635, %v1637
    %1640 = vadd.xlane.f32.xlu0 %v1639
    %v1641 = vpop.xlane.xlu0 %1640
    %v1642 = vmul.f32 %v1641, %v883
    %v1643 = vsub.f32 %v1635, %v1642
    %v1644 = vsub.f32 %v1637, %v1642
    %v1645 = vmul.f32 %v1643, %v1643
    %v1646 = vmul.f32 %v1644, %v1644
    %v1647 = vadd.f32 %v1645, %v1646
    %1648 = vadd.xlane.f32.xlu0 %v1647
    %v1649 = vpop.xlane.xlu0 %1648
    %v1650 = vmul.f32 %v1649, %v883
    %v1651 = vadd.f32 %v1650, 1e-05
    %v1652 = vrsqrt.pop %v1651
    %v1653 = vmul.f32 %v1643, %v1652
    %v1654 = vmul.f32 %v1644, %v1652
    %v1655 = vmax.f32 %v1653, 0.0
    %v1656 = vmax.f32 %v1654, 0.0
    %1657 = vst [vmem:[#allocation8] sm:$0xff] %v1655
    %1658 = vst [vmem:[#allocation8 + $0x8] sm:$0xff] %v1656
    %s1659 = scalar_lea.vmem [#allocation2], 16
    %v1660 = vld [vmem:[%s1659] sm:$0xff]
    %v1661 = vld [vmem:[%s1659 + $0x8] sm:$0xff]
    %1662 = vrot.lane.b32.xlu0 %v1660, 17
    %v1663 = vpop.permute.xlu0 %1662
    %1664 = vrot.lane.b32.xlu0 %v1661, 17
    %v1665 = vpop.permute.xlu0 %1664
    %v1666 = vsel %vm103, %v1663, %v1665
    %v1667 = vsel %vm103, %v1665, %v1663
    %v1668 = vsel %vm108, %v1667, 0.0
    %v1669 = vsel %vm109, %v1666, 0.0
    %1670 = vrot.lane.b32.xlu0 %v1660, 16
    %v1671 = vpop.permute.xlu0 %1670
    %1672 = vrot.lane.b32.xlu0 %v1661, 16
    %v1673 = vpop.permute.xlu0 %1672
    %v1674 = vsel %vm116, %v1671, %v1673
    %v1675 = vsel %vm116, %v1673, %v1671
    %v1676 = vsel %vm121, %v1675, 0.0
    %v1677 = vsel %vm122, %v1674, 0.0
    %1678 = vrot.lane.b32.xlu0 %v1660, 15
    %v1679 = vpop.permute.xlu0 %1678
    %1680 = vrot.lane.b32.xlu0 %v1661, 15
    %v1681 = vpop.permute.xlu0 %1680
    %v1682 = vsel %vm129, %v1679, %v1681
    %v1683 = vsel %vm129, %v1681, %v1679
    %v1684 = vsel %vm134, %v1683, 0.0
    %v1685 = vsel %vm135, %v1682, 0.0
    %1686 = vrot.lane.b32.xlu0 %v1660, 1
    %v1687 = vpop.permute.xlu0 %1686
    %1688 = vrot.lane.b32.xlu0 %v1661, 1
    %v1689 = vpop.permute.xlu0 %1688
    %v1690 = vsel %vm142, %v1687, %v1689
    %v1691 = vsel %vm142, %v1689, %v1687
    %v1692 = vsel %vm147, %v1691, 0.0
    %v1693 = vsel %vm148, %v1690, 0.0
    %1694 = vrot.lane.b32.xlu0 %v1660, 127
    %v1695 = vpop.permute.xlu0 %1694
    %1696 = vrot.lane.b32.xlu0 %v1661, 127
    %v1697 = vpop.permute.xlu0 %1696
    %v1698 = vsel %vm155, %v1695, %v1697
    %v1699 = vsel %vm155, %v1697, %v1695
    %v1700 = vsel %vm160, %v1698, 0.0
    %v1701 = vsel %vm161, %v1699, 0.0
    %1702 = vrot.lane.b32.xlu0 %v1660, 113
    %v1703 = vpop.permute.xlu0 %1702
    %1704 = vrot.lane.b32.xlu0 %v1661, 113
    %v1705 = vpop.permute.xlu0 %1704
    %v1706 = vsel %vm168, %v1703, %v1705
    %v1707 = vsel %vm168, %v1705, %v1703
    %v1708 = vsel %vm173, %v1706, 0.0
    %v1709 = vsel %vm174, %v1707, 0.0
    %1710 = vrot.lane.b32.xlu0 %v1660, 112
    %v1711 = vpop.permute.xlu0 %1710
    %1712 = vrot.lane.b32.xlu0 %v1661, 112
    %v1713 = vpop.permute.xlu0 %1712
    %v1714 = vsel %vm181, %v1711, %v1713
    %v1715 = vsel %vm181, %v1713, %v1711
    %v1716 = vsel %vm186, %v1714, 0.0
    %v1717 = vsel %vm187, %v1715, 0.0
    %1718 = vrot.lane.b32.xlu0 %v1660, 111
    %v1719 = vpop.permute.xlu0 %1718
    %1720 = vrot.lane.b32.xlu0 %v1661, 111
    %v1721 = vpop.permute.xlu0 %1720
    %v1722 = vsel %vm194, %v1719, %v1721
    %v1723 = vsel %vm194, %v1721, %v1719
    %v1724 = vsel %vm199, %v1722, 0.0
    %v1725 = vsel %vm200, %v1723, 0.0
    %1726 = vmatprep.subr.mxu0 0.0
    %1727 = vmatpush1.msra.mxu0 0.0
    %1728 = vmatprep.subr.mxu0 0.0
    %1729 = vmatpush1.msra.mxu0 0.0
    %1730 = vmatprep.subr.mxu0 0.0
    %1731 = vmatpush1.msra.mxu0 0.0
    %1732 = vmatprep.subr.mxu0 0.0
    %1733 = vmatpush1.msra.mxu0 0.0
    %1734 = vmatprep.subr.mxu0 0.0
    %1735 = vmatpush1.msra.mxu0 0.0
    %1736 = vmatprep.subr.mxu0 0.0
    %1737 = vmatpush1.msra.mxu0 0.0
    %1738 = vmatprep.subr.mxu0 0.0
    %1739 = vmatpush1.msra.mxu0 0.0
    %v1740 = vand.u32 %v1725, 4294901760
    %1741 = vmatprep.subr.mxu0 %v1740
    %v1742 = vand.u32 %v1724, 4294901760
    %1743 = vmatpush1.msra.mxu0 %v1742
    %v1744 = vand.u32 %v1717, 4294901760
    %1745 = vmatprep.subr.mxu0 %v1744
    %v1746 = vand.u32 %v1716, 4294901760
    %1747 = vmatpush1.msra.mxu0 %v1746
    %v1748 = vand.u32 %v1709, 4294901760
    %1749 = vmatprep.subr.mxu0 %v1748
    %v1750 = vand.u32 %v1708, 4294901760
    %1751 = vmatpush1.msra.mxu0 %v1750
    %v1752 = vand.u32 %v1701, 4294901760
    %1753 = vmatprep.subr.mxu0 %v1752
    %v1754 = vand.u32 %v1700, 4294901760
    %1755 = vmatpush1.msra.mxu0 %v1754
    %v1756 = vand.u32 %v1661, 4294901760
    %1757 = vmatprep.subr.mxu0 %v1756
    %v1758 = vand.u32 %v1660, 4294901760
    %1759 = vmatpush1.msra.mxu0 %v1758
    %v1760 = vand.u32 %v1693, 4294901760
    %1761 = vmatprep.subr.mxu0 %v1760
    %v1762 = vand.u32 %v1692, 4294901760
    %1763 = vmatpush1.msra.mxu0 %v1762
    %v1764 = vand.u32 %v1685, 4294901760
    %1765 = vmatprep.subr.mxu0 %v1764
    %v1766 = vand.u32 %v1684, 4294901760
    %1767 = vmatpush1.msra.mxu0 %v1766
    %v1768 = vand.u32 %v1677, 4294901760
    %1769 = vmatprep.subr.mxu0 %v1768
    %v1770 = vand.u32 %v1676, 4294901760
    %1771 = vmatpush1.msra.mxu0 %v1770
    %v1772 = vand.u32 %v1669, 4294901760
    %1773 = vmatprep.subr.mxu0 %v1772
    %v1774 = vand.u32 %v1668, 4294901760
    %1775 = vmatpush1.msra.mxu0 %v1774
    %1776 = vmatprep.subr.mxu0 0.0
    %1777 = vmatpush2.msra.mxu0 0.0
    %1778 = vmatprep.subr.mxu0 0.0
    %1779 = vmatpush2.msra.mxu0 0.0
    %1780 = vmatprep.subr.mxu0 0.0
    %1781 = vmatpush2.msra.mxu0 0.0
    %1782 = vmatprep.subr.mxu0 0.0
    %1783 = vmatpush2.msra.mxu0 0.0
    %1784 = vmatprep.subr.mxu0 0.0
    %1785 = vmatpush2.msra.mxu0 0.0
    %1786 = vmatprep.subr.mxu0 0.0
    %1787 = vmatpush2.msra.mxu0 0.0
    %1788 = vmatprep.subr.mxu0 0.0
    %1789 = vmatpush2.msra.mxu0 0.0
    %1790 = vmatprep.subr.mxu0 0.0
    %1791 = vmatpush2.msra.mxu0 0.0
    %1792 = vmatprep.subr.mxu0 0.0
    %1793 = vmatpush2.msra.mxu0 0.0
    %1794 = vmatprep.subr.mxu0 0.0
    %1795 = vmatpush2.msra.mxu0 0.0
    %1796 = vmatprep.subr.mxu0 0.0
    %1797 = vmatpush2.msra.mxu0 0.0
    %1798 = vmatprep.subr.mxu0 0.0
    %1799 = vmatpush2.msra.mxu0 0.0
    %1800 = vmatprep.subr.mxu0 0.0
    %1801 = vmatpush2.msra.mxu0 0.0
    %1802 = vmatprep.subr.mxu0 0.0
    %1803 = vmatpush2.msra.mxu0 0.0
    %1804 = vmatprep.subr.mxu0 0.0
    %1805 = vmatpush2.msra.mxu0 0.0
    %1806 = vmatprep.subr.mxu0 0.0
    %1807 = vmatpush2.msra.mxu0 0.0
    %1808 = vmatprep.mubr.f32.mxu0 0.0
    %v1809 = vand.u32 %v205, 4294901760
    %v1810 = vsub.f32 %v205, %v1809
    %v1811 = vand.u32 %v1810, 4294901760
    %v1812 = vsub.f32 %v1810, %v1811
    %v1813 = vand.u32 %v1812, 4294901760
    %1814 = vmatmul.mubr.f32.gmra.mxu0 %v1813
    %v1815 = vpop.f32.mrf.mxu0
    %v1816 = vadd.f32 0.0, %v1815
    %v1817 = vpop.f32.mrf.mxu0
    %v1818 = vadd.f32 0.0, %v1817
    %1819 = vdwg.mxu0
    %1820 = vmatprep.subr.mxu0 0.0
    %1821 = vmatpush1.msra.mxu0 0.0
    %1822 = vmatprep.subr.mxu0 0.0
    %1823 = vmatpush1.msra.mxu0 0.0
    %1824 = vmatprep.subr.mxu0 0.0
    %1825 = vmatpush1.msra.mxu0 0.0
    %1826 = vmatprep.subr.mxu0 0.0
    %1827 = vmatpush1.msra.mxu0 0.0
    %1828 = vmatprep.subr.mxu0 0.0
    %1829 = vmatpush1.msra.mxu0 0.0
    %1830 = vmatprep.subr.mxu0 0.0
    %1831 = vmatpush1.msra.mxu0 0.0
    %1832 = vmatprep.subr.mxu0 0.0
    %1833 = vmatpush1.msra.mxu0 0.0
    %v1834 = vand.u32 %v1725, 4294901760
    %v1835 = vsub.f32 %v1725, %v1834
    %v1836 = vand.u32 %v1835, 4294901760
    %v1837 = vsub.f32 %v1835, %v1836
    %v1838 = vand.u32 %v1837, 4294901760
    %1839 = vmatprep.subr.mxu0 %v1838
    %v1840 = vand.u32 %v1724, 4294901760
    %v1841 = vsub.f32 %v1724, %v1840
    %v1842 = vand.u32 %v1841, 4294901760
    %v1843 = vsub.f32 %v1841, %v1842
    %v1844 = vand.u32 %v1843, 4294901760
    %1845 = vmatpush1.msra.mxu0 %v1844
    %v1846 = vand.u32 %v1717, 4294901760
    %v1847 = vsub.f32 %v1717, %v1846
    %v1848 = vand.u32 %v1847, 4294901760
    %v1849 = vsub.f32 %v1847, %v1848
    %v1850 = vand.u32 %v1849, 4294901760
    %1851 = vmatprep.subr.mxu0 %v1850
    %v1852 = vand.u32 %v1716, 4294901760
    %v1853 = vsub.f32 %v1716, %v1852
    %v1854 = vand.u32 %v1853, 4294901760
    %v1855 = vsub.f32 %v1853, %v1854
    %v1856 = vand.u32 %v1855, 4294901760
    %1857 = vmatpush1.msra.mxu0 %v1856
    %v1858 = vand.u32 %v1709, 4294901760
    %v1859 = vsub.f32 %v1709, %v1858
    %v1860 = vand.u32 %v1859, 4294901760
    %v1861 = vsub.f32 %v1859, %v1860
    %v1862 = vand.u32 %v1861, 4294901760
    %1863 = vmatprep.subr.mxu0 %v1862
    %v1864 = vand.u32 %v1708, 4294901760
    %v1865 = vsub.f32 %v1708, %v1864
    %v1866 = vand.u32 %v1865, 4294901760
    %v1867 = vsub.f32 %v1865, %v1866
    %v1868 = vand.u32 %v1867, 4294901760
    %1869 = vmatpush1.msra.mxu0 %v1868
    %v1870 = vand.u32 %v1701, 4294901760
    %v1871 = vsub.f32 %v1701, %v1870
    %v1872 = vand.u32 %v1871, 4294901760
    %v1873 = vsub.f32 %v1871, %v1872
    %v1874 = vand.u32 %v1873, 4294901760
    %1875 = vmatprep.subr.mxu0 %v1874
    %v1876 = vand.u32 %v1700, 4294901760
    %v1877 = vsub.f32 %v1700, %v1876
    %v1878 = vand.u32 %v1877, 4294901760
    %v1879 = vsub.f32 %v1877, %v1878
    %v1880 = vand.u32 %v1879, 4294901760
    %1881 = vmatpush1.msra.mxu0 %v1880
    %v1882 = vand.u32 %v1661, 4294901760
    %v1883 = vsub.f32 %v1661, %v1882
    %v1884 = vand.u32 %v1883, 4294901760
    %v1885 = vsub.f32 %v1883, %v1884
    %v1886 = vand.u32 %v1885, 4294901760
    %1887 = vmatprep.subr.mxu0 %v1886
    %v1888 = vand.u32 %v1660, 4294901760
    %v1889 = vsub.f32 %v1660, %v1888
    %v1890 = vand.u32 %v1889, 4294901760
    %v1891 = vsub.f32 %v1889, %v1890
    %v1892 = vand.u32 %v1891, 4294901760
    %1893 = vmatpush1.msra.mxu0 %v1892
    %v1894 = vand.u32 %v1693, 4294901760
    %v1895 = vsub.f32 %v1693, %v1894
    %v1896 = vand.u32 %v1895, 4294901760
    %v1897 = vsub.f32 %v1895, %v1896
    %v1898 = vand.u32 %v1897, 4294901760
    %1899 = vmatprep.subr.mxu0 %v1898
    %v1900 = vand.u32 %v1692, 4294901760
    %v1901 = vsub.f32 %v1692, %v1900
    %v1902 = vand.u32 %v1901, 4294901760
    %v1903 = vsub.f32 %v1901, %v1902
    %v1904 = vand.u32 %v1903, 4294901760
    %1905 = vmatpush1.msra.mxu0 %v1904
    %v1906 = vand.u32 %v1685, 4294901760
    %v1907 = vsub.f32 %v1685, %v1906
    %v1908 = vand.u32 %v1907, 4294901760
    %v1909 = vsub.f32 %v1907, %v1908
    %v1910 = vand.u32 %v1909, 4294901760
    %1911 = vmatprep.subr.mxu0 %v1910
    %v1912 = vand.u32 %v1684, 4294901760
    %v1913 = vsub.f32 %v1684, %v1912
    %v1914 = vand.u32 %v1913, 4294901760
    %v1915 = vsub.f32 %v1913, %v1914
    %v1916 = vand.u32 %v1915, 4294901760
    %1917 = vmatpush1.msra.mxu0 %v1916
    %v1918 = vand.u32 %v1677, 4294901760
    %v1919 = vsub.f32 %v1677, %v1918
    %v1920 = vand.u32 %v1919, 4294901760
    %v1921 = vsub.f32 %v1919, %v1920
    %v1922 = vand.u32 %v1921, 4294901760
    %1923 = vmatprep.subr.mxu0 %v1922
    %v1924 = vand.u32 %v1676, 4294901760
    %v1925 = vsub.f32 %v1676, %v1924
    %v1926 = vand.u32 %v1925, 4294901760
    %v1927 = vsub.f32 %v1925, %v1926
    %v1928 = vand.u32 %v1927, 4294901760
    %1929 = vmatpush1.msra.mxu0 %v1928
    %v1930 = vand.u32 %v1669, 4294901760
    %v1931 = vsub.f32 %v1669, %v1930
    %v1932 = vand.u32 %v1931, 4294901760
    %v1933 = vsub.f32 %v1931, %v1932
    %v1934 = vand.u32 %v1933, 4294901760
    %1935 = vmatprep.subr.mxu0 %v1934
    %v1936 = vand.u32 %v1668, 4294901760
    %v1937 = vsub.f32 %v1668, %v1936
    %v1938 = vand.u32 %v1937, 4294901760
    %v1939 = vsub.f32 %v1937, %v1938
    %v1940 = vand.u32 %v1939, 4294901760
    %1941 = vmatpush1.msra.mxu0 %v1940
    %1942 = vmatprep.subr.mxu0 0.0
    %1943 = vmatpush2.msra.mxu0 0.0
    %1944 = vmatprep.subr.mxu0 0.0
    %1945 = vmatpush2.msra.mxu0 0.0
    %1946 = vmatprep.subr.mxu0 0.0
    %1947 = vmatpush2.msra.mxu0 0.0
    %1948 = vmatprep.subr.mxu0 0.0
    %1949 = vmatpush2.msra.mxu0 0.0
    %1950 = vmatprep.subr.mxu0 0.0
    %1951 = vmatpush2.msra.mxu0 0.0
    %1952 = vmatprep.subr.mxu0 0.0
    %1953 = vmatpush2.msra.mxu0 0.0
    %1954 = vmatprep.subr.mxu0 0.0
    %1955 = vmatpush2.msra.mxu0 0.0
    %1956 = vmatprep.subr.mxu0 0.0
    %1957 = vmatpush2.msra.mxu0 0.0
    %1958 = vmatprep.subr.mxu0 0.0
    %1959 = vmatpush2.msra.mxu0 0.0
    %1960 = vmatprep.subr.mxu0 0.0
    %1961 = vmatpush2.msra.mxu0 0.0
    %1962 = vmatprep.subr.mxu0 0.0
    %1963 = vmatpush2.msra.mxu0 0.0
    %1964 = vmatprep.subr.mxu0 0.0
    %1965 = vmatpush2.msra.mxu0 0.0
    %1966 = vmatprep.subr.mxu0 0.0
    %1967 = vmatpush2.msra.mxu0 0.0
    %1968 = vmatprep.subr.mxu0 0.0
    %1969 = vmatpush2.msra.mxu0 0.0
    %1970 = vmatprep.subr.mxu0 0.0
    %1971 = vmatpush2.msra.mxu0 0.0
    %1972 = vmatprep.subr.mxu0 0.0
    %1973 = vmatpush2.msra.mxu0 0.0
    %1974 = vmatprep.mubr.f32.mxu0 0.0
    %v1975 = vand.u32 %v205, 4294901760
    %1976 = vmatmul.mubr.f32.gmra.mxu0 %v1975
    %v1977 = vpop.f32.mrf.mxu0
    %v1978 = vadd.f32 %v1816, %v1977
    %v1979 = vpop.f32.mrf.mxu0
    %v1980 = vadd.f32 %v1818, %v1979
    %1981 = vdwg.mxu0
    %1982 = vmatprep.subr.mxu0 0.0
    %1983 = vmatpush1.msra.mxu0 0.0
    %1984 = vmatprep.subr.mxu0 0.0
    %1985 = vmatpush1.msra.mxu0 0.0
    %1986 = vmatprep.subr.mxu0 0.0
    %1987 = vmatpush1.msra.mxu0 0.0
    %1988 = vmatprep.subr.mxu0 0.0
    %1989 = vmatpush1.msra.mxu0 0.0
    %1990 = vmatprep.subr.mxu0 0.0
    %1991 = vmatpush1.msra.mxu0 0.0
    %1992 = vmatprep.subr.mxu0 0.0
    %1993 = vmatpush1.msra.mxu0 0.0
    %1994 = vmatprep.subr.mxu0 0.0
    %1995 = vmatpush1.msra.mxu0 0.0
    %v1996 = vand.u32 %v1725, 4294901760
    %v1997 = vsub.f32 %v1725, %v1996
    %1998 = vmatprep.subr.mxu0 %v1997
    %v1999 = vand.u32 %v1724, 4294901760
    %v2000 = vsub.f32 %v1724, %v1999
    %2001 = vmatpush1.msra.mxu0 %v2000
    %v2002 = vand.u32 %v1717, 4294901760
    %v2003 = vsub.f32 %v1717, %v2002
    %2004 = vmatprep.subr.mxu0 %v2003
    %v2005 = vand.u32 %v1716, 4294901760
    %v2006 = vsub.f32 %v1716, %v2005
    %2007 = vmatpush1.msra.mxu0 %v2006
    %v2008 = vand.u32 %v1709, 4294901760
    %v2009 = vsub.f32 %v1709, %v2008
    %2010 = vmatprep.subr.mxu0 %v2009
    %v2011 = vand.u32 %v1708, 4294901760
    %v2012 = vsub.f32 %v1708, %v2011
    %2013 = vmatpush1.msra.mxu0 %v2012
    %v2014 = vand.u32 %v1701, 4294901760
    %v2015 = vsub.f32 %v1701, %v2014
    %2016 = vmatprep.subr.mxu0 %v2015
    %v2017 = vand.u32 %v1700, 4294901760
    %v2018 = vsub.f32 %v1700, %v2017
    %2019 = vmatpush1.msra.mxu0 %v2018
    %v2020 = vand.u32 %v1661, 4294901760
    %v2021 = vsub.f32 %v1661, %v2020
    %2022 = vmatprep.subr.mxu0 %v2021
    %v2023 = vand.u32 %v1660, 4294901760
    %v2024 = vsub.f32 %v1660, %v2023
    %2025 = vmatpush1.msra.mxu0 %v2024
    %v2026 = vand.u32 %v1693, 4294901760
    %v2027 = vsub.f32 %v1693, %v2026
    %2028 = vmatprep.subr.mxu0 %v2027
    %v2029 = vand.u32 %v1692, 4294901760
    %v2030 = vsub.f32 %v1692, %v2029
    %2031 = vmatpush1.msra.mxu0 %v2030
    %v2032 = vand.u32 %v1685, 4294901760
    %v2033 = vsub.f32 %v1685, %v2032
    %2034 = vmatprep.subr.mxu0 %v2033
    %v2035 = vand.u32 %v1684, 4294901760
    %v2036 = vsub.f32 %v1684, %v2035
    %2037 = vmatpush1.msra.mxu0 %v2036
    %v2038 = vand.u32 %v1677, 4294901760
    %v2039 = vsub.f32 %v1677, %v2038
    %2040 = vmatprep.subr.mxu0 %v2039
    %v2041 = vand.u32 %v1676, 4294901760
    %v2042 = vsub.f32 %v1676, %v2041
    %2043 = vmatpush1.msra.mxu0 %v2042
    %v2044 = vand.u32 %v1669, 4294901760
    %v2045 = vsub.f32 %v1669, %v2044
    %2046 = vmatprep.subr.mxu0 %v2045
    %v2047 = vand.u32 %v1668, 4294901760
    %v2048 = vsub.f32 %v1668, %v2047
    %2049 = vmatpush1.msra.mxu0 %v2048
    %2050 = vmatprep.subr.mxu0 0.0
    %2051 = vmatpush2.msra.mxu0 0.0
    %2052 = vmatprep.subr.mxu0 0.0
    %2053 = vmatpush2.msra.mxu0 0.0
    %2054 = vmatprep.subr.mxu0 0.0
    %2055 = vmatpush2.msra.mxu0 0.0
    %2056 = vmatprep.subr.mxu0 0.0
    %2057 = vmatpush2.msra.mxu0 0.0
    %2058 = vmatprep.subr.mxu0 0.0
    %2059 = vmatpush2.msra.mxu0 0.0
    %2060 = vmatprep.subr.mxu0 0.0
    %2061 = vmatpush2.msra.mxu0 0.0
    %2062 = vmatprep.subr.mxu0 0.0
    %2063 = vmatpush2.msra.mxu0 0.0
    %2064 = vmatprep.subr.mxu0 0.0
    %2065 = vmatpush2.msra.mxu0 0.0
    %2066 = vmatprep.subr.mxu0 0.0
    %2067 = vmatpush2.msra.mxu0 0.0
    %2068 = vmatprep.subr.mxu0 0.0
    %2069 = vmatpush2.msra.mxu0 0.0
    %2070 = vmatprep.subr.mxu0 0.0
    %2071 = vmatpush2.msra.mxu0 0.0
    %2072 = vmatprep.subr.mxu0 0.0
    %2073 = vmatpush2.msra.mxu0 0.0
    %2074 = vmatprep.subr.mxu0 0.0
    %2075 = vmatpush2.msra.mxu0 0.0
    %2076 = vmatprep.subr.mxu0 0.0
    %2077 = vmatpush2.msra.mxu0 0.0
    %2078 = vmatprep.subr.mxu0 0.0
    %2079 = vmatpush2.msra.mxu0 0.0
    %2080 = vmatprep.subr.mxu0 0.0
    %2081 = vmatpush2.msra.mxu0 0.0
    %2082 = vmatprep.mubr.f32.mxu0 0.0
    %v2083 = vand.u32 %v205, 4294901760
    %v2084 = vsub.f32 %v205, %v2083
    %2085 = vmatmul.mubr.f32.gmra.mxu0 %v2084
    %v2086 = vpop.f32.mrf.mxu0
    %v2087 = vadd.f32 %v1978, %v2086
    %v2088 = vpop.f32.mrf.mxu0
    %v2089 = vadd.f32 %v1980, %v2088
    %2090 = vdwg.mxu0
    %2091 = vmatprep.subr.mxu0 0.0
    %2092 = vmatpush1.msra.mxu0 0.0
    %2093 = vmatprep.subr.mxu0 0.0
    %2094 = vmatpush1.msra.mxu0 0.0
    %2095 = vmatprep.subr.mxu0 0.0
    %2096 = vmatpush1.msra.mxu0 0.0
    %2097 = vmatprep.subr.mxu0 0.0
    %2098 = vmatpush1.msra.mxu0 0.0
    %2099 = vmatprep.subr.mxu0 0.0
    %2100 = vmatpush1.msra.mxu0 0.0
    %2101 = vmatprep.subr.mxu0 0.0
    %2102 = vmatpush1.msra.mxu0 0.0
    %2103 = vmatprep.subr.mxu0 0.0
    %2104 = vmatpush1.msra.mxu0 0.0
    %v2105 = vand.u32 %v1725, 4294901760
    %2106 = vmatprep.subr.mxu0 %v2105
    %v2107 = vand.u32 %v1724, 4294901760
    %2108 = vmatpush1.msra.mxu0 %v2107
    %v2109 = vand.u32 %v1717, 4294901760
    %2110 = vmatprep.subr.mxu0 %v2109
    %v2111 = vand.u32 %v1716, 4294901760
    %2112 = vmatpush1.msra.mxu0 %v2111
    %v2113 = vand.u32 %v1709, 4294901760
    %2114 = vmatprep.subr.mxu0 %v2113
    %v2115 = vand.u32 %v1708, 4294901760
    %2116 = vmatpush1.msra.mxu0 %v2115
    %v2117 = vand.u32 %v1701, 4294901760
    %2118 = vmatprep.subr.mxu0 %v2117
    %v2119 = vand.u32 %v1700, 4294901760
    %2120 = vmatpush1.msra.mxu0 %v2119
    %v2121 = vand.u32 %v1661, 4294901760
    %2122 = vmatprep.subr.mxu0 %v2121
    %v2123 = vand.u32 %v1660, 4294901760
    %2124 = vmatpush1.msra.mxu0 %v2123
    %v2125 = vand.u32 %v1693, 4294901760
    %2126 = vmatprep.subr.mxu0 %v2125
    %v2127 = vand.u32 %v1692, 4294901760
    %2128 = vmatpush1.msra.mxu0 %v2127
    %v2129 = vand.u32 %v1685, 4294901760
    %2130 = vmatprep.subr.mxu0 %v2129
    %v2131 = vand.u32 %v1684, 4294901760
    %2132 = vmatpush1.msra.mxu0 %v2131
    %v2133 = vand.u32 %v1677, 4294901760
    %2134 = vmatprep.subr.mxu0 %v2133
    %v2135 = vand.u32 %v1676, 4294901760
    %2136 = vmatpush1.msra.mxu0 %v2135
    %v2137 = vand.u32 %v1669, 4294901760
    %2138 = vmatprep.subr.mxu0 %v2137
    %v2139 = vand.u32 %v1668, 4294901760
    %2140 = vmatpush1.msra.mxu0 %v2139
    %2141 = vmatprep.subr.mxu0 0.0
    %2142 = vmatpush2.msra.mxu0 0.0
    %2143 = vmatprep.subr.mxu0 0.0
    %2144 = vmatpush2.msra.mxu0 0.0
    %2145 = vmatprep.subr.mxu0 0.0
    %2146 = vmatpush2.msra.mxu0 0.0
    %2147 = vmatprep.subr.mxu0 0.0
    %2148 = vmatpush2.msra.mxu0 0.0
    %2149 = vmatprep.subr.mxu0 0.0
    %2150 = vmatpush2.msra.mxu0 0.0
    %2151 = vmatprep.subr.mxu0 0.0
    %2152 = vmatpush2.msra.mxu0 0.0
    %2153 = vmatprep.subr.mxu0 0.0
    %2154 = vmatpush2.msra.mxu0 0.0
    %2155 = vmatprep.subr.mxu0 0.0
    %2156 = vmatpush2.msra.mxu0 0.0
    %2157 = vmatprep.subr.mxu0 0.0
    %2158 = vmatpush2.msra.mxu0 0.0
    %2159 = vmatprep.subr.mxu0 0.0
    %2160 = vmatpush2.msra.mxu0 0.0
    %2161 = vmatprep.subr.mxu0 0.0
    %2162 = vmatpush2.msra.mxu0 0.0
    %2163 = vmatprep.subr.mxu0 0.0
    %2164 = vmatpush2.msra.mxu0 0.0
    %2165 = vmatprep.subr.mxu0 0.0
    %2166 = vmatpush2.msra.mxu0 0.0
    %2167 = vmatprep.subr.mxu0 0.0
    %2168 = vmatpush2.msra.mxu0 0.0
    %2169 = vmatprep.subr.mxu0 0.0
    %2170 = vmatpush2.msra.mxu0 0.0
    %2171 = vmatprep.subr.mxu0 0.0
    %2172 = vmatpush2.msra.mxu0 0.0
    %2173 = vmatprep.mubr.f32.mxu0 0.0
    %v2174 = vand.u32 %v205, 4294901760
    %v2175 = vsub.f32 %v205, %v2174
    %v2176 = vand.u32 %v2175, 4294901760
    %2177 = vmatmul.mubr.f32.gmra.mxu0 %v2176
    %v2178 = vpop.f32.mrf.mxu0
    %v2179 = vadd.f32 %v2087, %v2178
    %v2180 = vpop.f32.mrf.mxu0
    %v2181 = vadd.f32 %v2089, %v2180
    %2182 = vdwg.mxu0
    %2183 = vmatprep.subr.mxu0 0.0
    %2184 = vmatpush1.msra.mxu0 0.0
    %2185 = vmatprep.subr.mxu0 0.0
    %2186 = vmatpush1.msra.mxu0 0.0
    %2187 = vmatprep.subr.mxu0 0.0
    %2188 = vmatpush1.msra.mxu0 0.0
    %2189 = vmatprep.subr.mxu0 0.0
    %2190 = vmatpush1.msra.mxu0 0.0
    %2191 = vmatprep.subr.mxu0 0.0
    %2192 = vmatpush1.msra.mxu0 0.0
    %2193 = vmatprep.subr.mxu0 0.0
    %2194 = vmatpush1.msra.mxu0 0.0
    %2195 = vmatprep.subr.mxu0 0.0
    %2196 = vmatpush1.msra.mxu0 0.0
    %v2197 = vand.u32 %v1725, 4294901760
    %v2198 = vsub.f32 %v1725, %v2197
    %v2199 = vand.u32 %v2198, 4294901760
    %2200 = vmatprep.subr.mxu0 %v2199
    %v2201 = vand.u32 %v1724, 4294901760
    %v2202 = vsub.f32 %v1724, %v2201
    %v2203 = vand.u32 %v2202, 4294901760
    %2204 = vmatpush1.msra.mxu0 %v2203
    %v2205 = vand.u32 %v1717, 4294901760
    %v2206 = vsub.f32 %v1717, %v2205
    %v2207 = vand.u32 %v2206, 4294901760
    %2208 = vmatprep.subr.mxu0 %v2207
    %v2209 = vand.u32 %v1716, 4294901760
    %v2210 = vsub.f32 %v1716, %v2209
    %v2211 = vand.u32 %v2210, 4294901760
    %2212 = vmatpush1.msra.mxu0 %v2211
    %v2213 = vand.u32 %v1709, 4294901760
    %v2214 = vsub.f32 %v1709, %v2213
    %v2215 = vand.u32 %v2214, 4294901760
    %2216 = vmatprep.subr.mxu0 %v2215
    %v2217 = vand.u32 %v1708, 4294901760
    %v2218 = vsub.f32 %v1708, %v2217
    %v2219 = vand.u32 %v2218, 4294901760
    %2220 = vmatpush1.msra.mxu0 %v2219
    %v2221 = vand.u32 %v1701, 4294901760
    %v2222 = vsub.f32 %v1701, %v2221
    %v2223 = vand.u32 %v2222, 4294901760
    %2224 = vmatprep.subr.mxu0 %v2223
    %v2225 = vand.u32 %v1700, 4294901760
    %v2226 = vsub.f32 %v1700, %v2225
    %v2227 = vand.u32 %v2226, 4294901760
    %2228 = vmatpush1.msra.mxu0 %v2227
    %v2229 = vand.u32 %v1661, 4294901760
    %v2230 = vsub.f32 %v1661, %v2229
    %v2231 = vand.u32 %v2230, 4294901760
    %2232 = vmatprep.subr.mxu0 %v2231
    %v2233 = vand.u32 %v1660, 4294901760
    %v2234 = vsub.f32 %v1660, %v2233
    %v2235 = vand.u32 %v2234, 4294901760
    %2236 = vmatpush1.msra.mxu0 %v2235
    %v2237 = vand.u32 %v1693, 4294901760
    %v2238 = vsub.f32 %v1693, %v2237
    %v2239 = vand.u32 %v2238, 4294901760
    %2240 = vmatprep.subr.mxu0 %v2239
    %v2241 = vand.u32 %v1692, 4294901760
    %v2242 = vsub.f32 %v1692, %v2241
    %v2243 = vand.u32 %v2242, 4294901760
    %2244 = vmatpush1.msra.mxu0 %v2243
    %v2245 = vand.u32 %v1685, 4294901760
    %v2246 = vsub.f32 %v1685, %v2245
    %v2247 = vand.u32 %v2246, 4294901760
    %2248 = vmatprep.subr.mxu0 %v2247
    %v2249 = vand.u32 %v1684, 4294901760
    %v2250 = vsub.f32 %v1684, %v2249
    %v2251 = vand.u32 %v2250, 4294901760
    %2252 = vmatpush1.msra.mxu0 %v2251
    %v2253 = vand.u32 %v1677, 4294901760
    %v2254 = vsub.f32 %v1677, %v2253
    %v2255 = vand.u32 %v2254, 4294901760
    %2256 = vmatprep.subr.mxu0 %v2255
    %v2257 = vand.u32 %v1676, 4294901760
    %v2258 = vsub.f32 %v1676, %v2257
    %v2259 = vand.u32 %v2258, 4294901760
    %2260 = vmatpush1.msra.mxu0 %v2259
    %v2261 = vand.u32 %v1669, 4294901760
    %v2262 = vsub.f32 %v1669, %v2261
    %v2263 = vand.u32 %v2262, 4294901760
    %2264 = vmatprep.subr.mxu0 %v2263
    %v2265 = vand.u32 %v1668, 4294901760
    %v2266 = vsub.f32 %v1668, %v2265
    %v2267 = vand.u32 %v2266, 4294901760
    %2268 = vmatpush1.msra.mxu0 %v2267
    %2269 = vmatprep.subr.mxu0 0.0
    %2270 = vmatpush2.msra.mxu0 0.0
    %2271 = vmatprep.subr.mxu0 0.0
    %2272 = vmatpush2.msra.mxu0 0.0
    %2273 = vmatprep.subr.mxu0 0.0
    %2274 = vmatpush2.msra.mxu0 0.0
    %2275 = vmatprep.subr.mxu0 0.0
    %2276 = vmatpush2.msra.mxu0 0.0
    %2277 = vmatprep.subr.mxu0 0.0
    %2278 = vmatpush2.msra.mxu0 0.0
    %2279 = vmatprep.subr.mxu0 0.0
    %2280 = vmatpush2.msra.mxu0 0.0
    %2281 = vmatprep.subr.mxu0 0.0
    %2282 = vmatpush2.msra.mxu0 0.0
    %2283 = vmatprep.subr.mxu0 0.0
    %2284 = vmatpush2.msra.mxu0 0.0
    %2285 = vmatprep.subr.mxu0 0.0
    %2286 = vmatpush2.msra.mxu0 0.0
    %2287 = vmatprep.subr.mxu0 0.0
    %2288 = vmatpush2.msra.mxu0 0.0
    %2289 = vmatprep.subr.mxu0 0.0
    %2290 = vmatpush2.msra.mxu0 0.0
    %2291 = vmatprep.subr.mxu0 0.0
    %2292 = vmatpush2.msra.mxu0 0.0
    %2293 = vmatprep.subr.mxu0 0.0
    %2294 = vmatpush2.msra.mxu0 0.0
    %2295 = vmatprep.subr.mxu0 0.0
    %2296 = vmatpush2.msra.mxu0 0.0
    %2297 = vmatprep.subr.mxu0 0.0
    %2298 = vmatpush2.msra.mxu0 0.0
    %2299 = vmatprep.subr.mxu0 0.0
    %2300 = vmatpush2.msra.mxu0 0.0
    %2301 = vmatprep.mubr.f32.mxu0 0.0
    %v2302 = vand.u32 %v205, 4294901760
    %2303 = vmatmul.mubr.f32.gmra.mxu0 %v2302
    %v2304 = vpop.f32.mrf.mxu0
    %v2305 = vadd.f32 %v2179, %v2304
    %v2306 = vpop.f32.mrf.mxu0
    %v2307 = vadd.f32 %v2181, %v2306
    %2308 = vdwg.mxu0
    %2309 = vmatprep.subr.mxu0 0.0
    %2310 = vmatpush1.msra.mxu0 0.0
    %2311 = vmatprep.subr.mxu0 0.0
    %2312 = vmatpush1.msra.mxu0 0.0
    %2313 = vmatprep.subr.mxu0 0.0
    %2314 = vmatpush1.msra.mxu0 0.0
    %2315 = vmatprep.subr.mxu0 0.0
    %2316 = vmatpush1.msra.mxu0 0.0
    %2317 = vmatprep.subr.mxu0 0.0
    %2318 = vmatpush1.msra.mxu0 0.0
    %2319 = vmatprep.subr.mxu0 0.0
    %2320 = vmatpush1.msra.mxu0 0.0
    %2321 = vmatprep.subr.mxu0 0.0
    %2322 = vmatpush1.msra.mxu0 0.0
    %v2323 = vand.u32 %v1725, 4294901760
    %2324 = vmatprep.subr.mxu0 %v2323
    %v2325 = vand.u32 %v1724, 4294901760
    %2326 = vmatpush1.msra.mxu0 %v2325
    %v2327 = vand.u32 %v1717, 4294901760
    %2328 = vmatprep.subr.mxu0 %v2327
    %v2329 = vand.u32 %v1716, 4294901760
    %2330 = vmatpush1.msra.mxu0 %v2329
    %v2331 = vand.u32 %v1709, 4294901760
    %2332 = vmatprep.subr.mxu0 %v2331
    %v2333 = vand.u32 %v1708, 4294901760
    %2334 = vmatpush1.msra.mxu0 %v2333
    %v2335 = vand.u32 %v1701, 4294901760
    %2336 = vmatprep.subr.mxu0 %v2335
    %v2337 = vand.u32 %v1700, 4294901760
    %2338 = vmatpush1.msra.mxu0 %v2337
    %v2339 = vand.u32 %v1661, 4294901760
    %2340 = vmatprep.subr.mxu0 %v2339
    %v2341 = vand.u32 %v1660, 4294901760
    %2342 = vmatpush1.msra.mxu0 %v2341
    %v2343 = vand.u32 %v1693, 4294901760
    %2344 = vmatprep.subr.mxu0 %v2343
    %v2345 = vand.u32 %v1692, 4294901760
    %2346 = vmatpush1.msra.mxu0 %v2345
    %v2347 = vand.u32 %v1685, 4294901760
    %2348 = vmatprep.subr.mxu0 %v2347
    %v2349 = vand.u32 %v1684, 4294901760
    %2350 = vmatpush1.msra.mxu0 %v2349
    %v2351 = vand.u32 %v1677, 4294901760
    %2352 = vmatprep.subr.mxu0 %v2351
    %v2353 = vand.u32 %v1676, 4294901760
    %2354 = vmatpush1.msra.mxu0 %v2353
    %v2355 = vand.u32 %v1669, 4294901760
    %2356 = vmatprep.subr.mxu0 %v2355
    %v2357 = vand.u32 %v1668, 4294901760
    %2358 = vmatpush1.msra.mxu0 %v2357
    %2359 = vmatprep.subr.mxu0 0.0
    %2360 = vmatpush2.msra.mxu0 0.0
    %2361 = vmatprep.subr.mxu0 0.0
    %2362 = vmatpush2.msra.mxu0 0.0
    %2363 = vmatprep.subr.mxu0 0.0
    %2364 = vmatpush2.msra.mxu0 0.0
    %2365 = vmatprep.subr.mxu0 0.0
    %2366 = vmatpush2.msra.mxu0 0.0
    %2367 = vmatprep.subr.mxu0 0.0
    %2368 = vmatpush2.msra.mxu0 0.0
    %2369 = vmatprep.subr.mxu0 0.0
    %2370 = vmatpush2.msra.mxu0 0.0
    %2371 = vmatprep.subr.mxu0 0.0
    %2372 = vmatpush2.msra.mxu0 0.0
    %2373 = vmatprep.subr.mxu0 0.0
    %2374 = vmatpush2.msra.mxu0 0.0
    %2375 = vmatprep.subr.mxu0 0.0
    %2376 = vmatpush2.msra.mxu0 0.0
    %2377 = vmatprep.subr.mxu0 0.0
    %2378 = vmatpush2.msra.mxu0 0.0
    %2379 = vmatprep.subr.mxu0 0.0
    %2380 = vmatpush2.msra.mxu0 0.0
    %2381 = vmatprep.subr.mxu0 0.0
    %2382 = vmatpush2.msra.mxu0 0.0
    %2383 = vmatprep.subr.mxu0 0.0
    %2384 = vmatpush2.msra.mxu0 0.0
    %2385 = vmatprep.subr.mxu0 0.0
    %2386 = vmatpush2.msra.mxu0 0.0
    %2387 = vmatprep.subr.mxu0 0.0
    %2388 = vmatpush2.msra.mxu0 0.0
    %2389 = vmatprep.subr.mxu0 0.0
    %2390 = vmatpush2.msra.mxu0 0.0
    %2391 = vmatprep.mubr.f32.mxu0 0.0
    %v2392 = vand.u32 %v205, 4294901760
    %2393 = vmatmul.mubr.f32.gmra.mxu0 %v2392
    %v2394 = vpop.f32.mrf.mxu0
    %v2395 = vadd.f32 %v2305, %v2394
    %v2396 = vpop.f32.mrf.mxu0
    %v2397 = vadd.f32 %v2307, %v2396
    %2398 = vdwg.mxu0
    %v2399 = vadd.f32 %v2395, %v2397
    %2400 = vadd.xlane.f32.xlu0 %v2399
    %v2401 = vpop.xlane.xlu0 %2400
    %v2402 = vmul.f32 %v2401, %v883
    %v2403 = vsub.f32 %v2395, %v2402
    %v2404 = vsub.f32 %v2397, %v2402
    %v2405 = vmul.f32 %v2403, %v2403
    %v2406 = vmul.f32 %v2404, %v2404
    %v2407 = vadd.f32 %v2405, %v2406
    %2408 = vadd.xlane.f32.xlu0 %v2407
    %v2409 = vpop.xlane.xlu0 %2408
    %v2410 = vmul.f32 %v2409, %v883
    %v2411 = vadd.f32 %v2410, 1e-05
    %v2412 = vrsqrt.pop %v2411
    %v2413 = vmul.f32 %v2403, %v2412
    %v2414 = vmul.f32 %v2404, %v2412
    %v2415 = vmax.f32 %v2413, 0.0
    %v2416 = vmax.f32 %v2414, 0.0
    %2417 = vrot.lane.b32.xlu0 %v2415, 17
    %v2418 = vpop.permute.xlu0 %2417
    %2419 = vrot.lane.b32.xlu0 %v2416, 17
    %v2420 = vpop.permute.xlu0 %2419
    %v2421 = vsel %vm103, %v2418, %v2420
    %v2422 = vsel %vm103, %v2420, %v2418
    %v2423 = vsel %vm108, %v2422, 0.0
    %v2424 = vsel %vm109, %v2421, 0.0
    %2425 = vrot.lane.b32.xlu0 %v2415, 16
    %v2426 = vpop.permute.xlu0 %2425
    %2427 = vrot.lane.b32.xlu0 %v2416, 16
    %v2428 = vpop.permute.xlu0 %2427
    %v2429 = vsel %vm116, %v2426, %v2428
    %v2430 = vsel %vm116, %v2428, %v2426
    %v2431 = vsel %vm121, %v2430, 0.0
    %v2432 = vsel %vm122, %v2429, 0.0
    %2433 = vrot.lane.b32.xlu0 %v2415, 15
    %v2434 = vpop.permute.xlu0 %2433
    %2435 = vrot.lane.b32.xlu0 %v2416, 15
    %v2436 = vpop.permute.xlu0 %2435
    %v2437 = vsel %vm129, %v2434, %v2436
    %v2438 = vsel %vm129, %v2436, %v2434
    %v2439 = vsel %vm134, %v2438, 0.0
    %v2440 = vsel %vm135, %v2437, 0.0
    %2441 = vrot.lane.b32.xlu0 %v2415, 1
    %v2442 = vpop.permute.xlu0 %2441
    %2443 = vrot.lane.b32.xlu0 %v2416, 1
    %v2444 = vpop.permute.xlu0 %2443
    %v2445 = vsel %vm142, %v2442, %v2444
    %v2446 = vsel %vm142, %v2444, %v2442
    %v2447 = vsel %vm147, %v2446, 0.0
    %v2448 = vsel %vm148, %v2445, 0.0
    %2449 = vrot.lane.b32.xlu0 %v2415, 127
    %v2450 = vpop.permute.xlu0 %2449
    %2451 = vrot.lane.b32.xlu0 %v2416, 127
    %v2452 = vpop.permute.xlu0 %2451
    %v2453 = vsel %vm155, %v2450, %v2452
    %v2454 = vsel %vm155, %v2452, %v2450
    %v2455 = vsel %vm160, %v2453, 0.0
    %v2456 = vsel %vm161, %v2454, 0.0
    %2457 = vrot.lane.b32.xlu0 %v2415, 113
    %v2458 = vpop.permute.xlu0 %2457
    %2459 = vrot.lane.b32.xlu0 %v2416, 113
    %v2460 = vpop.permute.xlu0 %2459
    %v2461 = vsel %vm168, %v2458, %v2460
    %v2462 = vsel %vm168, %v2460, %v2458
    %v2463 = vsel %vm173, %v2461, 0.0
    %v2464 = vsel %vm174, %v2462, 0.0
    %2465 = vrot.lane.b32.xlu0 %v2415, 112
    %v2466 = vpop.permute.xlu0 %2465
    %2467 = vrot.lane.b32.xlu0 %v2416, 112
    %v2468 = vpop.permute.xlu0 %2467
    %v2469 = vsel %vm181, %v2466, %v2468
    %v2470 = vsel %vm181, %v2468, %v2466
    %v2471 = vsel %vm186, %v2469, 0.0
    %v2472 = vsel %vm187, %v2470, 0.0
    %2473 = vrot.lane.b32.xlu0 %v2415, 111
    %v2474 = vpop.permute.xlu0 %2473
    %2475 = vrot.lane.b32.xlu0 %v2416, 111
    %v2476 = vpop.permute.xlu0 %2475
    %v2477 = vsel %vm194, %v2474, %v2476
    %v2478 = vsel %vm194, %v2476, %v2474
    %v2479 = vsel %vm199, %v2477, 0.0
    %v2480 = vsel %vm200, %v2478, 0.0
    %2481 = vmatprep.subr.mxu0 0.0
    %2482 = vmatpush1.msra.mxu0 0.0
    %2483 = vmatprep.subr.mxu0 0.0
    %2484 = vmatpush1.msra.mxu0 0.0
    %2485 = vmatprep.subr.mxu0 0.0
    %2486 = vmatpush1.msra.mxu0 0.0
    %2487 = vmatprep.subr.mxu0 0.0
    %2488 = vmatpush1.msra.mxu0 0.0
    %2489 = vmatprep.subr.mxu0 0.0
    %2490 = vmatpush1.msra.mxu0 0.0
    %2491 = vmatprep.subr.mxu0 0.0
    %2492 = vmatpush1.msra.mxu0 0.0
    %2493 = vmatprep.subr.mxu0 0.0
    %2494 = vmatpush1.msra.mxu0 0.0
    %v2495 = vand.u32 %v2480, 4294901760
    %2496 = vmatprep.subr.mxu0 %v2495
    %v2497 = vand.u32 %v2479, 4294901760
    %2498 = vmatpush1.msra.mxu0 %v2497
    %v2499 = vand.u32 %v2472, 4294901760
    %2500 = vmatprep.subr.mxu0 %v2499
    %v2501 = vand.u32 %v2471, 4294901760
    %2502 = vmatpush1.msra.mxu0 %v2501
    %v2503 = vand.u32 %v2464, 4294901760
    %2504 = vmatprep.subr.mxu0 %v2503
    %v2505 = vand.u32 %v2463, 4294901760
    %2506 = vmatpush1.msra.mxu0 %v2505
    %v2507 = vand.u32 %v2456, 4294901760
    %2508 = vmatprep.subr.mxu0 %v2507
    %v2509 = vand.u32 %v2455, 4294901760
    %2510 = vmatpush1.msra.mxu0 %v2509
    %v2511 = vand.u32 %v2416, 4294901760
    %2512 = vmatprep.subr.mxu0 %v2511
    %v2513 = vand.u32 %v2415, 4294901760
    %2514 = vmatpush1.msra.mxu0 %v2513
    %v2515 = vand.u32 %v2448, 4294901760
    %2516 = vmatprep.subr.mxu0 %v2515
    %v2517 = vand.u32 %v2447, 4294901760
    %2518 = vmatpush1.msra.mxu0 %v2517
    %v2519 = vand.u32 %v2440, 4294901760
    %2520 = vmatprep.subr.mxu0 %v2519
    %v2521 = vand.u32 %v2439, 4294901760
    %2522 = vmatpush1.msra.mxu0 %v2521
    %v2523 = vand.u32 %v2432, 4294901760
    %2524 = vmatprep.subr.mxu0 %v2523
    %v2525 = vand.u32 %v2431, 4294901760
    %2526 = vmatpush1.msra.mxu0 %v2525
    %v2527 = vand.u32 %v2424, 4294901760
    %2528 = vmatprep.subr.mxu0 %v2527
    %v2529 = vand.u32 %v2423, 4294901760
    %2530 = vmatpush1.msra.mxu0 %v2529
    %2531 = vmatprep.subr.mxu0 0.0
    %2532 = vmatpush2.msra.mxu0 0.0
    %2533 = vmatprep.subr.mxu0 0.0
    %2534 = vmatpush2.msra.mxu0 0.0
    %2535 = vmatprep.subr.mxu0 0.0
    %2536 = vmatpush2.msra.mxu0 0.0
    %2537 = vmatprep.subr.mxu0 0.0
    %2538 = vmatpush2.msra.mxu0 0.0
    %2539 = vmatprep.subr.mxu0 0.0
    %2540 = vmatpush2.msra.mxu0 0.0
    %2541 = vmatprep.subr.mxu0 0.0
    %2542 = vmatpush2.msra.mxu0 0.0
    %2543 = vmatprep.subr.mxu0 0.0
    %2544 = vmatpush2.msra.mxu0 0.0
    %2545 = vmatprep.subr.mxu0 0.0
    %2546 = vmatpush2.msra.mxu0 0.0
    %2547 = vmatprep.subr.mxu0 0.0
    %2548 = vmatpush2.msra.mxu0 0.0
    %2549 = vmatprep.subr.mxu0 0.0
    %2550 = vmatpush2.msra.mxu0 0.0
    %2551 = vmatprep.subr.mxu0 0.0
    %2552 = vmatpush2.msra.mxu0 0.0
    %2553 = vmatprep.subr.mxu0 0.0
    %2554 = vmatpush2.msra.mxu0 0.0
    %2555 = vmatprep.subr.mxu0 0.0
    %2556 = vmatpush2.msra.mxu0 0.0
    %2557 = vmatprep.subr.mxu0 0.0
    %2558 = vmatpush2.msra.mxu0 0.0
    %2559 = vmatprep.subr.mxu0 0.0
    %2560 = vmatpush2.msra.mxu0 0.0
    %2561 = vmatprep.subr.mxu0 0.0
    %2562 = vmatpush2.msra.mxu0 0.0
    %2563 = vmatprep.mubr.f32.mxu0 0.0
    %v2564 = vand.u32 %v964, 4294901760
    %v2565 = vsub.f32 %v964, %v2564
    %v2566 = vand.u32 %v2565, 4294901760
    %v2567 = vsub.f32 %v2565, %v2566
    %v2568 = vand.u32 %v2567, 4294901760
    %2569 = vmatmul.mubr.f32.gmra.mxu0 %v2568
    %v2570 = vpop.f32.mrf.mxu0
    %v2571 = vadd.f32 0.0, %v2570
    %v2572 = vpop.f32.mrf.mxu0
    %v2573 = vadd.f32 0.0, %v2572
    %2574 = vdwg.mxu0
    %2575 = vmatprep.subr.mxu0 0.0
    %2576 = vmatpush1.msra.mxu0 0.0
    %2577 = vmatprep.subr.mxu0 0.0
    %2578 = vmatpush1.msra.mxu0 0.0
    %2579 = vmatprep.subr.mxu0 0.0
    %2580 = vmatpush1.msra.mxu0 0.0
    %2581 = vmatprep.subr.mxu0 0.0
    %2582 = vmatpush1.msra.mxu0 0.0
    %2583 = vmatprep.subr.mxu0 0.0
    %2584 = vmatpush1.msra.mxu0 0.0
    %2585 = vmatprep.subr.mxu0 0.0
    %2586 = vmatpush1.msra.mxu0 0.0
    %2587 = vmatprep.subr.mxu0 0.0
    %2588 = vmatpush1.msra.mxu0 0.0
    %v2589 = vand.u32 %v2480, 4294901760
    %v2590 = vsub.f32 %v2480, %v2589
    %v2591 = vand.u32 %v2590, 4294901760
    %v2592 = vsub.f32 %v2590, %v2591
    %v2593 = vand.u32 %v2592, 4294901760
    %2594 = vmatprep.subr.mxu0 %v2593
    %v2595 = vand.u32 %v2479, 4294901760
    %v2596 = vsub.f32 %v2479, %v2595
    %v2597 = vand.u32 %v2596, 4294901760
    %v2598 = vsub.f32 %v2596, %v2597
    %v2599 = vand.u32 %v2598, 4294901760
    %2600 = vmatpush1.msra.mxu0 %v2599
    %v2601 = vand.u32 %v2472, 4294901760
    %v2602 = vsub.f32 %v2472, %v2601
    %v2603 = vand.u32 %v2602, 4294901760
    %v2604 = vsub.f32 %v2602, %v2603
    %v2605 = vand.u32 %v2604, 4294901760
    %2606 = vmatprep.subr.mxu0 %v2605
    %v2607 = vand.u32 %v2471, 4294901760
    %v2608 = vsub.f32 %v2471, %v2607
    %v2609 = vand.u32 %v2608, 4294901760
    %v2610 = vsub.f32 %v2608, %v2609
    %v2611 = vand.u32 %v2610, 4294901760
    %2612 = vmatpush1.msra.mxu0 %v2611
    %v2613 = vand.u32 %v2464, 4294901760
    %v2614 = vsub.f32 %v2464, %v2613
    %v2615 = vand.u32 %v2614, 4294901760
    %v2616 = vsub.f32 %v2614, %v2615
    %v2617 = vand.u32 %v2616, 4294901760
    %2618 = vmatprep.subr.mxu0 %v2617
    %v2619 = vand.u32 %v2463, 4294901760
    %v2620 = vsub.f32 %v2463, %v2619
    %v2621 = vand.u32 %v2620, 4294901760
    %v2622 = vsub.f32 %v2620, %v2621
    %v2623 = vand.u32 %v2622, 4294901760
    %2624 = vmatpush1.msra.mxu0 %v2623
    %v2625 = vand.u32 %v2456, 4294901760
    %v2626 = vsub.f32 %v2456, %v2625
    %v2627 = vand.u32 %v2626, 4294901760
    %v2628 = vsub.f32 %v2626, %v2627
    %v2629 = vand.u32 %v2628, 4294901760
    %2630 = vmatprep.subr.mxu0 %v2629
    %v2631 = vand.u32 %v2455, 4294901760
    %v2632 = vsub.f32 %v2455, %v2631
    %v2633 = vand.u32 %v2632, 4294901760
    %v2634 = vsub.f32 %v2632, %v2633
    %v2635 = vand.u32 %v2634, 4294901760
    %2636 = vmatpush1.msra.mxu0 %v2635
    %v2637 = vand.u32 %v2416, 4294901760
    %v2638 = vsub.f32 %v2416, %v2637
    %v2639 = vand.u32 %v2638, 4294901760
    %v2640 = vsub.f32 %v2638, %v2639
    %v2641 = vand.u32 %v2640, 4294901760
    %2642 = vmatprep.subr.mxu0 %v2641
    %v2643 = vand.u32 %v2415, 4294901760
    %v2644 = vsub.f32 %v2415, %v2643
    %v2645 = vand.u32 %v2644, 4294901760
    %v2646 = vsub.f32 %v2644, %v2645
    %v2647 = vand.u32 %v2646, 4294901760
    %2648 = vmatpush1.msra.mxu0 %v2647
    %v2649 = vand.u32 %v2448, 4294901760
    %v2650 = vsub.f32 %v2448, %v2649
    %v2651 = vand.u32 %v2650, 4294901760
    %v2652 = vsub.f32 %v2650, %v2651
    %v2653 = vand.u32 %v2652, 4294901760
    %2654 = vmatprep.subr.mxu0 %v2653
    %v2655 = vand.u32 %v2447, 4294901760
    %v2656 = vsub.f32 %v2447, %v2655
    %v2657 = vand.u32 %v2656, 4294901760
    %v2658 = vsub.f32 %v2656, %v2657
    %v2659 = vand.u32 %v2658, 4294901760
    %2660 = vmatpush1.msra.mxu0 %v2659
    %v2661 = vand.u32 %v2440, 4294901760
    %v2662 = vsub.f32 %v2440, %v2661
    %v2663 = vand.u32 %v2662, 4294901760
    %v2664 = vsub.f32 %v2662, %v2663
    %v2665 = vand.u32 %v2664, 4294901760
    %2666 = vmatprep.subr.mxu0 %v2665
    %v2667 = vand.u32 %v2439, 4294901760
    %v2668 = vsub.f32 %v2439, %v2667
    %v2669 = vand.u32 %v2668, 4294901760
    %v2670 = vsub.f32 %v2668, %v2669
    %v2671 = vand.u32 %v2670, 4294901760
    %2672 = vmatpush1.msra.mxu0 %v2671
    %v2673 = vand.u32 %v2432, 4294901760
    %v2674 = vsub.f32 %v2432, %v2673
    %v2675 = vand.u32 %v2674, 4294901760
    %v2676 = vsub.f32 %v2674, %v2675
    %v2677 = vand.u32 %v2676, 4294901760
    %2678 = vmatprep.subr.mxu0 %v2677
    %v2679 = vand.u32 %v2431, 4294901760
    %v2680 = vsub.f32 %v2431, %v2679
    %v2681 = vand.u32 %v2680, 4294901760
    %v2682 = vsub.f32 %v2680, %v2681
    %v2683 = vand.u32 %v2682, 4294901760
    %2684 = vmatpush1.msra.mxu0 %v2683
    %v2685 = vand.u32 %v2424, 4294901760
    %v2686 = vsub.f32 %v2424, %v2685
    %v2687 = vand.u32 %v2686, 4294901760
    %v2688 = vsub.f32 %v2686, %v2687
    %v2689 = vand.u32 %v2688, 4294901760
    %2690 = vmatprep.subr.mxu0 %v2689
    %v2691 = vand.u32 %v2423, 4294901760
    %v2692 = vsub.f32 %v2423, %v2691
    %v2693 = vand.u32 %v2692, 4294901760
    %v2694 = vsub.f32 %v2692, %v2693
    %v2695 = vand.u32 %v2694, 4294901760
    %2696 = vmatpush1.msra.mxu0 %v2695
    %2697 = vmatprep.subr.mxu0 0.0
    %2698 = vmatpush2.msra.mxu0 0.0
    %2699 = vmatprep.subr.mxu0 0.0
    %2700 = vmatpush2.msra.mxu0 0.0
    %2701 = vmatprep.subr.mxu0 0.0
    %2702 = vmatpush2.msra.mxu0 0.0
    %2703 = vmatprep.subr.mxu0 0.0
    %2704 = vmatpush2.msra.mxu0 0.0
    %2705 = vmatprep.subr.mxu0 0.0
    %2706 = vmatpush2.msra.mxu0 0.0
    %2707 = vmatprep.subr.mxu0 0.0
    %2708 = vmatpush2.msra.mxu0 0.0
    %2709 = vmatprep.subr.mxu0 0.0
    %2710 = vmatpush2.msra.mxu0 0.0
    %2711 = vmatprep.subr.mxu0 0.0
    %2712 = vmatpush2.msra.mxu0 0.0
    %2713 = vmatprep.subr.mxu0 0.0
    %2714 = vmatpush2.msra.mxu0 0.0
    %2715 = vmatprep.subr.mxu0 0.0
    %2716 = vmatpush2.msra.mxu0 0.0
    %2717 = vmatprep.subr.mxu0 0.0
    %2718 = vmatpush2.msra.mxu0 0.0
    %2719 = vmatprep.subr.mxu0 0.0
    %2720 = vmatpush2.msra.mxu0 0.0
    %2721 = vmatprep.subr.mxu0 0.0
    %2722 = vmatpush2.msra.mxu0 0.0
    %2723 = vmatprep.subr.mxu0 0.0
    %2724 = vmatpush2.msra.mxu0 0.0
    %2725 = vmatprep.subr.mxu0 0.0
    %2726 = vmatpush2.msra.mxu0 0.0
    %2727 = vmatprep.subr.mxu0 0.0
    %2728 = vmatpush2.msra.mxu0 0.0
    %2729 = vmatprep.mubr.f32.mxu0 0.0
    %v2730 = vand.u32 %v964, 4294901760
    %2731 = vmatmul.mubr.f32.gmra.mxu0 %v2730
    %v2732 = vpop.f32.mrf.mxu0
    %v2733 = vadd.f32 %v2571, %v2732
    %v2734 = vpop.f32.mrf.mxu0
    %v2735 = vadd.f32 %v2573, %v2734
    %2736 = vdwg.mxu0
    %2737 = vmatprep.subr.mxu0 0.0
    %2738 = vmatpush1.msra.mxu0 0.0
    %2739 = vmatprep.subr.mxu0 0.0
    %2740 = vmatpush1.msra.mxu0 0.0
    %2741 = vmatprep.subr.mxu0 0.0
    %2742 = vmatpush1.msra.mxu0 0.0
    %2743 = vmatprep.subr.mxu0 0.0
    %2744 = vmatpush1.msra.mxu0 0.0
    %2745 = vmatprep.subr.mxu0 0.0
    %2746 = vmatpush1.msra.mxu0 0.0
    %2747 = vmatprep.subr.mxu0 0.0
    %2748 = vmatpush1.msra.mxu0 0.0
    %2749 = vmatprep.subr.mxu0 0.0
    %2750 = vmatpush1.msra.mxu0 0.0
    %v2751 = vand.u32 %v2480, 4294901760
    %v2752 = vsub.f32 %v2480, %v2751
    %2753 = vmatprep.subr.mxu0 %v2752
    %v2754 = vand.u32 %v2479, 4294901760
    %v2755 = vsub.f32 %v2479, %v2754
    %2756 = vmatpush1.msra.mxu0 %v2755
    %v2757 = vand.u32 %v2472, 4294901760
    %v2758 = vsub.f32 %v2472, %v2757
    %2759 = vmatprep.subr.mxu0 %v2758
    %v2760 = vand.u32 %v2471, 4294901760
    %v2761 = vsub.f32 %v2471, %v2760
    %2762 = vmatpush1.msra.mxu0 %v2761
    %v2763 = vand.u32 %v2464, 4294901760
    %v2764 = vsub.f32 %v2464, %v2763
    %2765 = vmatprep.subr.mxu0 %v2764
    %v2766 = vand.u32 %v2463, 4294901760
    %v2767 = vsub.f32 %v2463, %v2766
    %2768 = vmatpush1.msra.mxu0 %v2767
    %v2769 = vand.u32 %v2456, 4294901760
    %v2770 = vsub.f32 %v2456, %v2769
    %2771 = vmatprep.subr.mxu0 %v2770
    %v2772 = vand.u32 %v2455, 4294901760
    %v2773 = vsub.f32 %v2455, %v2772
    %2774 = vmatpush1.msra.mxu0 %v2773
    %v2775 = vand.u32 %v2416, 4294901760
    %v2776 = vsub.f32 %v2416, %v2775
    %2777 = vmatprep.subr.mxu0 %v2776
    %v2778 = vand.u32 %v2415, 4294901760
    %v2779 = vsub.f32 %v2415, %v2778
    %2780 = vmatpush1.msra.mxu0 %v2779
    %v2781 = vand.u32 %v2448, 4294901760
    %v2782 = vsub.f32 %v2448, %v2781
    %2783 = vmatprep.subr.mxu0 %v2782
    %v2784 = vand.u32 %v2447, 4294901760
    %v2785 = vsub.f32 %v2447, %v2784
    %2786 = vmatpush1.msra.mxu0 %v2785
    %v2787 = vand.u32 %v2440, 4294901760
    %v2788 = vsub.f32 %v2440, %v2787
    %2789 = vmatprep.subr.mxu0 %v2788
    %v2790 = vand.u32 %v2439, 4294901760
    %v2791 = vsub.f32 %v2439, %v2790
    %2792 = vmatpush1.msra.mxu0 %v2791
    %v2793 = vand.u32 %v2432, 4294901760
    %v2794 = vsub.f32 %v2432, %v2793
    %2795 = vmatprep.subr.mxu0 %v2794
    %v2796 = vand.u32 %v2431, 4294901760
    %v2797 = vsub.f32 %v2431, %v2796
    %2798 = vmatpush1.msra.mxu0 %v2797
    %v2799 = vand.u32 %v2424, 4294901760
    %v2800 = vsub.f32 %v2424, %v2799
    %2801 = vmatprep.subr.mxu0 %v2800
    %v2802 = vand.u32 %v2423, 4294901760
    %v2803 = vsub.f32 %v2423, %v2802
    %2804 = vmatpush1.msra.mxu0 %v2803
    %2805 = vmatprep.subr.mxu0 0.0
    %2806 = vmatpush2.msra.mxu0 0.0
    %2807 = vmatprep.subr.mxu0 0.0
    %2808 = vmatpush2.msra.mxu0 0.0
    %2809 = vmatprep.subr.mxu0 0.0
    %2810 = vmatpush2.msra.mxu0 0.0
    %2811 = vmatprep.subr.mxu0 0.0
    %2812 = vmatpush2.msra.mxu0 0.0
    %2813 = vmatprep.subr.mxu0 0.0
    %2814 = vmatpush2.msra.mxu0 0.0
    %2815 = vmatprep.subr.mxu0 0.0
    %2816 = vmatpush2.msra.mxu0 0.0
    %2817 = vmatprep.subr.mxu0 0.0
    %2818 = vmatpush2.msra.mxu0 0.0
    %2819 = vmatprep.subr.mxu0 0.0
    %2820 = vmatpush2.msra.mxu0 0.0
    %2821 = vmatprep.subr.mxu0 0.0
    %2822 = vmatpush2.msra.mxu0 0.0
    %2823 = vmatprep.subr.mxu0 0.0
    %2824 = vmatpush2.msra.mxu0 0.0
    %2825 = vmatprep.subr.mxu0 0.0
    %2826 = vmatpush2.msra.mxu0 0.0
    %2827 = vmatprep.subr.mxu0 0.0
    %2828 = vmatpush2.msra.mxu0 0.0
    %2829 = vmatprep.subr.mxu0 0.0
    %2830 = vmatpush2.msra.mxu0 0.0
    %2831 = vmatprep.subr.mxu0 0.0
    %2832 = vmatpush2.msra.mxu0 0.0
    %2833 = vmatprep.subr.mxu0 0.0
    %2834 = vmatpush2.msra.mxu0 0.0
    %2835 = vmatprep.subr.mxu0 0.0
    %2836 = vmatpush2.msra.mxu0 0.0
    %2837 = vmatprep.mubr.f32.mxu0 0.0
    %v2838 = vand.u32 %v964, 4294901760
    %v2839 = vsub.f32 %v964, %v2838
    %2840 = vmatmul.mubr.f32.gmra.mxu0 %v2839
    %v2841 = vpop.f32.mrf.mxu0
    %v2842 = vadd.f32 %v2733, %v2841
    %v2843 = vpop.f32.mrf.mxu0
    %v2844 = vadd.f32 %v2735, %v2843
    %2845 = vdwg.mxu0
    %2846 = vmatprep.subr.mxu0 0.0
    %2847 = vmatpush1.msra.mxu0 0.0
    %2848 = vmatprep.subr.mxu0 0.0
    %2849 = vmatpush1.msra.mxu0 0.0
    %2850 = vmatprep.subr.mxu0 0.0
    %2851 = vmatpush1.msra.mxu0 0.0
    %2852 = vmatprep.subr.mxu0 0.0
    %2853 = vmatpush1.msra.mxu0 0.0
    %2854 = vmatprep.subr.mxu0 0.0
    %2855 = vmatpush1.msra.mxu0 0.0
    %2856 = vmatprep.subr.mxu0 0.0
    %2857 = vmatpush1.msra.mxu0 0.0
    %2858 = vmatprep.subr.mxu0 0.0
    %2859 = vmatpush1.msra.mxu0 0.0
    %v2860 = vand.u32 %v2480, 4294901760
    %2861 = vmatprep.subr.mxu0 %v2860
    %v2862 = vand.u32 %v2479, 4294901760
    %2863 = vmatpush1.msra.mxu0 %v2862
    %v2864 = vand.u32 %v2472, 4294901760
    %2865 = vmatprep.subr.mxu0 %v2864
    %v2866 = vand.u32 %v2471, 4294901760
    %2867 = vmatpush1.msra.mxu0 %v2866
    %v2868 = vand.u32 %v2464, 4294901760
    %2869 = vmatprep.subr.mxu0 %v2868
    %v2870 = vand.u32 %v2463, 4294901760
    %2871 = vmatpush1.msra.mxu0 %v2870
    %v2872 = vand.u32 %v2456, 4294901760
    %2873 = vmatprep.subr.mxu0 %v2872
    %v2874 = vand.u32 %v2455, 4294901760
    %2875 = vmatpush1.msra.mxu0 %v2874
    %v2876 = vand.u32 %v2416, 4294901760
    %2877 = vmatprep.subr.mxu0 %v2876
    %v2878 = vand.u32 %v2415, 4294901760
    %2879 = vmatpush1.msra.mxu0 %v2878
    %v2880 = vand.u32 %v2448, 4294901760
    %2881 = vmatprep.subr.mxu0 %v2880
    %v2882 = vand.u32 %v2447, 4294901760
    %2883 = vmatpush1.msra.mxu0 %v2882
    %v2884 = vand.u32 %v2440, 4294901760
    %2885 = vmatprep.subr.mxu0 %v2884
    %v2886 = vand.u32 %v2439, 4294901760
    %2887 = vmatpush1.msra.mxu0 %v2886
    %v2888 = vand.u32 %v2432, 4294901760
    %2889 = vmatprep.subr.mxu0 %v2888
    %v2890 = vand.u32 %v2431, 4294901760
    %2891 = vmatpush1.msra.mxu0 %v2890
    %v2892 = vand.u32 %v2424, 4294901760
    %2893 = vmatprep.subr.mxu0 %v2892
    %v2894 = vand.u32 %v2423, 4294901760
    %2895 = vmatpush1.msra.mxu0 %v2894
    %2896 = vmatprep.subr.mxu0 0.0
    %2897 = vmatpush2.msra.mxu0 0.0
    %2898 = vmatprep.subr.mxu0 0.0
    %2899 = vmatpush2.msra.mxu0 0.0
    %2900 = vmatprep.subr.mxu0 0.0
    %2901 = vmatpush2.msra.mxu0 0.0
    %2902 = vmatprep.subr.mxu0 0.0
    %2903 = vmatpush2.msra.mxu0 0.0
    %2904 = vmatprep.subr.mxu0 0.0
    %2905 = vmatpush2.msra.mxu0 0.0
    %2906 = vmatprep.subr.mxu0 0.0
    %2907 = vmatpush2.msra.mxu0 0.0
    %2908 = vmatprep.subr.mxu0 0.0
    %2909 = vmatpush2.msra.mxu0 0.0
    %2910 = vmatprep.subr.mxu0 0.0
    %2911 = vmatpush2.msra.mxu0 0.0
    %2912 = vmatprep.subr.mxu0 0.0
    %2913 = vmatpush2.msra.mxu0 0.0
    %2914 = vmatprep.subr.mxu0 0.0
    %2915 = vmatpush2.msra.mxu0 0.0
    %2916 = vmatprep.subr.mxu0 0.0
    %2917 = vmatpush2.msra.mxu0 0.0
    %2918 = vmatprep.subr.mxu0 0.0
    %2919 = vmatpush2.msra.mxu0 0.0
    %2920 = vmatprep.subr.mxu0 0.0
    %2921 = vmatpush2.msra.mxu0 0.0
    %2922 = vmatprep.subr.mxu0 0.0
    %2923 = vmatpush2.msra.mxu0 0.0
    %2924 = vmatprep.subr.mxu0 0.0
    %2925 = vmatpush2.msra.mxu0 0.0
    %2926 = vmatprep.subr.mxu0 0.0
    %2927 = vmatpush2.msra.mxu0 0.0
    %2928 = vmatprep.mubr.f32.mxu0 0.0
    %v2929 = vand.u32 %v964, 4294901760
    %v2930 = vsub.f32 %v964, %v2929
    %v2931 = vand.u32 %v2930, 4294901760
    %2932 = vmatmul.mubr.f32.gmra.mxu0 %v2931
    %v2933 = vpop.f32.mrf.mxu0
    %v2934 = vadd.f32 %v2842, %v2933
    %v2935 = vpop.f32.mrf.mxu0
    %v2936 = vadd.f32 %v2844, %v2935
    %2937 = vdwg.mxu0
    %2938 = vmatprep.subr.mxu0 0.0
    %2939 = vmatpush1.msra.mxu0 0.0
    %2940 = vmatprep.subr.mxu0 0.0
    %2941 = vmatpush1.msra.mxu0 0.0
    %2942 = vmatprep.subr.mxu0 0.0
    %2943 = vmatpush1.msra.mxu0 0.0
    %2944 = vmatprep.subr.mxu0 0.0
    %2945 = vmatpush1.msra.mxu0 0.0
    %2946 = vmatprep.subr.mxu0 0.0
    %2947 = vmatpush1.msra.mxu0 0.0
    %2948 = vmatprep.subr.mxu0 0.0
    %2949 = vmatpush1.msra.mxu0 0.0
    %2950 = vmatprep.subr.mxu0 0.0
    %2951 = vmatpush1.msra.mxu0 0.0
    %v2952 = vand.u32 %v2480, 4294901760
    %v2953 = vsub.f32 %v2480, %v2952
    %v2954 = vand.u32 %v2953, 4294901760
    %2955 = vmatprep.subr.mxu0 %v2954
    %v2956 = vand.u32 %v2479, 4294901760
    %v2957 = vsub.f32 %v2479, %v2956
    %v2958 = vand.u32 %v2957, 4294901760
    %2959 = vmatpush1.msra.mxu0 %v2958
    %v2960 = vand.u32 %v2472, 4294901760
    %v2961 = vsub.f32 %v2472, %v2960
    %v2962 = vand.u32 %v2961, 4294901760
    %2963 = vmatprep.subr.mxu0 %v2962
    %v2964 = vand.u32 %v2471, 4294901760
    %v2965 = vsub.f32 %v2471, %v2964
    %v2966 = vand.u32 %v2965, 4294901760
    %2967 = vmatpush1.msra.mxu0 %v2966
    %v2968 = vand.u32 %v2464, 4294901760
    %v2969 = vsub.f32 %v2464, %v2968
    %v2970 = vand.u32 %v2969, 4294901760
    %2971 = vmatprep.subr.mxu0 %v2970
    %v2972 = vand.u32 %v2463, 4294901760
    %v2973 = vsub.f32 %v2463, %v2972
    %v2974 = vand.u32 %v2973, 4294901760
    %2975 = vmatpush1.msra.mxu0 %v2974
    %v2976 = vand.u32 %v2456, 4294901760
    %v2977 = vsub.f32 %v2456, %v2976
    %v2978 = vand.u32 %v2977, 4294901760
    %2979 = vmatprep.subr.mxu0 %v2978
    %v2980 = vand.u32 %v2455, 4294901760
    %v2981 = vsub.f32 %v2455, %v2980
    %v2982 = vand.u32 %v2981, 4294901760
    %2983 = vmatpush1.msra.mxu0 %v2982
    %v2984 = vand.u32 %v2416, 4294901760
    %v2985 = vsub.f32 %v2416, %v2984
    %v2986 = vand.u32 %v2985, 4294901760
    %2987 = vmatprep.subr.mxu0 %v2986
    %v2988 = vand.u32 %v2415, 4294901760
    %v2989 = vsub.f32 %v2415, %v2988
    %v2990 = vand.u32 %v2989, 4294901760
    %2991 = vmatpush1.msra.mxu0 %v2990
    %v2992 = vand.u32 %v2448, 4294901760
    %v2993 = vsub.f32 %v2448, %v2992
    %v2994 = vand.u32 %v2993, 4294901760
    %2995 = vmatprep.subr.mxu0 %v2994
    %v2996 = vand.u32 %v2447, 4294901760
    %v2997 = vsub.f32 %v2447, %v2996
    %v2998 = vand.u32 %v2997, 4294901760
    %2999 = vmatpush1.msra.mxu0 %v2998
    %v3000 = vand.u32 %v2440, 4294901760
    %v3001 = vsub.f32 %v2440, %v3000
    %v3002 = vand.u32 %v3001, 4294901760
    %3003 = vmatprep.subr.mxu0 %v3002
    %v3004 = vand.u32 %v2439, 4294901760
    %v3005 = vsub.f32 %v2439, %v3004
    %v3006 = vand.u32 %v3005, 4294901760
    %3007 = vmatpush1.msra.mxu0 %v3006
    %v3008 = vand.u32 %v2432, 4294901760
    %v3009 = vsub.f32 %v2432, %v3008
    %v3010 = vand.u32 %v3009, 4294901760
    %3011 = vmatprep.subr.mxu0 %v3010
    %v3012 = vand.u32 %v2431, 4294901760
    %v3013 = vsub.f32 %v2431, %v3012
    %v3014 = vand.u32 %v3013, 4294901760
    %3015 = vmatpush1.msra.mxu0 %v3014
    %v3016 = vand.u32 %v2424, 4294901760
    %v3017 = vsub.f32 %v2424, %v3016
    %v3018 = vand.u32 %v3017, 4294901760
    %3019 = vmatprep.subr.mxu0 %v3018
    %v3020 = vand.u32 %v2423, 4294901760
    %v3021 = vsub.f32 %v2423, %v3020
    %v3022 = vand.u32 %v3021, 4294901760
    %3023 = vmatpush1.msra.mxu0 %v3022
    %3024 = vmatprep.subr.mxu0 0.0
    %3025 = vmatpush2.msra.mxu0 0.0
    %3026 = vmatprep.subr.mxu0 0.0
    %3027 = vmatpush2.msra.mxu0 0.0
    %3028 = vmatprep.subr.mxu0 0.0
    %3029 = vmatpush2.msra.mxu0 0.0
    %3030 = vmatprep.subr.mxu0 0.0
    %3031 = vmatpush2.msra.mxu0 0.0
    %3032 = vmatprep.subr.mxu0 0.0
    %3033 = vmatpush2.msra.mxu0 0.0
    %3034 = vmatprep.subr.mxu0 0.0
    %3035 = vmatpush2.msra.mxu0 0.0
    %3036 = vmatprep.subr.mxu0 0.0
    %3037 = vmatpush2.msra.mxu0 0.0
    %3038 = vmatprep.subr.mxu0 0.0
    %3039 = vmatpush2.msra.mxu0 0.0
    %3040 = vmatprep.subr.mxu0 0.0
    %3041 = vmatpush2.msra.mxu0 0.0
    %3042 = vmatprep.subr.mxu0 0.0
    %3043 = vmatpush2.msra.mxu0 0.0
    %3044 = vmatprep.subr.mxu0 0.0
    %3045 = vmatpush2.msra.mxu0 0.0
    %3046 = vmatprep.subr.mxu0 0.0
    %3047 = vmatpush2.msra.mxu0 0.0
    %3048 = vmatprep.subr.mxu0 0.0
    %3049 = vmatpush2.msra.mxu0 0.0
    %3050 = vmatprep.subr.mxu0 0.0
    %3051 = vmatpush2.msra.mxu0 0.0
    %3052 = vmatprep.subr.mxu0 0.0
    %3053 = vmatpush2.msra.mxu0 0.0
    %3054 = vmatprep.subr.mxu0 0.0
    %3055 = vmatpush2.msra.mxu0 0.0
    %3056 = vmatprep.mubr.f32.mxu0 0.0
    %v3057 = vand.u32 %v964, 4294901760
    %3058 = vmatmul.mubr.f32.gmra.mxu0 %v3057
    %v3059 = vpop.f32.mrf.mxu0
    %v3060 = vadd.f32 %v2934, %v3059
    %v3061 = vpop.f32.mrf.mxu0
    %v3062 = vadd.f32 %v2936, %v3061
    %3063 = vdwg.mxu0
    %3064 = vmatprep.subr.mxu0 0.0
    %3065 = vmatpush1.msra.mxu0 0.0
    %3066 = vmatprep.subr.mxu0 0.0
    %3067 = vmatpush1.msra.mxu0 0.0
    %3068 = vmatprep.subr.mxu0 0.0
    %3069 = vmatpush1.msra.mxu0 0.0
    %3070 = vmatprep.subr.mxu0 0.0
    %3071 = vmatpush1.msra.mxu0 0.0
    %3072 = vmatprep.subr.mxu0 0.0
    %3073 = vmatpush1.msra.mxu0 0.0
    %3074 = vmatprep.subr.mxu0 0.0
    %3075 = vmatpush1.msra.mxu0 0.0
    %3076 = vmatprep.subr.mxu0 0.0
    %3077 = vmatpush1.msra.mxu0 0.0
    %v3078 = vand.u32 %v2480, 4294901760
    %3079 = vmatprep.subr.mxu0 %v3078
    %v3080 = vand.u32 %v2479, 4294901760
    %3081 = vmatpush1.msra.mxu0 %v3080
    %v3082 = vand.u32 %v2472, 4294901760
    %3083 = vmatprep.subr.mxu0 %v3082
    %v3084 = vand.u32 %v2471, 4294901760
    %3085 = vmatpush1.msra.mxu0 %v3084
    %v3086 = vand.u32 %v2464, 4294901760
    %3087 = vmatprep.subr.mxu0 %v3086
    %v3088 = vand.u32 %v2463, 4294901760
    %3089 = vmatpush1.msra.mxu0 %v3088
    %v3090 = vand.u32 %v2456, 4294901760
    %3091 = vmatprep.subr.mxu0 %v3090
    %v3092 = vand.u32 %v2455, 4294901760
    %3093 = vmatpush1.msra.mxu0 %v3092
    %v3094 = vand.u32 %v2416, 4294901760
    %3095 = vmatprep.subr.mxu0 %v3094
    %v3096 = vand.u32 %v2415, 4294901760
    %3097 = vmatpush1.msra.mxu0 %v3096
    %v3098 = vand.u32 %v2448, 4294901760
    %3099 = vmatprep.subr.mxu0 %v3098
    %v3100 = vand.u32 %v2447, 4294901760
    %3101 = vmatpush1.msra.mxu0 %v3100
    %v3102 = vand.u32 %v2440, 4294901760
    %3103 = vmatprep.subr.mxu0 %v3102
    %v3104 = vand.u32 %v2439, 4294901760
    %3105 = vmatpush1.msra.mxu0 %v3104
    %v3106 = vand.u32 %v2432, 4294901760
    %3107 = vmatprep.subr.mxu0 %v3106
    %v3108 = vand.u32 %v2431, 4294901760
    %3109 = vmatpush1.msra.mxu0 %v3108
    %v3110 = vand.u32 %v2424, 4294901760
    %3111 = vmatprep.subr.mxu0 %v3110
    %v3112 = vand.u32 %v2423, 4294901760
    %3113 = vmatpush1.msra.mxu0 %v3112
    %3114 = vmatprep.subr.mxu0 0.0
    %3115 = vmatpush2.msra.mxu0 0.0
    %3116 = vmatprep.subr.mxu0 0.0
    %3117 = vmatpush2.msra.mxu0 0.0
    %3118 = vmatprep.subr.mxu0 0.0
    %3119 = vmatpush2.msra.mxu0 0.0
    %3120 = vmatprep.subr.mxu0 0.0
    %3121 = vmatpush2.msra.mxu0 0.0
    %3122 = vmatprep.subr.mxu0 0.0
    %3123 = vmatpush2.msra.mxu0 0.0
    %3124 = vmatprep.subr.mxu0 0.0
    %3125 = vmatpush2.msra.mxu0 0.0
    %3126 = vmatprep.subr.mxu0 0.0
    %3127 = vmatpush2.msra.mxu0 0.0
    %3128 = vmatprep.subr.mxu0 0.0
    %3129 = vmatpush2.msra.mxu0 0.0
    %3130 = vmatprep.subr.mxu0 0.0
    %3131 = vmatpush2.msra.mxu0 0.0
    %3132 = vmatprep.subr.mxu0 0.0
    %3133 = vmatpush2.msra.mxu0 0.0
    %3134 = vmatprep.subr.mxu0 0.0
    %3135 = vmatpush2.msra.mxu0 0.0
    %3136 = vmatprep.subr.mxu0 0.0
    %3137 = vmatpush2.msra.mxu0 0.0
    %3138 = vmatprep.subr.mxu0 0.0
    %3139 = vmatpush2.msra.mxu0 0.0
    %3140 = vmatprep.subr.mxu0 0.0
    %3141 = vmatpush2.msra.mxu0 0.0
    %3142 = vmatprep.subr.mxu0 0.0
    %3143 = vmatpush2.msra.mxu0 0.0
    %3144 = vmatprep.subr.mxu0 0.0
    %3145 = vmatpush2.msra.mxu0 0.0
    %3146 = vmatprep.mubr.f32.mxu0 0.0
    %v3147 = vand.u32 %v964, 4294901760
    %3148 = vmatmul.mubr.f32.gmra.mxu0 %v3147
    %v3149 = vpop.f32.mrf.mxu0
    %v3150 = vadd.f32 %v3060, %v3149
    %v3151 = vpop.f32.mrf.mxu0
    %v3152 = vadd.f32 %v3062, %v3151
    %3153 = vdwg.mxu0
    %v3154 = vadd.f32 %v3150, %v3152
    %3155 = vadd.xlane.f32.xlu0 %v3154
    %v3156 = vpop.xlane.xlu0 %3155
    %v3157 = vmul.f32 %v3156, %v883
    %v3158 = vsub.f32 %v3150, %v3157
    %v3159 = vsub.f32 %v3152, %v3157
    %v3160 = vmul.f32 %v3158, %v3158
    %v3161 = vmul.f32 %v3159, %v3159
    %v3162 = vadd.f32 %v3160, %v3161
    %3163 = vadd.xlane.f32.xlu0 %v3162
    %v3164 = vpop.xlane.xlu0 %3163
    %v3165 = vmul.f32 %v3164, %v883
    %v3166 = vadd.f32 %v3165, 1e-05
    %v3167 = vrsqrt.pop %v3166
    %v3168 = vmul.f32 %v3158, %v3167
    %v3169 = vmul.f32 %v3159, %v3167
    %v3170 = vmax.f32 %v3168, 0.0
    %v3171 = vmax.f32 %v3169, 0.0
    %s3172 = scalar_lea.vmem [#allocation8], 16
    %3173 = vst [vmem:[%s3172] sm:$0xff] %v3170
    %3174 = vst [vmem:[%s3172 + $0x8] sm:$0xff] %v3171
    // Predicated region
    $region26: #{tpu_custom_call.1} parent=1 // pred_check
      _
    $region27: #{tpu_custom_call.1} parent=1 // pred_check_branch
      %3176 = sbr.rel (0) target = $region29
    $region28: #{tpu_custom_call.1} parent=1 // pred_region
      %s3178 = ssub.s32 512, 512
      %3179 = vsyncadd [#allocation4], %s3178
      %s3180 = sshll.u32 [#allocation8], 4
      %s3181 = int_to_ptr.vmem [resolvable:$true] %s3180
      %3186 = dma.vmem_to_hbm [thread:$0]  %s3181, 512, %s3, [#allocation4], 256, 256, 16
    $region29: #{tpu_custom_call.1} parent=1 // pred_fallthru
      _
    // Predicated region
    $region30: #{tpu_custom_call.1} parent=1 // pred_check
      _
    $region31: #{tpu_custom_call.1} parent=1 // pred_check_branch
      %3188 = sbr.rel (0) target = $region33
    $region32: #{tpu_custom_call.1} parent=1 // pred_region
      %3189 = dma.done [#allocation4], 512
    $region33: #{tpu_custom_call.1} parent=1 // pred_fallthru
      _
    %3190 = vsyncpa [#allocation3], 1
    %3191 = vsyncpa [#allocation6], 1
    %3192 = vsyncpa [#allocation4], 1

</llo_original>
